<compile_context>
chip_gen: v5e
topology: v5e:2x2
jax: 0.10.0
libtpu: 0.0.40
codegen_flags: <defaults>
</compile_context>

<pallas_src>
import functools

import jax
import jax.numpy as jnp
from jax.experimental import pallas as pl
from jax.experimental.pallas import tpu as pltpu


# ----------------------------------------------------------------------------
# Small static helpers (tile planning)
# ----------------------------------------------------------------------------
def _round_up(x, m):
    return ((x + m - 1) // m) * m


def _cdiv(a, b):
    return (a + b - 1) // b


@functools.lru_cache(maxsize=None)
def _vmem_budget_bytes():
    """Per-generation scoped-VMEM budget (conservative on 64 MiB parts)."""
    try:
        kind = jax.devices()[0].device_kind.lower()
    except Exception:
        kind = ""
    if any(v in kind for v in ("v4", "v5", "v6")):
        return 96 * 1024 * 1024          # 128 MiB physical VMEM generations
    return 48 * 1024 * 1024              # v7x (64 MiB physical) / unknown


@functools.lru_cache(maxsize=None)
def _max_tile_n():
    # Bigger token blocks amortize weight streaming on 128 MiB VMEM parts.
    return 512 if _vmem_budget_bytes() >= 96 * 1024 * 1024 else 256


@functools.lru_cache(maxsize=None)
def _pick_tile_h(H, D):
    """Largest 128-multiple divisor of H (capped at 1024) whose double-
    buffered working set fits the VMEM budget; falls back to H itself."""
    budget = int(0.75 * _vmem_budget_bytes())
    tn = _max_tile_n()
    cands = [t for t in range(min(H, 1024), 0, -1)
             if H % t == 0 and t % 128 == 0]
    if not cands:
        return H                          # H < 128 or not 128-divisible
    for t in cands:
        need = (2 * (tn * D * 2           # x block (bf16), double buffered
                     + D * (2 * t) * 2    # fused gate/up weight block (bf16)
                     + t * D * 2          # down-proj weight block (bf16)
                     + tn * D * 2)        # out block (bf16)
                + tn * D * 4)             # f32 accumulator scratch
        if need <= budget:
            return t
    return cands[-1]                      # best effort (smallest candidate)


def _fuse_gate_up(w1, w3, tile_h):
    """Fuse the gate (w1) and up (w3) projections into one (..., D, 2*H)
    operand, interleaved in blocks of `tile_h` so the hk-th (D, 2*tile_h)
    slab is [w1-tile-hk | w3-tile-hk]."""
    w1t = jnp.swapaxes(w1, -1, -2)
    w3t = jnp.swapaxes(w3, -1, -2)
    lead = w1t.shape[:-2]
    D, H = w1t.shape[-2:]
    nk = H // tile_h
    stacked = jnp.stack(
        [w1t.reshape(*lead, D, nk, tile_h), w3t.reshape(*lead, D, nk, tile_h)],
        axis=-2)
    return stacked.reshape(*lead, D, 2 * H)


def prepare_params(raw_params):
    """One-time kernel-friendly re-layout of the PyTorch-style parameters
    (done outside the jitted forward -> no per-call HBM weight copies)."""
    D = raw_params["gate_w"].shape[1]
    H = raw_params["w1"].shape[1]
    Hs = raw_params["shared_w1"].shape[0]
    tile_h = _pick_tile_h(H, D)
    tile_hs = _pick_tile_h(Hs, D)
    bf16 = jnp.bfloat16
    return {
        "gate_w": raw_params["gate_w"],
        "w13": _fuse_gate_up(raw_params["w1"], raw_params["w3"],
                             tile_h).astype(bf16),                  # (E, D, 2H)
        "w2t": jnp.swapaxes(raw_params["w2"], -1, -2).astype(bf16),  # (E, H, D)
        "shared_w13": _fuse_gate_up(raw_params["shared_w1"],
                                    raw_params["shared_w3"],
                                    tile_hs).astype(bf16),          # (D, 2Hs)
        "shared_w2t": jnp.swapaxes(raw_params["shared_w2"],
                                   -1, -2).astype(bf16),            # (Hs, D)
    }


# ----------------------------------------------------------------------------
# Kernels
# ----------------------------------------------------------------------------
def _routed_ffn_kernel(be_ref, nrows_ref, x_ref, gate_ref, w13_ref, w2_ref,
                       y_ref, acc_ref):
    """Grouped routed-expert SwiGLU FFN.

    Grid = (token_block, hidden_tile).  Each tile_n-row block of the padded,
    expert-sorted activation buffer is served by a single expert; the scalar
    prefetched block->expert table drives the weight BlockSpec index_maps and
    the per-block valid-row count gates compute for all-padding blocks.  The
    hidden dim is the trailing reduction axis: a resident f32 scratch
    accumulates across it and the gate-scaled bf16 result is written once at
    the last hidden tile.
    """
    del be_ref  # consumed only by the BlockSpec index_maps
    b = pl.program_id(0)
    hk = pl.program_id(1)
    tile_h = w2_ref.shape[1]

    @pl.when(hk == 0)
    def _():
        acc_ref[...] = jnp.zeros_like(acc_ref)

    @pl.when(nrows_ref[b] > 0)            # skip all-padding blocks entirely
    def _():
        x = x_ref[...]                    # (tile_n, D)      bf16
        w13 = w13_ref[0]                  # (D, 2*tile_h)    bf16  [gate | up]
        hu = jnp.dot(x, w13, preferred_element_type=jnp.float32)
        h, u = hu[:, :tile_h], hu[:, tile_h:]
        act = (h * jax.nn.sigmoid(h)) * u                    # SwiGLU, f32
        acc_ref[...] += jnp.dot(act.astype(w2_ref.dtype), w2_ref[0],
                                preferred_element_type=jnp.float32)

    @pl.when(hk == pl.num_programs(1) - 1)
    def _():
        # Fused per-assignment gate scaling; bf16 writeback halves the output
        # HBM traffic.  Padding rows carry gate 0 and are never read.
        y_ref[...] = (acc_ref[...] * gate_ref[...]).astype(y_ref.dtype)


def _shared_ffn_kernel(x_ref, routed_ref, w13_ref, w2_ref, out_ref):
    """out = routed + SwiGLU_shared(x); tiled over tokens and the shared
    hidden dim, f32 output block resident across the reduction axis."""
    hk = pl.program_id(1)
    tile_h = w2_ref.shape[0]

    @pl.when(hk == 0)
    def _():
        out_ref[...] = routed_ref[...]                       # fused residual add

    x = x_ref[...]                                           # (tile_n, D) bf16
    hu = jnp.dot(x, w13_ref[...], preferred_element_type=jnp.float32)
    h, u = hu[:, :tile_h], hu[:, tile_h:]
    act = (h * jax.nn.sigmoid(h)) * u
    out_ref[...] += jnp.dot(act.astype(w2_ref.dtype), w2_ref[...],
                            preferred_element_type=jnp.float32)


# ----------------------------------------------------------------------------
# Forward
# ----------------------------------------------------------------------------
@functools.partial(
    jax.jit,
    static_argnames=("topk", "normalized_moe_gates", "topk_norm_epsilon",
                     "block_tokens"),
)
def moe_forward(x, params, *, topk, normalized_moe_gates=True,
                topk_norm_epsilon=1e-9, block_tokens=512):
    B, T, D = x.shape
    N = B * T
    x_flat = x.reshape(N, D).astype(jnp.bfloat16)            # bf16 MXU operands

    wg = params["gate_w"]                                    # (E, D)
    E = wg.shape[0]
    H = params["w2t"].shape[1]                               # routed hidden
    Hs = params["shared_w2t"].shape[0]                       # shared hidden

    # ---- static tile plan (matches prepare_params) --------------------------
    S = N * topk                                             # total assignments
    tile_n = min(block_tokens, _max_tile_n(),
                 max(128, _round_up(_cdiv(S, E), 128)))      # MXU-aligned floor
    tile_n_sh = min(block_tokens, _max_tile_n(), _round_up(N, 16))
    tile_h = _pick_tile_h(H, D)
    tile_hs = _pick_tile_h(Hs, D)
    vmem_limit = _vmem_budget_bytes()

    # ---- gating: softmax(x @ Wg^T), top-k, optional normalization (XLA) -----
    # Tiny lane-sparse (N x E) work; computed in f32 exactly like the
    # reference so expert selection matches.
    logits = jnp.dot(x_flat.astype(jnp.float32), wg.astype(jnp.float32).T)
    gates = jax.nn.softmax(logits, axis=-1)
    top_values, top_indices = jax.lax.top_k(gates, topk)
    if normalized_moe_gates:
        top_values = top_values / (
            jnp.sum(top_values, axis=-1, keepdims=True) + topk_norm_epsilon)

    # ---- grouped dispatch: sort assignments by expert, pad groups to tile_n -
    expert_ids = top_indices.reshape(S).astype(jnp.int32)
    gate_vals = top_values.reshape(S).astype(jnp.float32)
    token_ids = jnp.repeat(jnp.arange(N, dtype=jnp.int32), topk)

    m_pad = _round_up(S + min(E, S) * (tile_n - 1), tile_n)  # static upper bound
    num_blocks = m_pad // tile_n

    counts = jnp.bincount(expert_ids, length=E).astype(jnp.int32)
    padded_counts = ((counts + tile_n - 1) // tile_n) * tile_n
    padded_ends = jnp.cumsum(padded_counts)
    group_starts = padded_ends - padded_counts
    count_starts = jnp.cumsum(counts) - counts

    order = jnp.argsort(expert_ids)                          # group by expert
    sorted_experts = expert_ids[order]
    rank_in_group = jnp.arange(S, dtype=jnp.int32) - count_starts[sorted_experts]
    dest = group_starts[sorted_experts] + rank_in_group      # unique padded rows

    token_for_row = jnp.zeros((m_pad,), jnp.int32).at[dest].set(token_ids[order])
    gate_for_row = jnp.zeros((m_pad,), jnp.float32).at[dest].set(gate_vals[order])
    x_grouped = x_flat[token_for_row]                        # (m_pad, D) bf16

    block_starts = jnp.arange(num_blocks, dtype=jnp.int32) * tile_n
    raw_block_expert = jnp.minimum(
        jnp.searchsorted(padded_ends, block_starts, side="right"),
        E - 1).astype(jnp.int32)
    block_nrows = jnp.clip(
        group_starts[raw_block_expert] + counts[raw_block_expert] - block_starts,
        0, tile_n).astype(jnp.int32)
    # All-padding blocks reuse the previous valid block's expert so their
    # weight DMA is elided (revisit) when the hidden dim fits a single tile.
    block_expert = jnp.maximum(
        jax.lax.cummax(jnp.where(block_nrows > 0, raw_block_expert, -1), axis=0),
        0).astype(jnp.int32)

    # ---- routed experts: grouped SwiGLU over assigned tokens only -----------
    y_grouped = pl.pallas_call(
        _routed_ffn_kernel,
        out_shape=jax.ShapeDtypeStruct((m_pad, D), jnp.bfloat16),
        grid_spec=pltpu.PrefetchScalarGridSpec(
            num_scalar_prefetch=2,
            grid=(num_blocks, H // tile_h),
            in_specs=[
                pl.BlockSpec((tile_n, D), lambda b, hk, be, nr: (b, 0)),
                pl.BlockSpec((tile_n, 1), lambda b, hk, be, nr: (b, 0)),
                pl.BlockSpec((1, D, 2 * tile_h),
                             lambda b, hk, be, nr: (be[b], 0, hk)),
                pl.BlockSpec((1, tile_h, D),
                             lambda b, hk, be, nr: (be[b], hk, 0)),
            ],
            out_specs=pl.BlockSpec((tile_n, D), lambda b, hk, be, nr: (b, 0)),
            scratch_shapes=[pltpu.VMEM((tile_n, D), jnp.float32)],
        ),
        compiler_params=pltpu.CompilerParams(
            dimension_semantics=("parallel", "arbitrary"),
            vmem_limit_bytes=vmem_limit),
    )(block_expert, block_nrows, x_grouped, gate_for_row[:, None],
      params["w13"], params["w2t"])

    # ---- combine: inverse-permutation gather + sum over top-k ---------------
    # (gates are already applied inside the kernel)
    row_of_assignment = jnp.zeros((S,), jnp.int32).at[order].set(dest)
    routed = (y_grouped[row_of_assignment]
              .reshape(N, topk, D).astype(jnp.float32).sum(axis=1))

    # ---- shared expert + fused residual add ---------------------------------
    n_pad = _round_up(N, tile_n_sh)
    x_padded = jnp.pad(x_flat, ((0, n_pad - N), (0, 0)))
    routed_padded = jnp.pad(routed, ((0, n_pad - N), (0, 0)))

    out_padded = pl.pallas_call(
        _shared_ffn_kernel,
        out_shape=jax.ShapeDtypeStruct((n_pad, D), jnp.float32),
        grid_spec=pltpu.PrefetchScalarGridSpec(
            num_scalar_prefetch=0,
            grid=(n_pad // tile_n_sh, Hs // tile_hs),
            in_specs=[
                pl.BlockSpec((tile_n_sh, D), lambda b, hk: (b, 0)),
                pl.BlockSpec((tile_n_sh, D), lambda b, hk: (b, 0)),
                pl.BlockSpec((D, 2 * tile_hs), lambda b, hk: (0, hk)),
                pl.BlockSpec((tile_hs, D), lambda b, hk: (hk, 0)),
            ],
            out_specs=pl.BlockSpec((tile_n_sh, D), lambda b, hk: (b, 0)),
        ),
        compiler_params=pltpu.CompilerParams(
            dimension_semantics=("parallel", "arbitrary"),
            vmem_limit_bytes=vmem_limit),
    )(x_padded, routed_padded, params["shared_w13"], params["shared_w2t"])

    return out_padded[:N].reshape(B, T, D).astype(x.dtype)


# ----------------------------------------------------------------------------
# Pure-JAX reference (f32 math on the same bf16-quantized inputs/weights)
# ----------------------------------------------------------------------------
def moe_reference(x, raw_params, *, topk, normalized_moe_gates=True,
                  topk_norm_epsilon=1e-9):
    B, T, D = x.shape
    N = B * T
    f32 = lambda a: a.astype(jnp.float32)
    xq = f32(x.reshape(N, D).astype(jnp.bfloat16))
    gates = jax.nn.softmax(xq @ f32(raw_params["gate_w"]).T, axis=-1)
    top_values, top_indices = jax.lax.top_k(gates, topk)
    masked = jnp.zeros_like(gates).at[
        jnp.arange(N)[:, None], top_indices].set(top_values)
    if normalized_moe_gates:
        masked = masked / (masked.sum(-1, keepdims=True) + topk_norm_epsilon)

    def ffn(xx, w1, w3, w2):
        return (jax.nn.silu(xx @ w1.T) * (xx @ w3.T)) @ w2.T

    routed = jnp.zeros_like(xq)
    for e in range(raw_params["gate_w"].shape[0]):
        routed = routed + masked[:, e:e + 1] * ffn(
            xq, f32(raw_params["w1"][e]), f32(raw_params["w3"][e]),
            f32(raw_params["w2"][e]))
    shared = ffn(xq, f32(raw_params["shared_w1"]),
                 f32(raw_params["shared_w3"]), f32(raw_params["shared_w2"]))
    return (routed + shared).reshape(B, T, D)


# ----------------------------------------------------------------------------
# Deterministic parameter init (shapes follow MoE.__init__), bf16 storage
# ----------------------------------------------------------------------------
def init_params(key, *, d_model, num_routed_experts, moe_hidden,
                num_shared_experts, init_weight_std=0.02, dtype=jnp.bfloat16):
    ks = jax.random.split(key, 7)
    Hs = moe_hidden * num_shared_experts
    std = init_weight_std

    def rnd(k, shape):
        return (jax.random.normal(k, shape, jnp.float32) * std).astype(dtype)

    return {
        "gate_w": rnd(ks[0], (num_routed_experts, d_model)),
        "w1": rnd(ks[1], (num_routed_experts, moe_hidden, d_model)),
        "w3": rnd(ks[2], (num_routed_experts, moe_hidden, d_model)),
        "w2": rnd(ks[3], (num_routed_experts, d_model, moe_hidden)),
        "shared_w1": rnd(ks[4], (Hs, d_model)),
        "shared_w3": rnd(ks[5], (Hs, d_model)),
        "shared_w2": rnd(ks[6], (d_model, Hs)),
    }


if __name__ == "__main__":
    # Small config: B=2, T=8, d_model=256, 8 routed experts (top-2),
    # moe_hidden=256, 2 shared experts.
    B, T, d_model = 2, 8, 256
    num_routed_experts, topk = 8, 2
    moe_hidden, num_shared_experts = 256, 2

    key = jax.random.PRNGKey(0)
    kx, kp = jax.random.split(key)
    x = jax.random.normal(kx, (B, T, d_model), jnp.float32)
    raw_params = init_params(kp, d_model=d_model,
                             num_routed_experts=num_routed_experts,
                             moe_hidden=moe_hidden,
                             num_shared_experts=num_shared_experts)
    params = prepare_params(raw_params)   # one-time transpose + gate/up fusion

    out = moe_forward(x, params, topk=topk, normalized_moe_gates=True,
                      topk_norm_epsilon=1e-9)
    out = jax.block_until_ready(out)

    ref = moe_reference(x, raw_params, topk=topk, normalized_moe_gates=True,
                        topk_norm_epsilon=1e-9)
    assert out.shape == (B, T, d_model), out.shape
    max_err = float(jnp.max(jnp.abs(out - ref)))
    assert jnp.allclose(out, ref, atol=5e-3, rtol=5e-2), max_err

    print("KERNEL_OK")
</pallas_src>

<mosaic_0001>
module attributes {stable_mosaic.version = 11 : i64} {
  func.func @_routed_ffn_kernel(%arg0: i32, %arg1: i32, %arg2: memref<9xi32, #tpu.memory_space<smem>>, %arg3: memref<9xi32, #tpu.memory_space<smem>>, %arg4: memref<128x256xbf16, #tpu.memory_space<vmem>>, %arg5: memref<128x1xf32, #tpu.memory_space<vmem>>, %arg6: memref<1x256x512xbf16, #tpu.memory_space<vmem>>, %arg7: memref<1x256x256xbf16, #tpu.memory_space<vmem>>, %arg8: memref<128x256xbf16, #tpu.memory_space<vmem>>, %arg9: memref<128x256xf32, #tpu.memory_space<vmem>>) attributes {dimension_semantics = [#tpu.dimension_semantics<parallel>, #tpu.dimension_semantics<arbitrary>], iteration_bounds = array<i64: 9, 1>, scalar_prefetch = 2 : i64, scratch_operands = 1 : i64, tpu.core_type = #tpu.core_type<tc>, window_params = [{transform_indices = @transform_0, window_bounds = array<i64: 128, 256>}, {transform_indices = @transform_1, window_bounds = array<i64: 128, 1>}, {transform_indices = @transform_2, window_bounds = array<i64: 1, 256, 512>}, {transform_indices = @transform_3, window_bounds = array<i64: 1, 256, 256>}, {transform_indices = @transform_4, window_bounds = array<i64: 128, 256>}]} {
    %c0_i32 = arith.constant 0 : i32
    %0 = arith.cmpi eq, %arg1, %c0_i32 : i32
    %1 = arith.extui %0 : i1 to i32
    %c0_i32_0 = arith.constant 0 : i32
    %2 = arith.cmpi ne, %1, %c0_i32_0 : i32
    scf.if %2 {
      %cst = arith.constant 0.000000e+00 : f32
      %11 = vector.broadcast %cst : f32 to vector<128x256xf32>
      %c0 = arith.constant 0 : index
      %c0_5 = arith.constant 0 : index
      %12 = vector.load %arg9[%c0, %c0_5] : memref<128x256xf32, #tpu.memory_space<vmem>>, vector<128x256xf32>
      tpu.vector_store %arg9[%c0, %c0_5], %11 {strides = array<i32>} : memref<128x256xf32, #tpu.memory_space<vmem>>, vector<128x256xf32>,
    } else {
    }
    %3 = arith.index_cast %arg0 : i32 to index
    %4 = memref.load %arg3[%3] : memref<9xi32, #tpu.memory_space<smem>>
    %c0_i32_1 = arith.constant 0 : i32
    %5 = arith.cmpi sgt, %4, %c0_i32_1 : i32
    %6 = arith.extui %5 : i1 to i32
    %c0_i32_2 = arith.constant 0 : i32
    %7 = arith.cmpi ne, %6, %c0_i32_2 : i32
    scf.if %7 {
      %c0 = arith.constant 0 : index
      %c0_5 = arith.constant 0 : index
      %11 = vector.load %arg4[%c0, %c0_5] : memref<128x256xbf16, #tpu.memory_space<vmem>>, vector<128x256xbf16>
      %c0_6 = arith.constant 0 : index
      %c0_7 = arith.constant 0 : index
      %c0_8 = arith.constant 0 : index
      %12 = vector.load %arg6[%c0_6, %c0_7, %c0_8] : memref<1x256x512xbf16, #tpu.memory_space<vmem>>, vector<1x256x512xbf16>
      %13 = vector.shape_cast %12 : vector<1x256x512xbf16> to vector<256x512xbf16>
      %cst = arith.constant dense<0.000000e+00> : vector<128x512xf32>
      %14 = tpu.matmul %11, %13, %cst {dimension_numbers = #tpu.dot_dimension_numbers<[1], [0], [0], [1], [0, 0, 1, 1], [], []>} : vector<128x256xbf16>, vector<256x512xbf16>, vector<128x512xf32> -> vector<128x512xf32>
      %15 = vector.extract_strided_slice %14 {offsets = [0, 0], sizes = [128, 256], strides = [1, 1]} : vector<128x512xf32> to vector<128x256xf32>
      %16 = vector.extract_strided_slice %14 {offsets = [0, 256], sizes = [128, 256], strides = [1, 1]} : vector<128x512xf32> to vector<128x256xf32>
      %17 = arith.negf %15 : vector<128x256xf32>
      %18 = math.exp %17 : vector<128x256xf32>
      %cst_9 = arith.constant 1.000000e+00 : f32
      %19 = vector.broadcast %cst_9 : f32 to vector<128x256xf32>
      %20 = arith.addf %19, %18 : vector<128x256xf32>
      %21 = arith.divf %19, %20 : vector<128x256xf32>
      %22 = arith.mulf %15, %21 : vector<128x256xf32>
      %23 = arith.mulf %22, %16 : vector<128x256xf32>
      %c0_10 = arith.constant 0 : index
      %c0_11 = arith.constant 0 : index
      %24 = vector.load %arg9[%c0_10, %c0_11] : memref<128x256xf32, #tpu.memory_space<vmem>>, vector<128x256xf32>
      %25 = arith.truncf %23 : vector<128x256xf32> to vector<128x256xbf16>
      %c0_12 = arith.constant 0 : index
      %c0_13 = arith.constant 0 : index
      %c0_14 = arith.constant 0 : index
      %26 = vector.load %arg7[%c0_12, %c0_13, %c0_14] : memref<1x256x256xbf16, #tpu.memory_space<vmem>>, vector<1x256x256xbf16>
      %27 = vector.shape_cast %26 : vector<1x256x256xbf16> to vector<256x256xbf16>
      %cst_15 = arith.constant dense<0.000000e+00> : vector<128x256xf32>
      %28 = tpu.matmul %25, %27, %cst_15 {dimension_numbers = #tpu.dot_dimension_numbers<[1], [0], [0], [1], [0, 0, 1, 1], [], []>} : vector<128x256xbf16>, vector<256x256xbf16>, vector<128x256xf32> -> vector<128x256xf32>
      %29 = arith.addf %24, %28 : vector<128x256xf32>
      %c0_16 = arith.constant 0 : index
      %c0_17 = arith.constant 0 : index
      %30 = vector.load %arg9[%c0_16, %c0_17] : memref<128x256xf32, #tpu.memory_space<vmem>>, vector<128x256xf32>
      tpu.vector_store %arg9[%c0_16, %c0_17], %29 {strides = array<i32>} : memref<128x256xf32, #tpu.memory_space<vmem>>, vector<128x256xf32>,
    } else {
    }
    %c0_i32_3 = arith.constant 0 : i32
    %8 = arith.cmpi eq, %arg1, %c0_i32_3 : i32
    %9 = arith.extui %8 : i1 to i32
    %c0_i32_4 = arith.constant 0 : i32
    %10 = arith.cmpi ne, %9, %c0_i32_4 : i32
    scf.if %10 {
      %c0 = arith.constant 0 : index
      %c0_5 = arith.constant 0 : index
      %11 = vector.load %arg9[%c0, %c0_5] : memref<128x256xf32, #tpu.memory_space<vmem>>, vector<128x256xf32>
      %c0_6 = arith.constant 0 : index
      %c0_7 = arith.constant 0 : index
      %12 = vector.load %arg5[%c0_6, %c0_7] : memref<128x1xf32, #tpu.memory_space<vmem>>, vector<128x1xf32>
      %13 = vector.broadcast %12 : vector<128x1xf32> to vector<128x256xf32>
      %14 = arith.mulf %11, %13 : vector<128x256xf32>
      %15 = arith.truncf %14 : vector<128x256xf32> to vector<128x256xbf16>
      %c0_8 = arith.constant 0 : index
      %c0_9 = arith.constant 0 : index
      %16 = vector.load %arg8[%c0_8, %c0_9] : memref<128x256xbf16, #tpu.memory_space<vmem>>, vector<128x256xbf16>
      tpu.vector_store %arg8[%c0_8, %c0_9], %15 {strides = array<i32>} : memref<128x256xbf16, #tpu.memory_space<vmem>>, vector<128x256xbf16>,
    } else {
    }
    return
  }
  func.func @transform_0(%arg0: i32, %arg1: i32, %arg2: memref<9xi32, #tpu.memory_space<smem>>, %arg3: memref<9xi32, #tpu.memory_space<smem>>) -> (i32, i32) {
    %c0_i32 = arith.constant 0 : i32
    %c0_i32_0 = arith.constant 0 : i32
    return %arg0, %c0_i32 : i32, i32
  }
  func.func @transform_1(%arg0: i32, %arg1: i32, %arg2: memref<9xi32, #tpu.memory_space<smem>>, %arg3: memref<9xi32, #tpu.memory_space<smem>>) -> (i32, i32) {
    %c0_i32 = arith.constant 0 : i32
    %c0_i32_0 = arith.constant 0 : i32
    return %arg0, %c0_i32 : i32, i32
  }
  func.func @transform_2(%arg0: i32, %arg1: i32, %arg2: memref<9xi32, #tpu.memory_space<smem>>, %arg3: memref<9xi32, #tpu.memory_space<smem>>) -> (i32, i32, i32) {
    %0 = arith.index_cast %arg0 : i32 to index
    %1 = memref.load %arg2[%0] : memref<9xi32, #tpu.memory_space<smem>>
    %c0_i32 = arith.constant 0 : i32
    %c0_i32_0 = arith.constant 0 : i32
    return %1, %c0_i32, %arg1 : i32, i32, i32
  }
  func.func @transform_3(%arg0: i32, %arg1: i32, %arg2: memref<9xi32, #tpu.memory_space<smem>>, %arg3: memref<9xi32, #tpu.memory_space<smem>>) -> (i32, i32, i32) {
    %0 = arith.index_cast %arg0 : i32 to index
    %1 = memref.load %arg2[%0] : memref<9xi32, #tpu.memory_space<smem>>
    %c0_i32 = arith.constant 0 : i32
    %c0_i32_0 = arith.constant 0 : i32
    return %1, %arg1, %c0_i32 : i32, i32, i32
  }
  func.func @transform_4(%arg0: i32, %arg1: i32, %arg2: memref<9xi32, #tpu.memory_space<smem>>, %arg3: memref<9xi32, #tpu.memory_space<smem>>) -> (i32, i32) {
    %c0_i32 = arith.constant 0 : i32
    %c0_i32_0 = arith.constant 0 : i32
    return %arg0, %c0_i32 : i32, i32
  }
}

module attributes {stable_mosaic.version = 11 : i64} {
  func.func @_shared_ffn_kernel(%arg0: i32, %arg1: i32, %arg2: memref<16x256xbf16, #tpu.memory_space<vmem>>, %arg3: memref<16x256xf32, #tpu.memory_space<vmem>>, %arg4: memref<256x1024xbf16, #tpu.memory_space<vmem>>, %arg5: memref<512x256xbf16, #tpu.memory_space<vmem>>, %arg6: memref<16x256xf32, #tpu.memory_space<vmem>>) attributes {dimension_semantics = [#tpu.dimension_semantics<parallel>, #tpu.dimension_semantics<arbitrary>], iteration_bounds = array<i64: 1, 1>, scalar_prefetch = 0 : i64, scratch_operands = 0 : i64, tpu.core_type = #tpu.core_type<tc>, window_params = [{transform_indices = @transform_0, window_bounds = array<i64: 16, 256>}, {transform_indices = @transform_1, window_bounds = array<i64: 16, 256>}, {transform_indices = @transform_2, window_bounds = array<i64: 256, 1024>}, {transform_indices = @transform_3, window_bounds = array<i64: 512, 256>}, {transform_indices = @transform_4, window_bounds = array<i64: 16, 256>}]} {
    %c0_i32 = arith.constant 0 : i32
    %0 = arith.cmpi eq, %arg1, %c0_i32 : i32
    %1 = arith.extui %0 : i1 to i32
    %c0_i32_0 = arith.constant 0 : i32
    %2 = arith.cmpi ne, %1, %c0_i32_0 : i32
    scf.if %2 {
      %c0_12 = arith.constant 0 : index
      %c0_13 = arith.constant 0 : index
      %21 = vector.load %arg3[%c0_12, %c0_13] : memref<16x256xf32, #tpu.memory_space<vmem>>, vector<16x256xf32>
      %c0_14 = arith.constant 0 : index
      %c0_15 = arith.constant 0 : index
      %22 = vector.load %arg6[%c0_14, %c0_15] : memref<16x256xf32, #tpu.memory_space<vmem>>, vector<16x256xf32>
      tpu.vector_store %arg6[%c0_14, %c0_15], %21 {strides = array<i32>} : memref<16x256xf32, #tpu.memory_space<vmem>>, vector<16x256xf32>,
    } else {
    }
    %c0 = arith.constant 0 : index
    %c0_1 = arith.constant 0 : index
    %3 = vector.load %arg2[%c0, %c0_1] : memref<16x256xbf16, #tpu.memory_space<vmem>>, vector<16x256xbf16>
    %c0_2 = arith.constant 0 : index
    %c0_3 = arith.constant 0 : index
    %4 = vector.load %arg4[%c0_2, %c0_3] : memref<256x1024xbf16, #tpu.memory_space<vmem>>, vector<256x1024xbf16>
    %cst = arith.constant dense<0.000000e+00> : vector<16x1024xf32>
    %5 = tpu.matmul %3, %4, %cst {dimension_numbers = #tpu.dot_dimension_numbers<[1], [0], [0], [1], [0, 0, 1, 1], [], []>} : vector<16x256xbf16>, vector<256x1024xbf16>, vector<16x1024xf32> -> vector<16x1024xf32>
    %6 = vector.extract_strided_slice %5 {offsets = [0, 0], sizes = [16, 512], strides = [1, 1]} : vector<16x1024xf32> to vector<16x512xf32>
    %7 = vector.extract_strided_slice %5 {offsets = [0, 512], sizes = [16, 512], strides = [1, 1]} : vector<16x1024xf32> to vector<16x512xf32>
    %8 = arith.negf %6 : vector<16x512xf32>
    %9 = math.exp %8 : vector<16x512xf32>
    %cst_4 = arith.constant 1.000000e+00 : f32
    %10 = vector.broadcast %cst_4 : f32 to vector<16x512xf32>
    %11 = arith.addf %10, %9 : vector<16x512xf32>
    %12 = arith.divf %10, %11 : vector<16x512xf32>
    %13 = arith.mulf %6, %12 : vector<16x512xf32>
    %14 = arith.mulf %13, %7 : vector<16x512xf32>
    %c0_5 = arith.constant 0 : index
    %c0_6 = arith.constant 0 : index
    %15 = vector.load %arg6[%c0_5, %c0_6] : memref<16x256xf32, #tpu.memory_space<vmem>>, vector<16x256xf32>
    %16 = arith.truncf %14 : vector<16x512xf32> to vector<16x512xbf16>
    %c0_7 = arith.constant 0 : index
    %c0_8 = arith.constant 0 : index
    %17 = vector.load %arg5[%c0_7, %c0_8] : memref<512x256xbf16, #tpu.memory_space<vmem>>, vector<512x256xbf16>
    %cst_9 = arith.constant dense<0.000000e+00> : vector<16x256xf32>
    %18 = tpu.matmul %16, %17, %cst_9 {dimension_numbers = #tpu.dot_dimension_numbers<[1], [0], [0], [1], [0, 0, 1, 1], [], []>} : vector<16x512xbf16>, vector<512x256xbf16>, vector<16x256xf32> -> vector<16x256xf32>
    %19 = arith.addf %15, %18 : vector<16x256xf32>
    %c0_10 = arith.constant 0 : index
    %c0_11 = arith.constant 0 : index
    %20 = vector.load %arg6[%c0_10, %c0_11] : memref<16x256xf32, #tpu.memory_space<vmem>>, vector<16x256xf32>
    tpu.vector_store %arg6[%c0_10, %c0_11], %19 {strides = array<i32>} : memref<16x256xf32, #tpu.memory_space<vmem>>, vector<16x256xf32>,
    return
  }
  func.func @transform_0(%arg0: i32, %arg1: i32) -> (i32, i32) {
    %c0_i32 = arith.constant 0 : i32
    %c0_i32_0 = arith.constant 0 : i32
    return %arg0, %c0_i32 : i32, i32
  }
  func.func @transform_1(%arg0: i32, %arg1: i32) -> (i32, i32) {
    %c0_i32 = arith.constant 0 : i32
    %c0_i32_0 = arith.constant 0 : i32
    return %arg0, %c0_i32 : i32, i32
  }
  func.func @transform_2(%arg0: i32, %arg1: i32) -> (i32, i32) {
    %c0_i32 = arith.constant 0 : i32
    %c0_i32_0 = arith.constant 0 : i32
    return %c0_i32, %arg1 : i32, i32
  }
  func.func @transform_3(%arg0: i32, %arg1: i32) -> (i32, i32) {
    %c0_i32 = arith.constant 0 : i32
    %c0_i32_0 = arith.constant 0 : i32
    return %arg1, %c0_i32 : i32, i32
  }
  func.func @transform_4(%arg0: i32, %arg1: i32) -> (i32, i32) {
    %c0_i32 = arith.constant 0 : i32
    %c0_i32_0 = arith.constant 0 : i32
    return %arg0, %c0_i32 : i32, i32
  }
}

</mosaic_0001>

<llo_original>
// kernel: custom-call
$region0: #{custom-call}
  %s0 = inlined_call_operand.vmem [shape: u32[9], index: 0, kind: output, shape index: {}]

// kernel: moe_forward.3
$region0: #{moe_forward.3}
  #allocation0 [shape = 'u32[]', space=smem, size = 0x4, offset = 0x4, fixed_abs, tag = 'smem constant byte address 0x4 - core index']
  #allocation1 [shape = 'u32[72,128]{1,0:T(1,128)}', space=vmem, size = 0x9000, scoped, tag = 'internal scratch']
  %s0 = inlined_call_operand.vmem [shape: bf16[16,256], index: 0, kind: input, shape index: {}]
  %s1 = inlined_call_operand.vmem [shape: f32[16,256], index: 1, kind: input, shape index: {}]
  %s2 = inlined_call_operand.vmem [shape: bf16[256,1024], index: 2, kind: input, shape index: {}]
  %s3 = inlined_call_operand.vmem [shape: bf16[512,256], index: 3, kind: input, shape index: {}]
  %s4 = inlined_call_operand.hbm [shape: f32[16,256], index: 4, kind: output, shape index: {}]
  %s5 = sld [smem:[#allocation0]]
  $region30: #{moe_forward.3} parent=0
    _
  %s7 = ssub.s32 1, %s5
  %s8 = scalar_select 0, %s7, %s5
  $region1: #{moe_forward.3} parent=0
    #allocation2 [shape = 'u8[16384]{0}', space=vmem, size = 0x4000, scoped, tag = 'output window, operand 0, single buffered']
    #allocation3 [shape = 's32[1]{0}', space=sflag, size = 0x4, scoped, tag = 'scoped memory for moe_forward.3']
    %9 = vsyncpa [#allocation3], 0
    // Predicated region
    $region2: #{moe_forward.3} parent=1 // pred_check
      _
    $region3: #{moe_forward.3} parent=1 // pred_check_branch
      %11 = sbr.rel (0) target = $region5
    $region4: #{moe_forward.3} parent=1 // pred_region
      _
    $region5: #{moe_forward.3} parent=1 // pred_fallthru
      _
    // Predicated region
    $region6: #{moe_forward.3} parent=1 // pred_check
      _
    $region7: #{moe_forward.3} parent=1 // pred_check_branch
      %13 = sbr.rel (0) target = $region9
    $region8: #{moe_forward.3} parent=1 // pred_region
      _
    $region9: #{moe_forward.3} parent=1 // pred_fallthru
      _
    // Predicated region
    $region10: #{moe_forward.3} parent=1 // pred_check
      _
    $region11: #{moe_forward.3} parent=1 // pred_check_branch
      %15 = sbr.rel (0) target = $region13
    $region12: #{moe_forward.3} parent=1 // pred_region
      _
    $region13: #{moe_forward.3} parent=1 // pred_fallthru
      _
    // Predicated region
    $region14: #{moe_forward.3} parent=1 // pred_check
      _
    $region15: #{moe_forward.3} parent=1 // pred_check_branch
      %17 = sbr.rel (0) target = $region17
    $region16: #{moe_forward.3} parent=1 // pred_region
      _
    $region17: #{moe_forward.3} parent=1 // pred_fallthru
      _
    %p18 = scmp.eq.s32.totalorder 0, 0
    // Predicated region
    $region18: #{moe_forward.3} parent=1 // pred_check
      %p19 = pneg %p18
    $region19: #{moe_forward.3} parent=1 // pred_check_branch
      %21 = sbr.rel (%p19) target = $region21
    $region20: #{moe_forward.3} parent=1 // pred_region
      %v22 = vld [vmem:[%s1] sm:$0xff]
      %v23 = vld [vmem:[%s1 + $0x8] sm:$0xff]
      %v24 = vld [vmem:[%s1 + $0x10] sm:$0xff]
      %v25 = vld [vmem:[%s1 + $0x18] sm:$0xff]
      %26 = vst [vmem:[#allocation2] sm:$0xff] %v22
      %27 = vst [vmem:[#allocation2 + $0x8] sm:$0xff] %v23
      %28 = vst [vmem:[#allocation2 + $0x10] sm:$0xff] %v24
      %29 = vst [vmem:[#allocation2 + $0x18] sm:$0xff] %v25
    $region21: #{moe_forward.3} parent=1 // pred_fallthru
      _
    %v30 = vld [vmem:[%s0] sm:$0xff]
    %v31 = vld [vmem:[%s0 + $0x8] sm:$0xff]
    %v32 = vld [vmem:[%s2] sm:$0xff]
    %v33 = vld [vmem:[%s2 + $0x8] sm:$0xff]
    %v34 = vld [vmem:[%s2 + $0x10] sm:$0xff]
    %v35 = vld [vmem:[%s2 + $0x18] sm:$0xff]
    %v36 = vld [vmem:[%s2 + $0x20] sm:$0xff]
    %v37 = vld [vmem:[%s2 + $0x28] sm:$0xff]
    %v38 = vld [vmem:[%s2 + $0x30] sm:$0xff]
    %v39 = vld [vmem:[%s2 + $0x38] sm:$0xff]
    %v40 = vld [vmem:[%s2 + $0x40] sm:$0xff]
    %v41 = vld [vmem:[%s2 + $0x48] sm:$0xff]
    %v42 = vld [vmem:[%s2 + $0x50] sm:$0xff]
    %v43 = vld [vmem:[%s2 + $0x58] sm:$0xff]
    %v44 = vld [vmem:[%s2 + $0x60] sm:$0xff]
    %v45 = vld [vmem:[%s2 + $0x68] sm:$0xff]
    %v46 = vld [vmem:[%s2 + $0x70] sm:$0xff]
    %v47 = vld [vmem:[%s2 + $0x78] sm:$0xff]
    %v48 = vld [vmem:[%s2 + $0x80] sm:$0xff]
    %v49 = vld [vmem:[%s2 + $0x88] sm:$0xff]
    %v50 = vld [vmem:[%s2 + $0x90] sm:$0xff]
    %v51 = vld [vmem:[%s2 + $0x98] sm:$0xff]
    %v52 = vld [vmem:[%s2 + $0xa0] sm:$0xff]
    %v53 = vld [vmem:[%s2 + $0xa8] sm:$0xff]
    %v54 = vld [vmem:[%s2 + $0xb0] sm:$0xff]
    %v55 = vld [vmem:[%s2 + $0xb8] sm:$0xff]
    %v56 = vld [vmem:[%s2 + $0xc0] sm:$0xff]
    %v57 = vld [vmem:[%s2 + $0xc8] sm:$0xff]
    %v58 = vld [vmem:[%s2 + $0xd0] sm:$0xff]
    %v59 = vld [vmem:[%s2 + $0xd8] sm:$0xff]
    %v60 = vld [vmem:[%s2 + $0xe0] sm:$0xff]
    %v61 = vld [vmem:[%s2 + $0xe8] sm:$0xff]
    %v62 = vld [vmem:[%s2 + $0xf0] sm:$0xff]
    %v63 = vld [vmem:[%s2 + $0xf8] sm:$0xff]
    %v64 = vld [vmem:[%s2 + $0x100] sm:$0xff]
    %v65 = vld [vmem:[%s2 + $0x108] sm:$0xff]
    %v66 = vld [vmem:[%s2 + $0x110] sm:$0xff]
    %v67 = vld [vmem:[%s2 + $0x118] sm:$0xff]
    %v68 = vld [vmem:[%s2 + $0x120] sm:$0xff]
    %v69 = vld [vmem:[%s2 + $0x128] sm:$0xff]
    %v70 = vld [vmem:[%s2 + $0x130] sm:$0xff]
    %v71 = vld [vmem:[%s2 + $0x138] sm:$0xff]
    %v72 = vld [vmem:[%s2 + $0x140] sm:$0xff]
    %v73 = vld [vmem:[%s2 + $0x148] sm:$0xff]
    %v74 = vld [vmem:[%s2 + $0x150] sm:$0xff]
    %v75 = vld [vmem:[%s2 + $0x158] sm:$0xff]
    %v76 = vld [vmem:[%s2 + $0x160] sm:$0xff]
    %v77 = vld [vmem:[%s2 + $0x168] sm:$0xff]
    %v78 = vld [vmem:[%s2 + $0x170] sm:$0xff]
    %v79 = vld [vmem:[%s2 + $0x178] sm:$0xff]
    %v80 = vld [vmem:[%s2 + $0x180] sm:$0xff]
    %v81 = vld [vmem:[%s2 + $0x188] sm:$0xff]
    %v82 = vld [vmem:[%s2 + $0x190] sm:$0xff]
    %v83 = vld [vmem:[%s2 + $0x198] sm:$0xff]
    %v84 = vld [vmem:[%s2 + $0x1a0] sm:$0xff]
    %v85 = vld [vmem:[%s2 + $0x1a8] sm:$0xff]
    %v86 = vld [vmem:[%s2 + $0x1b0] sm:$0xff]
    %v87 = vld [vmem:[%s2 + $0x1b8] sm:$0xff]
    %v88 = vld [vmem:[%s2 + $0x1c0] sm:$0xff]
    %v89 = vld [vmem:[%s2 + $0x1c8] sm:$0xff]
    %v90 = vld [vmem:[%s2 + $0x1d0] sm:$0xff]
    %v91 = vld [vmem:[%s2 + $0x1d8] sm:$0xff]
    %v92 = vld [vmem:[%s2 + $0x1e0] sm:$0xff]
    %v93 = vld [vmem:[%s2 + $0x1e8] sm:$0xff]
    %v94 = vld [vmem:[%s2 + $0x1f0] sm:$0xff]
    %v95 = vld [vmem:[%s2 + $0x1f8] sm:$0xff]
    %v96 = vld [vmem:[%s2 + $0x200] sm:$0xff]
    %v97 = vld [vmem:[%s2 + $0x208] sm:$0xff]
    %v98 = vld [vmem:[%s2 + $0x210] sm:$0xff]
    %v99 = vld [vmem:[%s2 + $0x218] sm:$0xff]
    %v100 = vld [vmem:[%s2 + $0x220] sm:$0xff]
    %v101 = vld [vmem:[%s2 + $0x228] sm:$0xff]
    %v102 = vld [vmem:[%s2 + $0x230] sm:$0xff]
    %v103 = vld [vmem:[%s2 + $0x238] sm:$0xff]
    %v104 = vld [vmem:[%s2 + $0x240] sm:$0xff]
    %v105 = vld [vmem:[%s2 + $0x248] sm:$0xff]
    %v106 = vld [vmem:[%s2 + $0x250] sm:$0xff]
    %v107 = vld [vmem:[%s2 + $0x258] sm:$0xff]
    %v108 = vld [vmem:[%s2 + $0x260] sm:$0xff]
    %v109 = vld [vmem:[%s2 + $0x268] sm:$0xff]
    %v110 = vld [vmem:[%s2 + $0x270] sm:$0xff]
    %v111 = vld [vmem:[%s2 + $0x278] sm:$0xff]
    %v112 = vld [vmem:[%s2 + $0x280] sm:$0xff]
    %v113 = vld [vmem:[%s2 + $0x288] sm:$0xff]
    %v114 = vld [vmem:[%s2 + $0x290] sm:$0xff]
    %v115 = vld [vmem:[%s2 + $0x298] sm:$0xff]
    %v116 = vld [vmem:[%s2 + $0x2a0] sm:$0xff]
    %v117 = vld [vmem:[%s2 + $0x2a8] sm:$0xff]
    %v118 = vld [vmem:[%s2 + $0x2b0] sm:$0xff]
    %v119 = vld [vmem:[%s2 + $0x2b8] sm:$0xff]
    %v120 = vld [vmem:[%s2 + $0x2c0] sm:$0xff]
    %v121 = vld [vmem:[%s2 + $0x2c8] sm:$0xff]
    %v122 = vld [vmem:[%s2 + $0x2d0] sm:$0xff]
    %v123 = vld [vmem:[%s2 + $0x2d8] sm:$0xff]
    %v124 = vld [vmem:[%s2 + $0x2e0] sm:$0xff]
    %v125 = vld [vmem:[%s2 + $0x2e8] sm:$0xff]
    %v126 = vld [vmem:[%s2 + $0x2f0] sm:$0xff]
    %v127 = vld [vmem:[%s2 + $0x2f8] sm:$0xff]
    %v128 = vld [vmem:[%s2 + $0x300] sm:$0xff]
    %v129 = vld [vmem:[%s2 + $0x308] sm:$0xff]
    %v130 = vld [vmem:[%s2 + $0x310] sm:$0xff]
    %v131 = vld [vmem:[%s2 + $0x318] sm:$0xff]
    %v132 = vld [vmem:[%s2 + $0x320] sm:$0xff]
    %v133 = vld [vmem:[%s2 + $0x328] sm:$0xff]
    %v134 = vld [vmem:[%s2 + $0x330] sm:$0xff]
    %v135 = vld [vmem:[%s2 + $0x338] sm:$0xff]
    %v136 = vld [vmem:[%s2 + $0x340] sm:$0xff]
    %v137 = vld [vmem:[%s2 + $0x348] sm:$0xff]
    %v138 = vld [vmem:[%s2 + $0x350] sm:$0xff]
    %v139 = vld [vmem:[%s2 + $0x358] sm:$0xff]
    %v140 = vld [vmem:[%s2 + $0x360] sm:$0xff]
    %v141 = vld [vmem:[%s2 + $0x368] sm:$0xff]
    %v142 = vld [vmem:[%s2 + $0x370] sm:$0xff]
    %v143 = vld [vmem:[%s2 + $0x378] sm:$0xff]
    %v144 = vld [vmem:[%s2 + $0x380] sm:$0xff]
    %v145 = vld [vmem:[%s2 + $0x388] sm:$0xff]
    %v146 = vld [vmem:[%s2 + $0x390] sm:$0xff]
    %v147 = vld [vmem:[%s2 + $0x398] sm:$0xff]
    %v148 = vld [vmem:[%s2 + $0x3a0] sm:$0xff]
    %v149 = vld [vmem:[%s2 + $0x3a8] sm:$0xff]
    %v150 = vld [vmem:[%s2 + $0x3b0] sm:$0xff]
    %v151 = vld [vmem:[%s2 + $0x3b8] sm:$0xff]
    %v152 = vld [vmem:[%s2 + $0x3c0] sm:$0xff]
    %v153 = vld [vmem:[%s2 + $0x3c8] sm:$0xff]
    %v154 = vld [vmem:[%s2 + $0x3d0] sm:$0xff]
    %v155 = vld [vmem:[%s2 + $0x3d8] sm:$0xff]
    %v156 = vld [vmem:[%s2 + $0x3e0] sm:$0xff]
    %v157 = vld [vmem:[%s2 + $0x3e8] sm:$0xff]
    %v158 = vld [vmem:[%s2 + $0x3f0] sm:$0xff]
    %v159 = vld [vmem:[%s2 + $0x3f8] sm:$0xff]
    %v162 = vunpack.c.l.b16 %v30
    %v163 = vunpack.c.h.b16 %v30
    %v164 = vunpack.c.l.b16 %v31
    %v165 = vunpack.c.h.b16 %v31
    %v166 = vpack.c.b16 %v164, %v162
    %v167 = vpack.c.b16 %v165, %v163
    %v298 = vunpack.c.l.b16 %v32
    %v299 = vunpack.c.h.b16 %v32
    %v300 = vunpack.c.l.b16 %v33
    %v301 = vunpack.c.h.b16 %v33
    %v302 = vunpack.c.l.b16 %v34
    %v303 = vunpack.c.h.b16 %v34
    %v304 = vunpack.c.l.b16 %v35
    %v305 = vunpack.c.h.b16 %v35
    %v306 = vunpack.c.l.b16 %v36
    %v307 = vunpack.c.h.b16 %v36
    %v308 = vunpack.c.l.b16 %v37
    %v309 = vunpack.c.h.b16 %v37
    %v310 = vunpack.c.l.b16 %v38
    %v311 = vunpack.c.h.b16 %v38
    %v312 = vunpack.c.l.b16 %v39
    %v313 = vunpack.c.h.b16 %v39
    %v314 = vunpack.c.l.b16 %v40
    %v315 = vunpack.c.h.b16 %v40
    %v316 = vunpack.c.l.b16 %v41
    %v317 = vunpack.c.h.b16 %v41
    %v318 = vunpack.c.l.b16 %v42
    %v319 = vunpack.c.h.b16 %v42
    %v320 = vunpack.c.l.b16 %v43
    %v321 = vunpack.c.h.b16 %v43
    %v322 = vunpack.c.l.b16 %v44
    %v323 = vunpack.c.h.b16 %v44
    %v324 = vunpack.c.l.b16 %v45
    %v325 = vunpack.c.h.b16 %v45
    %v326 = vunpack.c.l.b16 %v46
    %v327 = vunpack.c.h.b16 %v46
    %v328 = vunpack.c.l.b16 %v47
    %v329 = vunpack.c.h.b16 %v47
    %v330 = vunpack.c.l.b16 %v48
    %v331 = vunpack.c.h.b16 %v48
    %v332 = vunpack.c.l.b16 %v49
    %v333 = vunpack.c.h.b16 %v49
    %v334 = vunpack.c.l.b16 %v50
    %v335 = vunpack.c.h.b16 %v50
    %v336 = vunpack.c.l.b16 %v51
    %v337 = vunpack.c.h.b16 %v51
    %v338 = vunpack.c.l.b16 %v52
    %v339 = vunpack.c.h.b16 %v52
    %v340 = vunpack.c.l.b16 %v53
    %v341 = vunpack.c.h.b16 %v53
    %v342 = vunpack.c.l.b16 %v54
    %v343 = vunpack.c.h.b16 %v54
    %v344 = vunpack.c.l.b16 %v55
    %v345 = vunpack.c.h.b16 %v55
    %v346 = vunpack.c.l.b16 %v56
    %v347 = vunpack.c.h.b16 %v56
    %v348 = vunpack.c.l.b16 %v57
    %v349 = vunpack.c.h.b16 %v57
    %v350 = vunpack.c.l.b16 %v58
    %v351 = vunpack.c.h.b16 %v58
    %v352 = vunpack.c.l.b16 %v59
    %v353 = vunpack.c.h.b16 %v59
    %v354 = vunpack.c.l.b16 %v60
    %v355 = vunpack.c.h.b16 %v60
    %v356 = vunpack.c.l.b16 %v61
    %v357 = vunpack.c.h.b16 %v61
    %v358 = vunpack.c.l.b16 %v62
    %v359 = vunpack.c.h.b16 %v62
    %v360 = vunpack.c.l.b16 %v63
    %v361 = vunpack.c.h.b16 %v63
    %v362 = vunpack.c.l.b16 %v64
    %v363 = vunpack.c.h.b16 %v64
    %v364 = vunpack.c.l.b16 %v65
    %v365 = vunpack.c.h.b16 %v65
    %v366 = vunpack.c.l.b16 %v66
    %v367 = vunpack.c.h.b16 %v66
    %v368 = vunpack.c.l.b16 %v67
    %v369 = vunpack.c.h.b16 %v67
    %v370 = vunpack.c.l.b16 %v68
    %v371 = vunpack.c.h.b16 %v68
    %v372 = vunpack.c.l.b16 %v69
    %v373 = vunpack.c.h.b16 %v69
    %v374 = vunpack.c.l.b16 %v70
    %v375 = vunpack.c.h.b16 %v70
    %v376 = vunpack.c.l.b16 %v71
    %v377 = vunpack.c.h.b16 %v71
    %v378 = vunpack.c.l.b16 %v72
    %v379 = vunpack.c.h.b16 %v72
    %v380 = vunpack.c.l.b16 %v73
    %v381 = vunpack.c.h.b16 %v73
    %v382 = vunpack.c.l.b16 %v74
    %v383 = vunpack.c.h.b16 %v74
    %v384 = vunpack.c.l.b16 %v75
    %v385 = vunpack.c.h.b16 %v75
    %v386 = vunpack.c.l.b16 %v76
    %v387 = vunpack.c.h.b16 %v76
    %v388 = vunpack.c.l.b16 %v77
    %v389 = vunpack.c.h.b16 %v77
    %v390 = vunpack.c.l.b16 %v78
    %v391 = vunpack.c.h.b16 %v78
    %v392 = vunpack.c.l.b16 %v79
    %v393 = vunpack.c.h.b16 %v79
    %v394 = vunpack.c.l.b16 %v80
    %v395 = vunpack.c.h.b16 %v80
    %v396 = vunpack.c.l.b16 %v81
    %v397 = vunpack.c.h.b16 %v81
    %v398 = vunpack.c.l.b16 %v82
    %v399 = vunpack.c.h.b16 %v82
    %v400 = vunpack.c.l.b16 %v83
    %v401 = vunpack.c.h.b16 %v83
    %v402 = vunpack.c.l.b16 %v84
    %v403 = vunpack.c.h.b16 %v84
    %v404 = vunpack.c.l.b16 %v85
    %v405 = vunpack.c.h.b16 %v85
    %v406 = vunpack.c.l.b16 %v86
    %v407 = vunpack.c.h.b16 %v86
    %v408 = vunpack.c.l.b16 %v87
    %v409 = vunpack.c.h.b16 %v87
    %v410 = vunpack.c.l.b16 %v88
    %v411 = vunpack.c.h.b16 %v88
    %v412 = vunpack.c.l.b16 %v89
    %v413 = vunpack.c.h.b16 %v89
    %v414 = vunpack.c.l.b16 %v90
    %v415 = vunpack.c.h.b16 %v90
    %v416 = vunpack.c.l.b16 %v91
    %v417 = vunpack.c.h.b16 %v91
    %v418 = vunpack.c.l.b16 %v92
    %v419 = vunpack.c.h.b16 %v92
    %v420 = vunpack.c.l.b16 %v93
    %v421 = vunpack.c.h.b16 %v93
    %v422 = vunpack.c.l.b16 %v94
    %v423 = vunpack.c.h.b16 %v94
    %v424 = vunpack.c.l.b16 %v95
    %v425 = vunpack.c.h.b16 %v95
    %v426 = vunpack.c.l.b16 %v96
    %v427 = vunpack.c.h.b16 %v96
    %v428 = vunpack.c.l.b16 %v97
    %v429 = vunpack.c.h.b16 %v97
    %v430 = vunpack.c.l.b16 %v98
    %v431 = vunpack.c.h.b16 %v98
    %v432 = vunpack.c.l.b16 %v99
    %v433 = vunpack.c.h.b16 %v99
    %v434 = vunpack.c.l.b16 %v100
    %v435 = vunpack.c.h.b16 %v100
    %v436 = vunpack.c.l.b16 %v101
    %v437 = vunpack.c.h.b16 %v101
    %v438 = vunpack.c.l.b16 %v102
    %v439 = vunpack.c.h.b16 %v102
    %v440 = vunpack.c.l.b16 %v103
    %v441 = vunpack.c.h.b16 %v103
    %v442 = vunpack.c.l.b16 %v104
    %v443 = vunpack.c.h.b16 %v104
    %v444 = vunpack.c.l.b16 %v105
    %v445 = vunpack.c.h.b16 %v105
    %v446 = vunpack.c.l.b16 %v106
    %v447 = vunpack.c.h.b16 %v106
    %v448 = vunpack.c.l.b16 %v107
    %v449 = vunpack.c.h.b16 %v107
    %v450 = vunpack.c.l.b16 %v108
    %v451 = vunpack.c.h.b16 %v108
    %v452 = vunpack.c.l.b16 %v109
    %v453 = vunpack.c.h.b16 %v109
    %v454 = vunpack.c.l.b16 %v110
    %v455 = vunpack.c.h.b16 %v110
    %v456 = vunpack.c.l.b16 %v111
    %v457 = vunpack.c.h.b16 %v111
    %v458 = vunpack.c.l.b16 %v112
    %v459 = vunpack.c.h.b16 %v112
    %v460 = vunpack.c.l.b16 %v113
    %v461 = vunpack.c.h.b16 %v113
    %v462 = vunpack.c.l.b16 %v114
    %v463 = vunpack.c.h.b16 %v114
    %v464 = vunpack.c.l.b16 %v115
    %v465 = vunpack.c.h.b16 %v115
    %v466 = vunpack.c.l.b16 %v116
    %v467 = vunpack.c.h.b16 %v116
    %v468 = vunpack.c.l.b16 %v117
    %v469 = vunpack.c.h.b16 %v117
    %v470 = vunpack.c.l.b16 %v118
    %v471 = vunpack.c.h.b16 %v118
    %v472 = vunpack.c.l.b16 %v119
    %v473 = vunpack.c.h.b16 %v119
    %v474 = vunpack.c.l.b16 %v120
    %v475 = vunpack.c.h.b16 %v120
    %v476 = vunpack.c.l.b16 %v121
    %v477 = vunpack.c.h.b16 %v121
    %v478 = vunpack.c.l.b16 %v122
    %v479 = vunpack.c.h.b16 %v122
    %v480 = vunpack.c.l.b16 %v123
    %v481 = vunpack.c.h.b16 %v123
    %v482 = vunpack.c.l.b16 %v124
    %v483 = vunpack.c.h.b16 %v124
    %v484 = vunpack.c.l.b16 %v125
    %v485 = vunpack.c.h.b16 %v125
    %v486 = vunpack.c.l.b16 %v126
    %v487 = vunpack.c.h.b16 %v126
    %v488 = vunpack.c.l.b16 %v127
    %v489 = vunpack.c.h.b16 %v127
    %v490 = vunpack.c.l.b16 %v128
    %v491 = vunpack.c.h.b16 %v128
    %v492 = vunpack.c.l.b16 %v129
    %v493 = vunpack.c.h.b16 %v129
    %v494 = vunpack.c.l.b16 %v130
    %v495 = vunpack.c.h.b16 %v130
    %v496 = vunpack.c.l.b16 %v131
    %v497 = vunpack.c.h.b16 %v131
    %v498 = vunpack.c.l.b16 %v132
    %v499 = vunpack.c.h.b16 %v132
    %v500 = vunpack.c.l.b16 %v133
    %v501 = vunpack.c.h.b16 %v133
    %v502 = vunpack.c.l.b16 %v134
    %v503 = vunpack.c.h.b16 %v134
    %v504 = vunpack.c.l.b16 %v135
    %v505 = vunpack.c.h.b16 %v135
    %v506 = vunpack.c.l.b16 %v136
    %v507 = vunpack.c.h.b16 %v136
    %v508 = vunpack.c.l.b16 %v137
    %v509 = vunpack.c.h.b16 %v137
    %v510 = vunpack.c.l.b16 %v138
    %v511 = vunpack.c.h.b16 %v138
    %v512 = vunpack.c.l.b16 %v139
    %v513 = vunpack.c.h.b16 %v139
    %v514 = vunpack.c.l.b16 %v140
    %v515 = vunpack.c.h.b16 %v140
    %v516 = vunpack.c.l.b16 %v141
    %v517 = vunpack.c.h.b16 %v141
    %v518 = vunpack.c.l.b16 %v142
    %v519 = vunpack.c.h.b16 %v142
    %v520 = vunpack.c.l.b16 %v143
    %v521 = vunpack.c.h.b16 %v143
    %v522 = vunpack.c.l.b16 %v144
    %v523 = vunpack.c.h.b16 %v144
    %v524 = vunpack.c.l.b16 %v145
    %v525 = vunpack.c.h.b16 %v145
    %v526 = vunpack.c.l.b16 %v146
    %v527 = vunpack.c.h.b16 %v146
    %v528 = vunpack.c.l.b16 %v147
    %v529 = vunpack.c.h.b16 %v147
    %v530 = vunpack.c.l.b16 %v148
    %v531 = vunpack.c.h.b16 %v148
    %v532 = vunpack.c.l.b16 %v149
    %v533 = vunpack.c.h.b16 %v149
    %v534 = vunpack.c.l.b16 %v150
    %v535 = vunpack.c.h.b16 %v150
    %v536 = vunpack.c.l.b16 %v151
    %v537 = vunpack.c.h.b16 %v151
    %v538 = vunpack.c.l.b16 %v152
    %v539 = vunpack.c.h.b16 %v152
    %v540 = vunpack.c.l.b16 %v153
    %v541 = vunpack.c.h.b16 %v153
    %v542 = vunpack.c.l.b16 %v154
    %v543 = vunpack.c.h.b16 %v154
    %v544 = vunpack.c.l.b16 %v155
    %v545 = vunpack.c.h.b16 %v155
    %v546 = vunpack.c.l.b16 %v156
    %v547 = vunpack.c.h.b16 %v156
    %v548 = vunpack.c.l.b16 %v157
    %v549 = vunpack.c.h.b16 %v157
    %v550 = vunpack.c.l.b16 %v158
    %v551 = vunpack.c.h.b16 %v158
    %v552 = vunpack.c.l.b16 %v159
    %v553 = vunpack.c.h.b16 %v159
    %v554 = vpack.c.b16 %v306, %v298
    %v555 = vpack.c.b16 %v307, %v299
    %v556 = vpack.c.b16 %v308, %v300
    %v557 = vpack.c.b16 %v309, %v301
    %v558 = vpack.c.b16 %v310, %v302
    %v559 = vpack.c.b16 %v311, %v303
    %v560 = vpack.c.b16 %v312, %v304
    %v561 = vpack.c.b16 %v313, %v305
    %v562 = vpack.c.b16 %v322, %v314
    %v563 = vpack.c.b16 %v323, %v315
    %v564 = vpack.c.b16 %v324, %v316
    %v565 = vpack.c.b16 %v325, %v317
    %v566 = vpack.c.b16 %v326, %v318
    %v567 = vpack.c.b16 %v327, %v319
    %v568 = vpack.c.b16 %v328, %v320
    %v569 = vpack.c.b16 %v329, %v321
    %v570 = vpack.c.b16 %v338, %v330
    %v571 = vpack.c.b16 %v339, %v331
    %v572 = vpack.c.b16 %v340, %v332
    %v573 = vpack.c.b16 %v341, %v333
    %v574 = vpack.c.b16 %v342, %v334
    %v575 = vpack.c.b16 %v343, %v335
    %v576 = vpack.c.b16 %v344, %v336
    %v577 = vpack.c.b16 %v345, %v337
    %v578 = vpack.c.b16 %v354, %v346
    %v579 = vpack.c.b16 %v355, %v347
    %v580 = vpack.c.b16 %v356, %v348
    %v581 = vpack.c.b16 %v357, %v349
    %v582 = vpack.c.b16 %v358, %v350
    %v583 = vpack.c.b16 %v359, %v351
    %v584 = vpack.c.b16 %v360, %v352
    %v585 = vpack.c.b16 %v361, %v353
    %v586 = vpack.c.b16 %v370, %v362
    %v587 = vpack.c.b16 %v371, %v363
    %v588 = vpack.c.b16 %v372, %v364
    %v589 = vpack.c.b16 %v373, %v365
    %v590 = vpack.c.b16 %v374, %v366
    %v591 = vpack.c.b16 %v375, %v367
    %v592 = vpack.c.b16 %v376, %v368
    %v593 = vpack.c.b16 %v377, %v369
    %v594 = vpack.c.b16 %v386, %v378
    %v595 = vpack.c.b16 %v387, %v379
    %v596 = vpack.c.b16 %v388, %v380
    %v597 = vpack.c.b16 %v389, %v381
    %v598 = vpack.c.b16 %v390, %v382
    %v599 = vpack.c.b16 %v391, %v383
    %v600 = vpack.c.b16 %v392, %v384
    %v601 = vpack.c.b16 %v393, %v385
    %v602 = vpack.c.b16 %v402, %v394
    %v603 = vpack.c.b16 %v403, %v395
    %v604 = vpack.c.b16 %v404, %v396
    %v605 = vpack.c.b16 %v405, %v397
    %v606 = vpack.c.b16 %v406, %v398
    %v607 = vpack.c.b16 %v407, %v399
    %v608 = vpack.c.b16 %v408, %v400
    %v609 = vpack.c.b16 %v409, %v401
    %v610 = vpack.c.b16 %v418, %v410
    %v611 = vpack.c.b16 %v419, %v411
    %v612 = vpack.c.b16 %v420, %v412
    %v613 = vpack.c.b16 %v421, %v413
    %v614 = vpack.c.b16 %v422, %v414
    %v615 = vpack.c.b16 %v423, %v415
    %v616 = vpack.c.b16 %v424, %v416
    %v617 = vpack.c.b16 %v425, %v417
    %v618 = vpack.c.b16 %v434, %v426
    %v619 = vpack.c.b16 %v435, %v427
    %v620 = vpack.c.b16 %v436, %v428
    %v621 = vpack.c.b16 %v437, %v429
    %v622 = vpack.c.b16 %v438, %v430
    %v623 = vpack.c.b16 %v439, %v431
    %v624 = vpack.c.b16 %v440, %v432
    %v625 = vpack.c.b16 %v441, %v433
    %v626 = vpack.c.b16 %v450, %v442
    %v627 = vpack.c.b16 %v451, %v443
    %v628 = vpack.c.b16 %v452, %v444
    %v629 = vpack.c.b16 %v453, %v445
    %v630 = vpack.c.b16 %v454, %v446
    %v631 = vpack.c.b16 %v455, %v447
    %v632 = vpack.c.b16 %v456, %v448
    %v633 = vpack.c.b16 %v457, %v449
    %v634 = vpack.c.b16 %v466, %v458
    %v635 = vpack.c.b16 %v467, %v459
    %v636 = vpack.c.b16 %v468, %v460
    %v637 = vpack.c.b16 %v469, %v461
    %v638 = vpack.c.b16 %v470, %v462
    %v639 = vpack.c.b16 %v471, %v463
    %v640 = vpack.c.b16 %v472, %v464
    %v641 = vpack.c.b16 %v473, %v465
    %v642 = vpack.c.b16 %v482, %v474
    %v643 = vpack.c.b16 %v483, %v475
    %v644 = vpack.c.b16 %v484, %v476
    %v645 = vpack.c.b16 %v485, %v477
    %v646 = vpack.c.b16 %v486, %v478
    %v647 = vpack.c.b16 %v487, %v479
    %v648 = vpack.c.b16 %v488, %v480
    %v649 = vpack.c.b16 %v489, %v481
    %v650 = vpack.c.b16 %v498, %v490
    %v651 = vpack.c.b16 %v499, %v491
    %v652 = vpack.c.b16 %v500, %v492
    %v653 = vpack.c.b16 %v501, %v493
    %v654 = vpack.c.b16 %v502, %v494
    %v655 = vpack.c.b16 %v503, %v495
    %v656 = vpack.c.b16 %v504, %v496
    %v657 = vpack.c.b16 %v505, %v497
    %v658 = vpack.c.b16 %v514, %v506
    %v659 = vpack.c.b16 %v515, %v507
    %v660 = vpack.c.b16 %v516, %v508
    %v661 = vpack.c.b16 %v517, %v509
    %v662 = vpack.c.b16 %v518, %v510
    %v663 = vpack.c.b16 %v519, %v511
    %v664 = vpack.c.b16 %v520, %v512
    %v665 = vpack.c.b16 %v521, %v513
    %v666 = vpack.c.b16 %v530, %v522
    %v667 = vpack.c.b16 %v531, %v523
    %v668 = vpack.c.b16 %v532, %v524
    %v669 = vpack.c.b16 %v533, %v525
    %v670 = vpack.c.b16 %v534, %v526
    %v671 = vpack.c.b16 %v535, %v527
    %v672 = vpack.c.b16 %v536, %v528
    %v673 = vpack.c.b16 %v537, %v529
    %v674 = vpack.c.b16 %v546, %v538
    %v675 = vpack.c.b16 %v547, %v539
    %v676 = vpack.c.b16 %v548, %v540
    %v677 = vpack.c.b16 %v549, %v541
    %v678 = vpack.c.b16 %v550, %v542
    %v679 = vpack.c.b16 %v551, %v543
    %v680 = vpack.c.b16 %v552, %v544
    %v681 = vpack.c.b16 %v553, %v545
    %810 = vmatpush.bf16.msra.mxu0 %v610
    %811 = vmatpush.bf16.msra.mxu0 %v602
    %812 = vmatpush.bf16.msra.mxu0 %v594
    %813 = vmatpush.bf16.msra.mxu0 %v586
    %814 = vmatpush.bf16.msra.mxu0 %v578
    %815 = vmatpush.bf16.msra.mxu0 %v570
    %816 = vmatpush.bf16.msra.mxu0 %v562
    %817 = vmatpush.bf16.msra.mxu0 %v554
    %818 = vmatmul.bf16.gmra.mxu0 %v166
    %v819 = vpop.f32.mrf.mxu0
    %v820 = vadd.f32 0.0, %v819
    %v821 = vpop.f32.mrf.mxu0
    %v822 = vadd.f32 0.0, %v821
    %823 = vdwg.mxu0
    %824 = vmatpush.bf16.msra.mxu0 %v674
    %825 = vmatpush.bf16.msra.mxu0 %v666
    %826 = vmatpush.bf16.msra.mxu0 %v658
    %827 = vmatpush.bf16.msra.mxu0 %v650
    %828 = vmatpush.bf16.msra.mxu0 %v642
    %829 = vmatpush.bf16.msra.mxu0 %v634
    %830 = vmatpush.bf16.msra.mxu0 %v626
    %831 = vmatpush.bf16.msra.mxu0 %v618
    %832 = vmatmul.bf16.gmra.mxu0 %v167
    %v833 = vpop.f32.mrf.mxu0
    %v834 = vadd.f32 %v820, %v833
    %v835 = vpop.f32.mrf.mxu0
    %v836 = vadd.f32 %v822, %v835
    %837 = vdwg.mxu0
    %838 = vmatpush.bf16.msra.mxu0 %v611
    %839 = vmatpush.bf16.msra.mxu0 %v603
    %840 = vmatpush.bf16.msra.mxu0 %v595
    %841 = vmatpush.bf16.msra.mxu0 %v587
    %842 = vmatpush.bf16.msra.mxu0 %v579
    %843 = vmatpush.bf16.msra.mxu0 %v571
    %844 = vmatpush.bf16.msra.mxu0 %v563
    %845 = vmatpush.bf16.msra.mxu0 %v555
    %846 = vmatmul.bf16.gmra.mxu0 %v166
    %v847 = vpop.f32.mrf.mxu0
    %v848 = vadd.f32 0.0, %v847
    %v849 = vpop.f32.mrf.mxu0
    %v850 = vadd.f32 0.0, %v849
    %851 = vdwg.mxu0
    %852 = vmatpush.bf16.msra.mxu0 %v675
    %853 = vmatpush.bf16.msra.mxu0 %v667
    %854 = vmatpush.bf16.msra.mxu0 %v659
    %855 = vmatpush.bf16.msra.mxu0 %v651
    %856 = vmatpush.bf16.msra.mxu0 %v643
    %857 = vmatpush.bf16.msra.mxu0 %v635
    %858 = vmatpush.bf16.msra.mxu0 %v627
    %859 = vmatpush.bf16.msra.mxu0 %v619
    %860 = vmatmul.bf16.gmra.mxu0 %v167
    %v861 = vpop.f32.mrf.mxu0
    %v862 = vadd.f32 %v848, %v861
    %v863 = vpop.f32.mrf.mxu0
    %v864 = vadd.f32 %v850, %v863
    %865 = vdwg.mxu0
    %866 = vmatpush.bf16.msra.mxu0 %v612
    %867 = vmatpush.bf16.msra.mxu0 %v604
    %868 = vmatpush.bf16.msra.mxu0 %v596
    %869 = vmatpush.bf16.msra.mxu0 %v588
    %870 = vmatpush.bf16.msra.mxu0 %v580
    %871 = vmatpush.bf16.msra.mxu0 %v572
    %872 = vmatpush.bf16.msra.mxu0 %v564
    %873 = vmatpush.bf16.msra.mxu0 %v556
    %874 = vmatmul.bf16.gmra.mxu0 %v166
    %v875 = vpop.f32.mrf.mxu0
    %v876 = vadd.f32 0.0, %v875
    %v877 = vpop.f32.mrf.mxu0
    %v878 = vadd.f32 0.0, %v877
    %879 = vdwg.mxu0
    %880 = vmatpush.bf16.msra.mxu0 %v676
    %881 = vmatpush.bf16.msra.mxu0 %v668
    %882 = vmatpush.bf16.msra.mxu0 %v660
    %883 = vmatpush.bf16.msra.mxu0 %v652
    %884 = vmatpush.bf16.msra.mxu0 %v644
    %885 = vmatpush.bf16.msra.mxu0 %v636
    %886 = vmatpush.bf16.msra.mxu0 %v628
    %887 = vmatpush.bf16.msra.mxu0 %v620
    %888 = vmatmul.bf16.gmra.mxu0 %v167
    %v889 = vpop.f32.mrf.mxu0
    %v890 = vadd.f32 %v876, %v889
    %v891 = vpop.f32.mrf.mxu0
    %v892 = vadd.f32 %v878, %v891
    %893 = vdwg.mxu0
    %894 = vmatpush.bf16.msra.mxu0 %v613
    %895 = vmatpush.bf16.msra.mxu0 %v605
    %896 = vmatpush.bf16.msra.mxu0 %v597
    %897 = vmatpush.bf16.msra.mxu0 %v589
    %898 = vmatpush.bf16.msra.mxu0 %v581
    %899 = vmatpush.bf16.msra.mxu0 %v573
    %900 = vmatpush.bf16.msra.mxu0 %v565
    %901 = vmatpush.bf16.msra.mxu0 %v557
    %902 = vmatmul.bf16.gmra.mxu0 %v166
    %v903 = vpop.f32.mrf.mxu0
    %v904 = vadd.f32 0.0, %v903
    %v905 = vpop.f32.mrf.mxu0
    %v906 = vadd.f32 0.0, %v905
    %907 = vdwg.mxu0
    %908 = vmatpush.bf16.msra.mxu0 %v677
    %909 = vmatpush.bf16.msra.mxu0 %v669
    %910 = vmatpush.bf16.msra.mxu0 %v661
    %911 = vmatpush.bf16.msra.mxu0 %v653
    %912 = vmatpush.bf16.msra.mxu0 %v645
    %913 = vmatpush.bf16.msra.mxu0 %v637
    %914 = vmatpush.bf16.msra.mxu0 %v629
    %915 = vmatpush.bf16.msra.mxu0 %v621
    %916 = vmatmul.bf16.gmra.mxu0 %v167
    %v917 = vpop.f32.mrf.mxu0
    %v918 = vadd.f32 %v904, %v917
    %v919 = vpop.f32.mrf.mxu0
    %v920 = vadd.f32 %v906, %v919
    %921 = vdwg.mxu0
    %922 = vmatpush.bf16.msra.mxu0 %v614
    %923 = vmatpush.bf16.msra.mxu0 %v606
    %924 = vmatpush.bf16.msra.mxu0 %v598
    %925 = vmatpush.bf16.msra.mxu0 %v590
    %926 = vmatpush.bf16.msra.mxu0 %v582
    %927 = vmatpush.bf16.msra.mxu0 %v574
    %928 = vmatpush.bf16.msra.mxu0 %v566
    %929 = vmatpush.bf16.msra.mxu0 %v558
    %930 = vmatmul.bf16.gmra.mxu0 %v166
    %v931 = vpop.f32.mrf.mxu0
    %v932 = vadd.f32 0.0, %v931
    %v933 = vpop.f32.mrf.mxu0
    %v934 = vadd.f32 0.0, %v933
    %935 = vdwg.mxu0
    %936 = vmatpush.bf16.msra.mxu0 %v678
    %937 = vmatpush.bf16.msra.mxu0 %v670
    %938 = vmatpush.bf16.msra.mxu0 %v662
    %939 = vmatpush.bf16.msra.mxu0 %v654
    %940 = vmatpush.bf16.msra.mxu0 %v646
    %941 = vmatpush.bf16.msra.mxu0 %v638
    %942 = vmatpush.bf16.msra.mxu0 %v630
    %943 = vmatpush.bf16.msra.mxu0 %v622
    %944 = vmatmul.bf16.gmra.mxu0 %v167
    %v945 = vpop.f32.mrf.mxu0
    %v946 = vadd.f32 %v932, %v945
    %v947 = vpop.f32.mrf.mxu0
    %v948 = vadd.f32 %v934, %v947
    %949 = vdwg.mxu0
    %950 = vmatpush.bf16.msra.mxu0 %v615
    %951 = vmatpush.bf16.msra.mxu0 %v607
    %952 = vmatpush.bf16.msra.mxu0 %v599
    %953 = vmatpush.bf16.msra.mxu0 %v591
    %954 = vmatpush.bf16.msra.mxu0 %v583
    %955 = vmatpush.bf16.msra.mxu0 %v575
    %956 = vmatpush.bf16.msra.mxu0 %v567
    %957 = vmatpush.bf16.msra.mxu0 %v559
    %958 = vmatmul.bf16.gmra.mxu0 %v166
    %v959 = vpop.f32.mrf.mxu0
    %v960 = vadd.f32 0.0, %v959
    %v961 = vpop.f32.mrf.mxu0
    %v962 = vadd.f32 0.0, %v961
    %963 = vdwg.mxu0
    %964 = vmatpush.bf16.msra.mxu0 %v679
    %965 = vmatpush.bf16.msra.mxu0 %v671
    %966 = vmatpush.bf16.msra.mxu0 %v663
    %967 = vmatpush.bf16.msra.mxu0 %v655
    %968 = vmatpush.bf16.msra.mxu0 %v647
    %969 = vmatpush.bf16.msra.mxu0 %v639
    %970 = vmatpush.bf16.msra.mxu0 %v631
    %971 = vmatpush.bf16.msra.mxu0 %v623
    %972 = vmatmul.bf16.gmra.mxu0 %v167
    %v973 = vpop.f32.mrf.mxu0
    %v974 = vadd.f32 %v960, %v973
    %v975 = vpop.f32.mrf.mxu0
    %v976 = vadd.f32 %v962, %v975
    %977 = vdwg.mxu0
    %978 = vmatpush.bf16.msra.mxu0 %v616
    %979 = vmatpush.bf16.msra.mxu0 %v608
    %980 = vmatpush.bf16.msra.mxu0 %v600
    %981 = vmatpush.bf16.msra.mxu0 %v592
    %982 = vmatpush.bf16.msra.mxu0 %v584
    %983 = vmatpush.bf16.msra.mxu0 %v576
    %984 = vmatpush.bf16.msra.mxu0 %v568
    %985 = vmatpush.bf16.msra.mxu0 %v560
    %986 = vmatmul.bf16.gmra.mxu0 %v166
    %v987 = vpop.f32.mrf.mxu0
    %v988 = vadd.f32 0.0, %v987
    %v989 = vpop.f32.mrf.mxu0
    %v990 = vadd.f32 0.0, %v989
    %991 = vdwg.mxu0
    %992 = vmatpush.bf16.msra.mxu0 %v680
    %993 = vmatpush.bf16.msra.mxu0 %v672
    %994 = vmatpush.bf16.msra.mxu0 %v664
    %995 = vmatpush.bf16.msra.mxu0 %v656
    %996 = vmatpush.bf16.msra.mxu0 %v648
    %997 = vmatpush.bf16.msra.mxu0 %v640
    %998 = vmatpush.bf16.msra.mxu0 %v632
    %999 = vmatpush.bf16.msra.mxu0 %v624
    %1000 = vmatmul.bf16.gmra.mxu0 %v167
    %v1001 = vpop.f32.mrf.mxu0
    %v1002 = vadd.f32 %v988, %v1001
    %v1003 = vpop.f32.mrf.mxu0
    %v1004 = vadd.f32 %v990, %v1003
    %1005 = vdwg.mxu0
    %1006 = vmatpush.bf16.msra.mxu0 %v617
    %1007 = vmatpush.bf16.msra.mxu0 %v609
    %1008 = vmatpush.bf16.msra.mxu0 %v601
    %1009 = vmatpush.bf16.msra.mxu0 %v593
    %1010 = vmatpush.bf16.msra.mxu0 %v585
    %1011 = vmatpush.bf16.msra.mxu0 %v577
    %1012 = vmatpush.bf16.msra.mxu0 %v569
    %1013 = vmatpush.bf16.msra.mxu0 %v561
    %1014 = vmatmul.bf16.gmra.mxu0 %v166
    %v1015 = vpop.f32.mrf.mxu0
    %v1016 = vadd.f32 0.0, %v1015
    %v1017 = vpop.f32.mrf.mxu0
    %v1018 = vadd.f32 0.0, %v1017
    %1019 = vdwg.mxu0
    %1020 = vmatpush.bf16.msra.mxu0 %v681
    %1021 = vmatpush.bf16.msra.mxu0 %v673
    %1022 = vmatpush.bf16.msra.mxu0 %v665
    %1023 = vmatpush.bf16.msra.mxu0 %v657
    %1024 = vmatpush.bf16.msra.mxu0 %v649
    %1025 = vmatpush.bf16.msra.mxu0 %v641
    %1026 = vmatpush.bf16.msra.mxu0 %v633
    %1027 = vmatpush.bf16.msra.mxu0 %v625
    %1028 = vmatmul.bf16.gmra.mxu0 %v167
    %v1029 = vpop.f32.mrf.mxu0
    %v1030 = vadd.f32 %v1016, %v1029
    %v1031 = vpop.f32.mrf.mxu0
    %v1032 = vadd.f32 %v1018, %v1031
    %1033 = vdwg.mxu0
    %v1034 = vxor.u32 %v834, 2147483648
    %v1035 = vxor.u32 %v862, 2147483648
    %v1036 = vxor.u32 %v890, 2147483648
    %v1037 = vxor.u32 %v918, 2147483648
    %v1038 = vxor.u32 %v836, 2147483648
    %v1039 = vxor.u32 %v864, 2147483648
    %v1040 = vxor.u32 %v892, 2147483648
    %v1041 = vxor.u32 %v920, 2147483648
    %v1042 = vmul.f32 %v1034, 1.442695
    %v1043 = vpow.pop %v1042
    %v1044 = vmul.f32 %v1035, 1.442695
    %v1045 = vpow.pop %v1044
    %v1046 = vmul.f32 %v1036, 1.442695
    %v1047 = vpow.pop %v1046
    %v1048 = vmul.f32 %v1037, 1.442695
    %v1049 = vpow.pop %v1048
    %v1050 = vmul.f32 %v1038, 1.442695
    %v1051 = vpow.pop %v1050
    %v1052 = vmul.f32 %v1039, 1.442695
    %v1053 = vpow.pop %v1052
    %v1054 = vmul.f32 %v1040, 1.442695
    %v1055 = vpow.pop %v1054
    %v1056 = vmul.f32 %v1041, 1.442695
    %v1057 = vpow.pop %v1056
    %v1058 = vadd.f32 %v1043, 1.0
    %v1059 = vadd.f32 %v1045, 1.0
    %v1060 = vadd.f32 %v1047, 1.0
    %v1061 = vadd.f32 %v1049, 1.0
    %v1062 = vadd.f32 %v1051, 1.0
    %v1063 = vadd.f32 %v1053, 1.0
    %v1064 = vadd.f32 %v1055, 1.0
    %v1065 = vadd.f32 %v1057, 1.0
    %v1066 = vrcp.pop %v1058
    %v1067 = vmul.f32 %v1058, %v1066
    %v1068 = vsub.f32 1.0, %v1067
    %v1069 = vmul.f32 %v1066, %v1068
    %v1070 = vadd.f32 %v1066, %v1069
    %vm1071 = vweird.f32 %v1058
    %vm1072 = vweird.f32 %v1066
    %vm1073 = vmor %vm1071, %vm1072
    %v1074 = vsel %vm1073, %v1066, %v1070
    %v1075 = vand.u32 2147483647, %v1058
    %vm1076 = vcmp.eq.f32.partialorder %v1075, 8.507059e+37
    %v1077 = vand.u32 %v1058, 2147483648
    %v1078 = vor.u32 1.1754944e-38, %v1077
    %v1079 = vsel %vm1076, %v1078, %v1074
    %v1080 = vmul.f32 1.0, %v1079
    %v1081 = vrcp.pop %v1059
    %v1082 = vmul.f32 %v1059, %v1081
    %v1083 = vsub.f32 1.0, %v1082
    %v1084 = vmul.f32 %v1081, %v1083
    %v1085 = vadd.f32 %v1081, %v1084
    %vm1086 = vweird.f32 %v1059
    %vm1087 = vweird.f32 %v1081
    %vm1088 = vmor %vm1086, %vm1087
    %v1089 = vsel %vm1088, %v1081, %v1085
    %v1090 = vand.u32 2147483647, %v1059
    %vm1091 = vcmp.eq.f32.partialorder %v1090, 8.507059e+37
    %v1092 = vand.u32 %v1059, 2147483648
    %v1093 = vor.u32 1.1754944e-38, %v1092
    %v1094 = vsel %vm1091, %v1093, %v1089
    %v1095 = vmul.f32 1.0, %v1094
    %v1096 = vrcp.pop %v1060
    %v1097 = vmul.f32 %v1060, %v1096
    %v1098 = vsub.f32 1.0, %v1097
    %v1099 = vmul.f32 %v1096, %v1098
    %v1100 = vadd.f32 %v1096, %v1099
    %vm1101 = vweird.f32 %v1060
    %vm1102 = vweird.f32 %v1096
    %vm1103 = vmor %vm1101, %vm1102
    %v1104 = vsel %vm1103, %v1096, %v1100
    %v1105 = vand.u32 2147483647, %v1060
    %vm1106 = vcmp.eq.f32.partialorder %v1105, 8.507059e+37
    %v1107 = vand.u32 %v1060, 2147483648
    %v1108 = vor.u32 1.1754944e-38, %v1107
    %v1109 = vsel %vm1106, %v1108, %v1104
    %v1110 = vmul.f32 1.0, %v1109
    %v1111 = vrcp.pop %v1061
    %v1112 = vmul.f32 %v1061, %v1111
    %v1113 = vsub.f32 1.0, %v1112
    %v1114 = vmul.f32 %v1111, %v1113
    %v1115 = vadd.f32 %v1111, %v1114
    %vm1116 = vweird.f32 %v1061
    %vm1117 = vweird.f32 %v1111
    %vm1118 = vmor %vm1116, %vm1117
    %v1119 = vsel %vm1118, %v1111, %v1115
    %v1120 = vand.u32 2147483647, %v1061
    %vm1121 = vcmp.eq.f32.partialorder %v1120, 8.507059e+37
    %v1122 = vand.u32 %v1061, 2147483648
    %v1123 = vor.u32 1.1754944e-38, %v1122
    %v1124 = vsel %vm1121, %v1123, %v1119
    %v1125 = vmul.f32 1.0, %v1124
    %v1126 = vrcp.pop %v1062
    %v1127 = vmul.f32 %v1062, %v1126
    %v1128 = vsub.f32 1.0, %v1127
    %v1129 = vmul.f32 %v1126, %v1128
    %v1130 = vadd.f32 %v1126, %v1129
    %vm1131 = vweird.f32 %v1062
    %vm1132 = vweird.f32 %v1126
    %vm1133 = vmor %vm1131, %vm1132
    %v1134 = vsel %vm1133, %v1126, %v1130
    %v1135 = vand.u32 2147483647, %v1062
    %vm1136 = vcmp.eq.f32.partialorder %v1135, 8.507059e+37
    %v1137 = vand.u32 %v1062, 2147483648
    %v1138 = vor.u32 1.1754944e-38, %v1137
    %v1139 = vsel %vm1136, %v1138, %v1134
    %v1140 = vmul.f32 1.0, %v1139
    %v1141 = vrcp.pop %v1063
    %v1142 = vmul.f32 %v1063, %v1141
    %v1143 = vsub.f32 1.0, %v1142
    %v1144 = vmul.f32 %v1141, %v1143
    %v1145 = vadd.f32 %v1141, %v1144
    %vm1146 = vweird.f32 %v1063
    %vm1147 = vweird.f32 %v1141
    %vm1148 = vmor %vm1146, %vm1147
    %v1149 = vsel %vm1148, %v1141, %v1145
    %v1150 = vand.u32 2147483647, %v1063
    %vm1151 = vcmp.eq.f32.partialorder %v1150, 8.507059e+37
    %v1152 = vand.u32 %v1063, 2147483648
    %v1153 = vor.u32 1.1754944e-38, %v1152
    %v1154 = vsel %vm1151, %v1153, %v1149
    %v1155 = vmul.f32 1.0, %v1154
    %v1156 = vrcp.pop %v1064
    %v1157 = vmul.f32 %v1064, %v1156
    %v1158 = vsub.f32 1.0, %v1157
    %v1159 = vmul.f32 %v1156, %v1158
    %v1160 = vadd.f32 %v1156, %v1159
    %vm1161 = vweird.f32 %v1064
    %vm1162 = vweird.f32 %v1156
    %vm1163 = vmor %vm1161, %vm1162
    %v1164 = vsel %vm1163, %v1156, %v1160
    %v1165 = vand.u32 2147483647, %v1064
    %vm1166 = vcmp.eq.f32.partialorder %v1165, 8.507059e+37
    %v1167 = vand.u32 %v1064, 2147483648
    %v1168 = vor.u32 1.1754944e-38, %v1167
    %v1169 = vsel %vm1166, %v1168, %v1164
    %v1170 = vmul.f32 1.0, %v1169
    %v1171 = vrcp.pop %v1065
    %v1172 = vmul.f32 %v1065, %v1171
    %v1173 = vsub.f32 1.0, %v1172
    %v1174 = vmul.f32 %v1171, %v1173
    %v1175 = vadd.f32 %v1171, %v1174
    %vm1176 = vweird.f32 %v1065
    %vm1177 = vweird.f32 %v1171
    %vm1178 = vmor %vm1176, %vm1177
    %v1179 = vsel %vm1178, %v1171, %v1175
    %v1180 = vand.u32 2147483647, %v1065
    %vm1181 = vcmp.eq.f32.partialorder %v1180, 8.507059e+37
    %v1182 = vand.u32 %v1065, 2147483648
    %v1183 = vor.u32 1.1754944e-38, %v1182
    %v1184 = vsel %vm1181, %v1183, %v1179
    %v1185 = vmul.f32 1.0, %v1184
    %v1186 = vmul.f32 %v834, %v1080
    %v1187 = vmul.f32 %v862, %v1095
    %v1188 = vmul.f32 %v890, %v1110
    %v1189 = vmul.f32 %v918, %v1125
    %v1190 = vmul.f32 %v836, %v1140
    %v1191 = vmul.f32 %v864, %v1155
    %v1192 = vmul.f32 %v892, %v1170
    %v1193 = vmul.f32 %v920, %v1185
    %v1194 = vmul.f32 %v1186, %v946
    %v1195 = vmul.f32 %v1187, %v974
    %v1196 = vmul.f32 %v1188, %v1002
    %v1197 = vmul.f32 %v1189, %v1030
    %v1198 = vmul.f32 %v1190, %v948
    %v1199 = vmul.f32 %v1191, %v976
    %v1200 = vmul.f32 %v1192, %v1004
    %v1201 = vmul.f32 %v1193, %v1032
    %v1202 = vld [vmem:[#allocation2] sm:$0xff]
    %v1203 = vld [vmem:[#allocation2 + $0x8] sm:$0xff]
    %v1204 = vld [vmem:[#allocation2 + $0x10] sm:$0xff]
    %v1205 = vld [vmem:[#allocation2 + $0x18] sm:$0xff]
    %v1206 = vpack.c.bf16 %v1198, %v1194
    %v1207 = vpack.c.bf16 %v1199, %v1195
    %v1208 = vpack.c.bf16 %v1200, %v1196
    %v1209 = vpack.c.bf16 %v1201, %v1197
    %v1210 = vld [vmem:[%s3] sm:$0xff]
    %v1211 = vld [vmem:[%s3 + $0x8] sm:$0xff]
    %v1212 = vld [vmem:[%s3 + $0x10] sm:$0xff]
    %v1213 = vld [vmem:[%s3 + $0x18] sm:$0xff]
    %v1214 = vld [vmem:[%s3 + $0x20] sm:$0xff]
    %v1215 = vld [vmem:[%s3 + $0x28] sm:$0xff]
    %v1216 = vld [vmem:[%s3 + $0x30] sm:$0xff]
    %v1217 = vld [vmem:[%s3 + $0x38] sm:$0xff]
    %v1218 = vld [vmem:[%s3 + $0x40] sm:$0xff]
    %v1219 = vld [vmem:[%s3 + $0x48] sm:$0xff]
    %v1220 = vld [vmem:[%s3 + $0x50] sm:$0xff]
    %v1221 = vld [vmem:[%s3 + $0x58] sm:$0xff]
    %v1222 = vld [vmem:[%s3 + $0x60] sm:$0xff]
    %v1223 = vld [vmem:[%s3 + $0x68] sm:$0xff]
    %v1224 = vld [vmem:[%s3 + $0x70] sm:$0xff]
    %v1225 = vld [vmem:[%s3 + $0x78] sm:$0xff]
    %v1226 = vld [vmem:[%s3 + $0x80] sm:$0xff]
    %v1227 = vld [vmem:[%s3 + $0x88] sm:$0xff]
    %v1228 = vld [vmem:[%s3 + $0x90] sm:$0xff]
    %v1229 = vld [vmem:[%s3 + $0x98] sm:$0xff]
    %v1230 = vld [vmem:[%s3 + $0xa0] sm:$0xff]
    %v1231 = vld [vmem:[%s3 + $0xa8] sm:$0xff]
    %v1232 = vld [vmem:[%s3 + $0xb0] sm:$0xff]
    %v1233 = vld [vmem:[%s3 + $0xb8] sm:$0xff]
    %v1234 = vld [vmem:[%s3 + $0xc0] sm:$0xff]
    %v1235 = vld [vmem:[%s3 + $0xc8] sm:$0xff]
    %v1236 = vld [vmem:[%s3 + $0xd0] sm:$0xff]
    %v1237 = vld [vmem:[%s3 + $0xd8] sm:$0xff]
    %v1238 = vld [vmem:[%s3 + $0xe0] sm:$0xff]
    %v1239 = vld [vmem:[%s3 + $0xe8] sm:$0xff]
    %v1240 = vld [vmem:[%s3 + $0xf0] sm:$0xff]
    %v1241 = vld [vmem:[%s3 + $0xf8] sm:$0xff]
    %v1242 = vld [vmem:[%s3 + $0x100] sm:$0xff]
    %v1243 = vld [vmem:[%s3 + $0x108] sm:$0xff]
    %v1244 = vld [vmem:[%s3 + $0x110] sm:$0xff]
    %v1245 = vld [vmem:[%s3 + $0x118] sm:$0xff]
    %v1246 = vld [vmem:[%s3 + $0x120] sm:$0xff]
    %v1247 = vld [vmem:[%s3 + $0x128] sm:$0xff]
    %v1248 = vld [vmem:[%s3 + $0x130] sm:$0xff]
    %v1249 = vld [vmem:[%s3 + $0x138] sm:$0xff]
    %v1250 = vld [vmem:[%s3 + $0x140] sm:$0xff]
    %v1251 = vld [vmem:[%s3 + $0x148] sm:$0xff]
    %v1252 = vld [vmem:[%s3 + $0x150] sm:$0xff]
    %v1253 = vld [vmem:[%s3 + $0x158] sm:$0xff]
    %v1254 = vld [vmem:[%s3 + $0x160] sm:$0xff]
    %v1255 = vld [vmem:[%s3 + $0x168] sm:$0xff]
    %v1256 = vld [vmem:[%s3 + $0x170] sm:$0xff]
    %v1257 = vld [vmem:[%s3 + $0x178] sm:$0xff]
    %v1258 = vld [vmem:[%s3 + $0x180] sm:$0xff]
    %v1259 = vld [vmem:[%s3 + $0x188] sm:$0xff]
    %v1260 = vld [vmem:[%s3 + $0x190] sm:$0xff]
    %v1261 = vld [vmem:[%s3 + $0x198] sm:$0xff]
    %v1262 = vld [vmem:[%s3 + $0x1a0] sm:$0xff]
    %v1263 = vld [vmem:[%s3 + $0x1a8] sm:$0xff]
    %v1264 = vld [vmem:[%s3 + $0x1b0] sm:$0xff]
    %v1265 = vld [vmem:[%s3 + $0x1b8] sm:$0xff]
    %v1266 = vld [vmem:[%s3 + $0x1c0] sm:$0xff]
    %v1267 = vld [vmem:[%s3 + $0x1c8] sm:$0xff]
    %v1268 = vld [vmem:[%s3 + $0x1d0] sm:$0xff]
    %v1269 = vld [vmem:[%s3 + $0x1d8] sm:$0xff]
    %v1270 = vld [vmem:[%s3 + $0x1e0] sm:$0xff]
    %v1271 = vld [vmem:[%s3 + $0x1e8] sm:$0xff]
    %v1272 = vld [vmem:[%s3 + $0x1f0] sm:$0xff]
    %v1273 = vld [vmem:[%s3 + $0x1f8] sm:$0xff]
    %v1338 = vunpack.c.l.b16 %v1210
    %v1339 = vunpack.c.h.b16 %v1210
    %v1340 = vunpack.c.l.b16 %v1211
    %v1341 = vunpack.c.h.b16 %v1211
    %v1342 = vunpack.c.l.b16 %v1212
    %v1343 = vunpack.c.h.b16 %v1212
    %v1344 = vunpack.c.l.b16 %v1213
    %v1345 = vunpack.c.h.b16 %v1213
    %v1346 = vunpack.c.l.b16 %v1214
    %v1347 = vunpack.c.h.b16 %v1214
    %v1348 = vunpack.c.l.b16 %v1215
    %v1349 = vunpack.c.h.b16 %v1215
    %v1350 = vunpack.c.l.b16 %v1216
    %v1351 = vunpack.c.h.b16 %v1216
    %v1352 = vunpack.c.l.b16 %v1217
    %v1353 = vunpack.c.h.b16 %v1217
    %v1354 = vunpack.c.l.b16 %v1218
    %v1355 = vunpack.c.h.b16 %v1218
    %v1356 = vunpack.c.l.b16 %v1219
    %v1357 = vunpack.c.h.b16 %v1219
    %v1358 = vunpack.c.l.b16 %v1220
    %v1359 = vunpack.c.h.b16 %v1220
    %v1360 = vunpack.c.l.b16 %v1221
    %v1361 = vunpack.c.h.b16 %v1221
    %v1362 = vunpack.c.l.b16 %v1222
    %v1363 = vunpack.c.h.b16 %v1222
    %v1364 = vunpack.c.l.b16 %v1223
    %v1365 = vunpack.c.h.b16 %v1223
    %v1366 = vunpack.c.l.b16 %v1224
    %v1367 = vunpack.c.h.b16 %v1224
    %v1368 = vunpack.c.l.b16 %v1225
    %v1369 = vunpack.c.h.b16 %v1225
    %v1370 = vunpack.c.l.b16 %v1226
    %v1371 = vunpack.c.h.b16 %v1226
    %v1372 = vunpack.c.l.b16 %v1227
    %v1373 = vunpack.c.h.b16 %v1227
    %v1374 = vunpack.c.l.b16 %v1228
    %v1375 = vunpack.c.h.b16 %v1228
    %v1376 = vunpack.c.l.b16 %v1229
    %v1377 = vunpack.c.h.b16 %v1229
    %v1378 = vunpack.c.l.b16 %v1230
    %v1379 = vunpack.c.h.b16 %v1230
    %v1380 = vunpack.c.l.b16 %v1231
    %v1381 = vunpack.c.h.b16 %v1231
    %v1382 = vunpack.c.l.b16 %v1232
    %v1383 = vunpack.c.h.b16 %v1232
    %v1384 = vunpack.c.l.b16 %v1233
    %v1385 = vunpack.c.h.b16 %v1233
    %v1386 = vunpack.c.l.b16 %v1234
    %v1387 = vunpack.c.h.b16 %v1234
    %v1388 = vunpack.c.l.b16 %v1235
    %v1389 = vunpack.c.h.b16 %v1235
    %v1390 = vunpack.c.l.b16 %v1236
    %v1391 = vunpack.c.h.b16 %v1236
    %v1392 = vunpack.c.l.b16 %v1237
    %v1393 = vunpack.c.h.b16 %v1237
    %v1394 = vunpack.c.l.b16 %v1238
    %v1395 = vunpack.c.h.b16 %v1238
    %v1396 = vunpack.c.l.b16 %v1239
    %v1397 = vunpack.c.h.b16 %v1239
    %v1398 = vunpack.c.l.b16 %v1240
    %v1399 = vunpack.c.h.b16 %v1240
    %v1400 = vunpack.c.l.b16 %v1241
    %v1401 = vunpack.c.h.b16 %v1241
    %v1402 = vunpack.c.l.b16 %v1242
    %v1403 = vunpack.c.h.b16 %v1242
    %v1404 = vunpack.c.l.b16 %v1243
    %v1405 = vunpack.c.h.b16 %v1243
    %v1406 = vunpack.c.l.b16 %v1244
    %v1407 = vunpack.c.h.b16 %v1244
    %v1408 = vunpack.c.l.b16 %v1245
    %v1409 = vunpack.c.h.b16 %v1245
    %v1410 = vunpack.c.l.b16 %v1246
    %v1411 = vunpack.c.h.b16 %v1246
    %v1412 = vunpack.c.l.b16 %v1247
    %v1413 = vunpack.c.h.b16 %v1247
    %v1414 = vunpack.c.l.b16 %v1248
    %v1415 = vunpack.c.h.b16 %v1248
    %v1416 = vunpack.c.l.b16 %v1249
    %v1417 = vunpack.c.h.b16 %v1249
    %v1418 = vunpack.c.l.b16 %v1250
    %v1419 = vunpack.c.h.b16 %v1250
    %v1420 = vunpack.c.l.b16 %v1251
    %v1421 = vunpack.c.h.b16 %v1251
    %v1422 = vunpack.c.l.b16 %v1252
    %v1423 = vunpack.c.h.b16 %v1252
    %v1424 = vunpack.c.l.b16 %v1253
    %v1425 = vunpack.c.h.b16 %v1253
    %v1426 = vunpack.c.l.b16 %v1254
    %v1427 = vunpack.c.h.b16 %v1254
    %v1428 = vunpack.c.l.b16 %v1255
    %v1429 = vunpack.c.h.b16 %v1255
    %v1430 = vunpack.c.l.b16 %v1256
    %v1431 = vunpack.c.h.b16 %v1256
    %v1432 = vunpack.c.l.b16 %v1257
    %v1433 = vunpack.c.h.b16 %v1257
    %v1434 = vunpack.c.l.b16 %v1258
    %v1435 = vunpack.c.h.b16 %v1258
    %v1436 = vunpack.c.l.b16 %v1259
    %v1437 = vunpack.c.h.b16 %v1259
    %v1438 = vunpack.c.l.b16 %v1260
    %v1439 = vunpack.c.h.b16 %v1260
    %v1440 = vunpack.c.l.b16 %v1261
    %v1441 = vunpack.c.h.b16 %v1261
    %v1442 = vunpack.c.l.b16 %v1262
    %v1443 = vunpack.c.h.b16 %v1262
    %v1444 = vunpack.c.l.b16 %v1263
    %v1445 = vunpack.c.h.b16 %v1263
    %v1446 = vunpack.c.l.b16 %v1264
    %v1447 = vunpack.c.h.b16 %v1264
    %v1448 = vunpack.c.l.b16 %v1265
    %v1449 = vunpack.c.h.b16 %v1265
    %v1450 = vunpack.c.l.b16 %v1266
    %v1451 = vunpack.c.h.b16 %v1266
    %v1452 = vunpack.c.l.b16 %v1267
    %v1453 = vunpack.c.h.b16 %v1267
    %v1454 = vunpack.c.l.b16 %v1268
    %v1455 = vunpack.c.h.b16 %v1268
    %v1456 = vunpack.c.l.b16 %v1269
    %v1457 = vunpack.c.h.b16 %v1269
    %v1458 = vunpack.c.l.b16 %v1270
    %v1459 = vunpack.c.h.b16 %v1270
    %v1460 = vunpack.c.l.b16 %v1271
    %v1461 = vunpack.c.h.b16 %v1271
    %v1462 = vunpack.c.l.b16 %v1272
    %v1463 = vunpack.c.h.b16 %v1272
    %v1464 = vunpack.c.l.b16 %v1273
    %v1465 = vunpack.c.h.b16 %v1273
    %v1466 = vpack.c.b16 %v1340, %v1338
    %v1467 = vpack.c.b16 %v1341, %v1339
    %v1468 = vpack.c.b16 %v1344, %v1342
    %v1469 = vpack.c.b16 %v1345, %v1343
    %v1470 = vpack.c.b16 %v1348, %v1346
    %v1471 = vpack.c.b16 %v1349, %v1347
    %v1472 = vpack.c.b16 %v1352, %v1350
    %v1473 = vpack.c.b16 %v1353, %v1351
    %v1474 = vpack.c.b16 %v1356, %v1354
    %v1475 = vpack.c.b16 %v1357, %v1355
    %v1476 = vpack.c.b16 %v1360, %v1358
    %v1477 = vpack.c.b16 %v1361, %v1359
    %v1478 = vpack.c.b16 %v1364, %v1362
    %v1479 = vpack.c.b16 %v1365, %v1363
    %v1480 = vpack.c.b16 %v1368, %v1366
    %v1481 = vpack.c.b16 %v1369, %v1367
    %v1482 = vpack.c.b16 %v1372, %v1370
    %v1483 = vpack.c.b16 %v1373, %v1371
    %v1484 = vpack.c.b16 %v1376, %v1374
    %v1485 = vpack.c.b16 %v1377, %v1375
    %v1486 = vpack.c.b16 %v1380, %v1378
    %v1487 = vpack.c.b16 %v1381, %v1379
    %v1488 = vpack.c.b16 %v1384, %v1382
    %v1489 = vpack.c.b16 %v1385, %v1383
    %v1490 = vpack.c.b16 %v1388, %v1386
    %v1491 = vpack.c.b16 %v1389, %v1387
    %v1492 = vpack.c.b16 %v1392, %v1390
    %v1493 = vpack.c.b16 %v1393, %v1391
    %v1494 = vpack.c.b16 %v1396, %v1394
    %v1495 = vpack.c.b16 %v1397, %v1395
    %v1496 = vpack.c.b16 %v1400, %v1398
    %v1497 = vpack.c.b16 %v1401, %v1399
    %v1498 = vpack.c.b16 %v1404, %v1402
    %v1499 = vpack.c.b16 %v1405, %v1403
    %v1500 = vpack.c.b16 %v1408, %v1406
    %v1501 = vpack.c.b16 %v1409, %v1407
    %v1502 = vpack.c.b16 %v1412, %v1410
    %v1503 = vpack.c.b16 %v1413, %v1411
    %v1504 = vpack.c.b16 %v1416, %v1414
    %v1505 = vpack.c.b16 %v1417, %v1415
    %v1506 = vpack.c.b16 %v1420, %v1418
    %v1507 = vpack.c.b16 %v1421, %v1419
    %v1508 = vpack.c.b16 %v1424, %v1422
    %v1509 = vpack.c.b16 %v1425, %v1423
    %v1510 = vpack.c.b16 %v1428, %v1426
    %v1511 = vpack.c.b16 %v1429, %v1427
    %v1512 = vpack.c.b16 %v1432, %v1430
    %v1513 = vpack.c.b16 %v1433, %v1431
    %v1514 = vpack.c.b16 %v1436, %v1434
    %v1515 = vpack.c.b16 %v1437, %v1435
    %v1516 = vpack.c.b16 %v1440, %v1438
    %v1517 = vpack.c.b16 %v1441, %v1439
    %v1518 = vpack.c.b16 %v1444, %v1442
    %v1519 = vpack.c.b16 %v1445, %v1443
    %v1520 = vpack.c.b16 %v1448, %v1446
    %v1521 = vpack.c.b16 %v1449, %v1447
    %v1522 = vpack.c.b16 %v1452, %v1450
    %v1523 = vpack.c.b16 %v1453, %v1451
    %v1524 = vpack.c.b16 %v1456, %v1454
    %v1525 = vpack.c.b16 %v1457, %v1455
    %v1526 = vpack.c.b16 %v1460, %v1458
    %v1527 = vpack.c.b16 %v1461, %v1459
    %v1528 = vpack.c.b16 %v1464, %v1462
    %v1529 = vpack.c.b16 %v1465, %v1463
    %1594 = vmatpush.bf16.msra.mxu0 %v1480
    %1595 = vmatpush.bf16.msra.mxu0 %v1478
    %1596 = vmatpush.bf16.msra.mxu0 %v1476
    %1597 = vmatpush.bf16.msra.mxu0 %v1474
    %1598 = vmatpush.bf16.msra.mxu0 %v1472
    %1599 = vmatpush.bf16.msra.mxu0 %v1470
    %1600 = vmatpush.bf16.msra.mxu0 %v1468
    %1601 = vmatpush.bf16.msra.mxu0 %v1466
    %1602 = vmatmul.bf16.gmra.mxu0 %v1206
    %v1603 = vpop.f32.mrf.mxu0
    %v1604 = vadd.f32 0.0, %v1603
    %v1605 = vpop.f32.mrf.mxu0
    %v1606 = vadd.f32 0.0, %v1605
    %1607 = vdwg.mxu0
    %1608 = vmatpush.bf16.msra.mxu0 %v1496
    %1609 = vmatpush.bf16.msra.mxu0 %v1494
    %1610 = vmatpush.bf16.msra.mxu0 %v1492
    %1611 = vmatpush.bf16.msra.mxu0 %v1490
    %1612 = vmatpush.bf16.msra.mxu0 %v1488
    %1613 = vmatpush.bf16.msra.mxu0 %v1486
    %1614 = vmatpush.bf16.msra.mxu0 %v1484
    %1615 = vmatpush.bf16.msra.mxu0 %v1482
    %1616 = vmatmul.bf16.gmra.mxu0 %v1207
    %v1617 = vpop.f32.mrf.mxu0
    %v1618 = vadd.f32 %v1604, %v1617
    %v1619 = vpop.f32.mrf.mxu0
    %v1620 = vadd.f32 %v1606, %v1619
    %1621 = vdwg.mxu0
    %1622 = vmatpush.bf16.msra.mxu0 %v1512
    %1623 = vmatpush.bf16.msra.mxu0 %v1510
    %1624 = vmatpush.bf16.msra.mxu0 %v1508
    %1625 = vmatpush.bf16.msra.mxu0 %v1506
    %1626 = vmatpush.bf16.msra.mxu0 %v1504
    %1627 = vmatpush.bf16.msra.mxu0 %v1502
    %1628 = vmatpush.bf16.msra.mxu0 %v1500
    %1629 = vmatpush.bf16.msra.mxu0 %v1498
    %1630 = vmatmul.bf16.gmra.mxu0 %v1208
    %v1631 = vpop.f32.mrf.mxu0
    %v1632 = vadd.f32 %v1618, %v1631
    %v1633 = vpop.f32.mrf.mxu0
    %v1634 = vadd.f32 %v1620, %v1633
    %1635 = vdwg.mxu0
    %1636 = vmatpush.bf16.msra.mxu0 %v1528
    %1637 = vmatpush.bf16.msra.mxu0 %v1526
    %1638 = vmatpush.bf16.msra.mxu0 %v1524
    %1639 = vmatpush.bf16.msra.mxu0 %v1522
    %1640 = vmatpush.bf16.msra.mxu0 %v1520
    %1641 = vmatpush.bf16.msra.mxu0 %v1518
    %1642 = vmatpush.bf16.msra.mxu0 %v1516
    %1643 = vmatpush.bf16.msra.mxu0 %v1514
    %1644 = vmatmul.bf16.gmra.mxu0 %v1209
    %v1645 = vpop.f32.mrf.mxu0
    %v1646 = vadd.f32 %v1632, %v1645
    %v1647 = vpop.f32.mrf.mxu0
    %v1648 = vadd.f32 %v1634, %v1647
    %1649 = vdwg.mxu0
    %1650 = vmatpush.bf16.msra.mxu0 %v1481
    %1651 = vmatpush.bf16.msra.mxu0 %v1479
    %1652 = vmatpush.bf16.msra.mxu0 %v1477
    %1653 = vmatpush.bf16.msra.mxu0 %v1475
    %1654 = vmatpush.bf16.msra.mxu0 %v1473
    %1655 = vmatpush.bf16.msra.mxu0 %v1471
    %1656 = vmatpush.bf16.msra.mxu0 %v1469
    %1657 = vmatpush.bf16.msra.mxu0 %v1467
    %1658 = vmatmul.bf16.gmra.mxu0 %v1206
    %v1659 = vpop.f32.mrf.mxu0
    %v1660 = vadd.f32 0.0, %v1659
    %v1661 = vpop.f32.mrf.mxu0
    %v1662 = vadd.f32 0.0, %v1661
    %1663 = vdwg.mxu0
    %1664 = vmatpush.bf16.msra.mxu0 %v1497
    %1665 = vmatpush.bf16.msra.mxu0 %v1495
    %1666 = vmatpush.bf16.msra.mxu0 %v1493
    %1667 = vmatpush.bf16.msra.mxu0 %v1491
    %1668 = vmatpush.bf16.msra.mxu0 %v1489
    %1669 = vmatpush.bf16.msra.mxu0 %v1487
    %1670 = vmatpush.bf16.msra.mxu0 %v1485
    %1671 = vmatpush.bf16.msra.mxu0 %v1483
    %1672 = vmatmul.bf16.gmra.mxu0 %v1207
    %v1673 = vpop.f32.mrf.mxu0
    %v1674 = vadd.f32 %v1660, %v1673
    %v1675 = vpop.f32.mrf.mxu0
    %v1676 = vadd.f32 %v1662, %v1675
    %1677 = vdwg.mxu0
    %1678 = vmatpush.bf16.msra.mxu0 %v1513
    %1679 = vmatpush.bf16.msra.mxu0 %v1511
    %1680 = vmatpush.bf16.msra.mxu0 %v1509
    %1681 = vmatpush.bf16.msra.mxu0 %v1507
    %1682 = vmatpush.bf16.msra.mxu0 %v1505
    %1683 = vmatpush.bf16.msra.mxu0 %v1503
    %1684 = vmatpush.bf16.msra.mxu0 %v1501
    %1685 = vmatpush.bf16.msra.mxu0 %v1499
    %1686 = vmatmul.bf16.gmra.mxu0 %v1208
    %v1687 = vpop.f32.mrf.mxu0
    %v1688 = vadd.f32 %v1674, %v1687
    %v1689 = vpop.f32.mrf.mxu0
    %v1690 = vadd.f32 %v1676, %v1689
    %1691 = vdwg.mxu0
    %1692 = vmatpush.bf16.msra.mxu0 %v1529
    %1693 = vmatpush.bf16.msra.mxu0 %v1527
    %1694 = vmatpush.bf16.msra.mxu0 %v1525
    %1695 = vmatpush.bf16.msra.mxu0 %v1523
    %1696 = vmatpush.bf16.msra.mxu0 %v1521
    %1697 = vmatpush.bf16.msra.mxu0 %v1519
    %1698 = vmatpush.bf16.msra.mxu0 %v1517
    %1699 = vmatpush.bf16.msra.mxu0 %v1515
    %1700 = vmatmul.bf16.gmra.mxu0 %v1209
    %v1701 = vpop.f32.mrf.mxu0
    %v1702 = vadd.f32 %v1688, %v1701
    %v1703 = vpop.f32.mrf.mxu0
    %v1704 = vadd.f32 %v1690, %v1703
    %1705 = vdwg.mxu0
    %v1706 = vadd.f32 %v1202, %v1646
    %v1707 = vadd.f32 %v1203, %v1702
    %v1708 = vadd.f32 %v1204, %v1648
    %v1709 = vadd.f32 %v1205, %v1704
    %1710 = vst [vmem:[#allocation2] sm:$0xff] %v1706
    %1711 = vst [vmem:[#allocation2 + $0x8] sm:$0xff] %v1707
    %1712 = vst [vmem:[#allocation2 + $0x10] sm:$0xff] %v1708
    %1713 = vst [vmem:[#allocation2 + $0x18] sm:$0xff] %v1709
    // Predicated region
    $region22: #{moe_forward.3} parent=1 // pred_check
      _
    $region23: #{moe_forward.3} parent=1 // pred_check_branch
      %1715 = sbr.rel (0) target = $region25
    $region24: #{moe_forward.3} parent=1 // pred_region
      %1717 = vsyncadd [#allocation3], 0
      %s1718 = sshll.u32 [#allocation2], 4
      %s1719 = int_to_ptr.vmem [resolvable:$true] %s1718
      %s1720 = sshll.u32 %s4, 4
      %s1721 = int_to_ptr.hbm [resolvable:$true] %s1720
      %1726 = dma.vmem_to_hbm [thread:$0]  %s1719, 512, %s1721, [#allocation3], 256, 256, 16
    $region25: #{moe_forward.3} parent=1 // pred_fallthru
      _
    // Predicated region
    $region26: #{moe_forward.3} parent=1 // pred_check
      _
    $region27: #{moe_forward.3} parent=1 // pred_check_branch
      %1728 = sbr.rel (0) target = $region29
    $region28: #{moe_forward.3} parent=1 // pred_region
      %1730 = dma.done [#allocation3], 512
    $region29: #{moe_forward.3} parent=1 // pred_fallthru
      _
    %1731 = vsyncpa [#allocation3], 1

// kernel: moe_forward.2
$region0: #{moe_forward.2}
  #allocation0 [shape = 'u32[]', space=smem, size = 0x4, offset = 0x4, fixed_abs, tag = 'smem constant byte address 0x4 - core index']
  #allocation1 [shape = 'u32[72,128]{1,0:T(1,128)}', space=vmem, size = 0x9000, scoped, tag = 'internal scratch']
  #allocation2 [shape = 'f32[128,256]{1,0:T(8,128)}', space=vmem, size = 0x20000, scoped, tag = 'scratch operand']
  #allocation3 [shape = 's32[1]{0}', space=sflag, size = 0x4, scoped, tag = 'scoped memory for moe_forward.2']
  #allocation4 [shape = 'u8[512]{0}', space=smem, size = 0x200, scoped, tag = 'prefetched SMEM operand 0']
  #allocation5 [shape = 'u8[512]{0}', space=smem, size = 0x200, scoped, tag = 'prefetched SMEM operand 1']
  %s0 = inlined_call_operand.vmem [shape: s32[9], index: 0, kind: input, shape index: {}]
  %s1 = inlined_call_operand.vmem [shape: s32[9], index: 1, kind: input, shape index: {}]
  %s2 = inlined_call_operand.vmem [shape: bf16[1152,256], index: 2, kind: input, shape index: {}]
  %s3 = inlined_call_operand.vmem [shape: f32[1152,1], index: 3, kind: input, shape index: {}]
  %s4 = inlined_call_operand.vmem [shape: bf16[8,256,512], index: 4, kind: input, shape index: {}]
  %s5 = inlined_call_operand.vmem [shape: bf16[8,256,256], index: 5, kind: input, shape index: {}]
  %s6 = inlined_call_operand.vmem [shape: bf16[1152,256], index: 6, kind: output, shape index: {}]
  %s7 = sld [smem:[#allocation0]]
  $region61: #{moe_forward.2} parent=0
    _
  %s9 = ssub.s32 1, %s7
  %s10 = scalar_select 0, %s9, %s7
  %s12 = sshll.u32 %s0, 4
  %s13 = int_to_ptr.vmem [resolvable:$true] %s12
  %15 = dma.vmem_to_smem %s13, 16, [#allocation4], [#allocation3]
  %s17 = sshll.u32 %s1, 4
  %s18 = int_to_ptr.vmem [resolvable:$true] %s17
  %20 = dma.vmem_to_smem %s18, 16, [#allocation5], [#allocation3]
  %22 = dma.done [#allocation3], 32
  %23 = sfence
  loop: start=0, step=1, limit=11
  $region2: #{moe_forward.2} parent=0 // loop_pre_header
    _
  $region3: #{moe_forward.2} parent=0 // loop_header
    %s25 = sphi 0, %s29
    %p26 = scmp.ge.s32.totalorder %s25, 11
    %s32 = sphi 0, %s44
    %s33 = sphi 0, %s40
    %s34 = sphi 0, %s32
    %s35 = sphi 0, %s33
    %s36 = sphi 0, %s34
    %s37 = sphi 0, %s35
    %s47 = sphi 0, %s49
    %s50 = sphi 0, %s47
    %s51 = sphi 0, %s50
    %s67 = sphi 0, %s51
    %s73 = sphi 0, %s75
    %s76 = sphi 0, %s73
    %s77 = sphi 0, %s76
    %s93 = sphi 0, %s77
    %s103 = sphi 0, %s105
    %s106 = sphi 0, %s103
    %s107 = sphi 0, %s106
    %s123 = sphi 0, %s107
    %s133 = sphi 0, %s135
    %s136 = sphi 0, %s133
    %s137 = sphi 0, %s136
    %s153 = sphi 0, %s137
    %s159 = sphi 0, %s161
    %s162 = sphi 0, %s159
    %s163 = sphi 0, %s162
    %s179 = sphi 0, %s163
  $region4: #{moe_forward.2} parent=0 // loop_header_branch
    %28 = sbr.rel (%p26) target = $region8
  $region5: #{moe_forward.2} parent=0 // loop_body
    %s30 = ssub.s32 %s25, 1
    %s31 = ssub.s32 %s25, 2
    %s38 = sadd.s32 1, %s33
    %p39 = scmp.ge.s32.totalorder %s38, 1
    %s40 = scalar_select %p39, 0, %s38
    %s41 = sadd.s32 1, %s32
    %s42 = scalar_select %p39, %s41, %s32
    %p43 = scmp.ge.s32.totalorder %s42, 9
    %s44 = scalar_select %p43, 0, %s42
    %s45 = ssub.s32 %s32, %s44
    %p46 = scmp.eq.s32.totalorder %s45, 0
    %s48 = sadd.s32 %s47, 1
    %s49 = scalar_select %p46, %s47, %s48
    %p52 = pneg %p46
    %p53 = scmp.eq.s32.totalorder %s25, 8
    %p54 = por %p52, %p53
    %p55 = scmp.ne.s32.totalorder %s47, %s50
    %p56 = scmp.eq.s32.totalorder %s25, 0
    %p57 = por %p55, %p56
    %p58 = scmp.ne.s32.totalorder %s47, %s50
    %p59 = scmp.eq.s32.totalorder %s30, 8
    %p60 = por %p58, %p59
    %p61 = scmp.ne.s32.totalorder %s50, %s51
    %p62 = scmp.eq.s32.totalorder %s30, 0
    %p63 = por %p61, %p62
    %p64 = scmp.ne.s32.totalorder %s50, %s51
    %p65 = scmp.eq.s32.totalorder %s31, 8
    %p66 = por %p64, %p65
    %p68 = scmp.ne.s32.totalorder %s51, %s67
    %p69 = scmp.eq.s32.totalorder %s31, 0
    %p70 = por %p68, %p69
    %s71 = ssub.s32 %s32, %s44
    %p72 = scmp.eq.s32.totalorder %s71, 0
    %s74 = sadd.s32 %s73, 1
    %s75 = scalar_select %p72, %s73, %s74
    %p78 = pneg %p72
    %p79 = scmp.eq.s32.totalorder %s25, 8
    %p80 = por %p78, %p79
    %p81 = scmp.ne.s32.totalorder %s73, %s76
    %p82 = scmp.eq.s32.totalorder %s25, 0
    %p83 = por %p81, %p82
    %p84 = scmp.ne.s32.totalorder %s73, %s76
    %p85 = scmp.eq.s32.totalorder %s30, 8
    %p86 = por %p84, %p85
    %p87 = scmp.ne.s32.totalorder %s76, %s77
    %p88 = scmp.eq.s32.totalorder %s30, 0
    %p89 = por %p87, %p88
    %p90 = scmp.ne.s32.totalorder %s76, %s77
    %p91 = scmp.eq.s32.totalorder %s31, 8
    %p92 = por %p90, %p91
    %p94 = scmp.ne.s32.totalorder %s77, %s93
    %p95 = scmp.eq.s32.totalorder %s31, 0
    %p96 = por %p94, %p95
    %s97 = sld [smem:[#allocation4 + %s32]]
    %s98 = sld [smem:[#allocation4 + %s44]]
    %s99 = ssub.s32 %s97, %s98
    %s100 = ssub.s32 %s33, %s40
    %s101 = sor.u32 %s99, %s100
    %p102 = scmp.eq.s32.totalorder %s101, 0
    %s104 = sadd.s32 %s103, 1
    %s105 = scalar_select %p102, %s103, %s104
    %p108 = pneg %p102
    %p109 = scmp.eq.s32.totalorder %s25, 8
    %p110 = por %p108, %p109
    %p111 = scmp.ne.s32.totalorder %s103, %s106
    %p112 = scmp.eq.s32.totalorder %s25, 0
    %p113 = por %p111, %p112
    %p114 = scmp.ne.s32.totalorder %s103, %s106
    %p115 = scmp.eq.s32.totalorder %s30, 8
    %p116 = por %p114, %p115
    %p117 = scmp.ne.s32.totalorder %s106, %s107
    %p118 = scmp.eq.s32.totalorder %s30, 0
    %p119 = por %p117, %p118
    %p120 = scmp.ne.s32.totalorder %s106, %s107
    %p121 = scmp.eq.s32.totalorder %s31, 8
    %p122 = por %p120, %p121
    %p124 = scmp.ne.s32.totalorder %s107, %s123
    %p125 = scmp.eq.s32.totalorder %s31, 0
    %p126 = por %p124, %p125
    %s127 = sld [smem:[#allocation4 + %s32]]
    %s128 = sld [smem:[#allocation4 + %s44]]
    %s129 = ssub.s32 %s127, %s128
    %s130 = ssub.s32 %s33, %s40
    %s131 = sor.u32 %s129, %s130
    %p132 = scmp.eq.s32.totalorder %s131, 0
    %s134 = sadd.s32 %s133, 1
    %s135 = scalar_select %p132, %s133, %s134
    %p138 = pneg %p132
    %p139 = scmp.eq.s32.totalorder %s25, 8
    %p140 = por %p138, %p139
    %p141 = scmp.ne.s32.totalorder %s133, %s136
    %p142 = scmp.eq.s32.totalorder %s25, 0
    %p143 = por %p141, %p142
    %p144 = scmp.ne.s32.totalorder %s133, %s136
    %p145 = scmp.eq.s32.totalorder %s30, 8
    %p146 = por %p144, %p145
    %p147 = scmp.ne.s32.totalorder %s136, %s137
    %p148 = scmp.eq.s32.totalorder %s30, 0
    %p149 = por %p147, %p148
    %p150 = scmp.ne.s32.totalorder %s136, %s137
    %p151 = scmp.eq.s32.totalorder %s31, 8
    %p152 = por %p150, %p151
    %p154 = scmp.ne.s32.totalorder %s137, %s153
    %p155 = scmp.eq.s32.totalorder %s31, 0
    %p156 = por %p154, %p155
    %s157 = ssub.s32 %s32, %s44
    %p158 = scmp.eq.s32.totalorder %s157, 0
    %s160 = sadd.s32 %s159, 1
    %s161 = scalar_select %p158, %s159, %s160
    %p164 = pneg %p158
    %p165 = scmp.eq.s32.totalorder %s25, 8
    %p166 = por %p164, %p165
    %p167 = scmp.ne.s32.totalorder %s159, %s162
    %p168 = scmp.eq.s32.totalorder %s25, 0
    %p169 = por %p167, %p168
    %p170 = scmp.ne.s32.totalorder %s159, %s162
    %p171 = scmp.eq.s32.totalorder %s30, 8
    %p172 = por %p170, %p171
    %p173 = scmp.ne.s32.totalorder %s162, %s163
    %p174 = scmp.eq.s32.totalorder %s30, 0
    %p175 = por %p173, %p174
    %p176 = scmp.ne.s32.totalorder %s162, %s163
    %p177 = scmp.eq.s32.totalorder %s31, 8
    %p178 = por %p176, %p177
    %p180 = scmp.ne.s32.totalorder %s163, %s179
    %p181 = scmp.eq.s32.totalorder %s31, 0
    %p182 = por %p180, %p181
    %p183 = scmp.le.s32.totalorder 1, %s25
    %p184 = scmp.lt.s32.totalorder %s25, 10
    %p185 = pnand %p183, %p184
    %p186 = pneg %p185
    // Predicated region
    $region9: #{moe_forward.2} parent=5 // pred_check
      _
    $region10: #{moe_forward.2} parent=5 // pred_check_branch
      %188 = sbr.rel (%p185) target = $region12
    $region11: #{moe_forward.2} parent=5 // pred_region
      %s189 = ssub.s32 %s25, 1
    $region12: #{moe_forward.2} parent=5 // pred_fallthru
      _
    %p190 = scmp.lt.s32.totalorder %s25, 9
    // Predicated region
    $region13: #{moe_forward.2} parent=5 // pred_check
      %p191 = pneg %p190
    $region14: #{moe_forward.2} parent=5 // pred_check_branch
      %193 = sbr.rel (%p191) target = $region16
    $region15: #{moe_forward.2} parent=5 // pred_region
      // Predicated region
      $region17: #{moe_forward.2} parent=15 // pred_check
        %p194 = pneg %p57
      $region18: #{moe_forward.2} parent=15 // pred_check_branch
        %196 = sbr.rel (%p194) target = $region20
      $region19: #{moe_forward.2} parent=15 // pred_region
        %s197 = smul.u32 16, %s32
        %p198 = scmp.lt.s32.totalorder %s197, 143
        %s199 = scalar_select %p198, %s197, 143
        %s200 = smul.addr %s199, 2
        %s201 = smul.addr %s200, 4
        %s202 = scalar_lea.vmem %s2, %s201
        %s203 = smul.u32 16, %s32
      $region20: #{moe_forward.2} parent=15 // pred_fallthru
        _
      // Predicated region
      $region21: #{moe_forward.2} parent=15 // pred_check
        %p204 = pneg %p83
      $region22: #{moe_forward.2} parent=15 // pred_check_branch
        %206 = sbr.rel (%p204) target = $region24
      $region23: #{moe_forward.2} parent=15 // pred_region
        %s207 = smul.u32 16, %s32
        %p208 = scmp.lt.s32.totalorder %s207, 143
        %s209 = scalar_select %p208, %s207, 143
        %s210 = smul.addr %s209, 8
        %s211 = scalar_lea.vmem %s3, %s210
        %s212 = smul.u32 16, %s32
      $region24: #{moe_forward.2} parent=15 // pred_fallthru
        _
      // Predicated region
      $region25: #{moe_forward.2} parent=15 // pred_check
        %p213 = pneg %p113
      $region26: #{moe_forward.2} parent=15 // pred_check_branch
        %215 = sbr.rel (%p213) target = $region28
      $region27: #{moe_forward.2} parent=15 // pred_region
        %s216 = sld [smem:[#allocation4 + %s32]]
        %s217 = smul.u32 4, %s33
        %p218 = scmp.lt.s32.totalorder %s216, 7
        %s219 = scalar_select %p218, %s216, 7
        %p220 = scmp.lt.s32.totalorder %s217, 3
        %s221 = scalar_select %p220, %s217, 3
        %s222 = smul.addr %s219, 128
        %s223 = sadd.s32 %s221, %s222
        %s224 = smul.addr %s223, 4
        %s225 = scalar_lea.vmem %s4, %s224
        %s226 = sld [smem:[#allocation4 + %s32]]
        %s227 = smul.u32 4, %s33
      $region28: #{moe_forward.2} parent=15 // pred_fallthru
        _
      // Predicated region
      $region29: #{moe_forward.2} parent=15 // pred_check
        %p228 = pneg %p143
      $region30: #{moe_forward.2} parent=15 // pred_check_branch
        %230 = sbr.rel (%p228) target = $region32
      $region31: #{moe_forward.2} parent=15 // pred_region
        %s231 = sld [smem:[#allocation4 + %s32]]
        %s232 = smul.u32 32, %s33
        %p233 = scmp.lt.s32.totalorder %s231, 7
        %s234 = scalar_select %p233, %s231, 7
        %p235 = scmp.lt.s32.totalorder %s232, 31
        %s236 = scalar_select %p235, %s232, 31
        %s237 = smul.addr %s236, 2
        %s238 = smul.addr %s234, 64
        %s239 = sadd.s32 %s237, %s238
        %s240 = smul.addr %s239, 4
        %s241 = scalar_lea.vmem %s5, %s240
        %s242 = sld [smem:[#allocation4 + %s32]]
        %s243 = smul.u32 32, %s33
      $region32: #{moe_forward.2} parent=15 // pred_fallthru
        _
    $region16: #{moe_forward.2} parent=5 // pred_fallthru
      _
    %p244 = scmp.le.s32.totalorder 1, %s25
    %p245 = scmp.lt.s32.totalorder %s25, 10
    %p246 = pnand %p244, %p245
    %p247 = pneg %p246
    // Predicated region
    $region33: #{moe_forward.2} parent=5 // pred_check
      _
    $region34: #{moe_forward.2} parent=5 // pred_check_branch
      %249 = sbr.rel (%p246) target = $region36
    $region35: #{moe_forward.2} parent=5 // pred_region
      %s250 = ssub.s32 %s25, 1
      %s251 = smul.u32 16, %s34
      %p252 = scmp.lt.s32.totalorder %s251, 143
      %s253 = scalar_select %p252, %s251, 143
      %s254 = smul.addr %s253, 2
      %s255 = smul.addr %s254, 4
      %s256 = scalar_lea.vmem %s2, %s255
      %p257 = pneg %p63
      %p258 = pneg %p60
      %s259 = smul.u32 16, %s34
      %p260 = scmp.lt.s32.totalorder %s259, 143
      %s261 = scalar_select %p260, %s259, 143
      %s262 = smul.addr %s261, 8
      %s263 = scalar_lea.vmem %s3, %s262
      %p264 = pneg %p89
      %p265 = pneg %p86
      %s266 = sld [smem:[#allocation4 + %s34]]
      %s267 = smul.u32 4, %s35
      %p268 = scmp.lt.s32.totalorder %s266, 7
      %s269 = scalar_select %p268, %s266, 7
      %p270 = scmp.lt.s32.totalorder %s267, 3
      %s271 = scalar_select %p270, %s267, 3
      %s272 = smul.addr %s269, 128
      %s273 = sadd.s32 %s271, %s272
      %s274 = smul.addr %s273, 4
      %s275 = scalar_lea.vmem %s4, %s274
      %p276 = pneg %p119
      %p277 = pneg %p116
      %s278 = sld [smem:[#allocation4 + %s34]]
      %s279 = smul.u32 32, %s35
      %p280 = scmp.lt.s32.totalorder %s278, 7
      %s281 = scalar_select %p280, %s278, 7
      %p282 = scmp.lt.s32.totalorder %s279, 31
      %s283 = scalar_select %p282, %s279, 31
      %s284 = smul.addr %s283, 2
      %s285 = smul.addr %s281, 64
      %s286 = sadd.s32 %s284, %s285
      %s287 = smul.addr %s286, 4
      %s288 = scalar_lea.vmem %s5, %s287
      %p289 = pneg %p149
      %p290 = pneg %p146
      %p291 = pneg %p175
      %p292 = pneg %p172
      %s293 = smul.u32 16, %s34
      %p294 = scmp.lt.s32.totalorder %s293, 143
      %s295 = scalar_select %p294, %s293, 143
      %s296 = smul.addr %s295, 2
      %s297 = smul.addr %s296, 4
      %s298 = scalar_lea.vmem %s6, %s297
      %s299 = smul.u32 16, %s34
      %p300 = scmp.lt.s32.totalorder %s299, 143
      %s301 = scalar_select %p300, %s299, 143
      %s302 = smul.addr %s301, 2
      %s303 = smul.addr %s302, 4
      %s304 = scalar_lea.vmem %s2, %s303
      %s305 = smul.u32 16, %s34
      %s306 = smul.u32 16, %s34
      %p307 = scmp.lt.s32.totalorder %s306, 143
      %s308 = scalar_select %p307, %s306, 143
      %s309 = smul.addr %s308, 8
      %s310 = scalar_lea.vmem %s3, %s309
      %s311 = smul.u32 16, %s34
      %s312 = sld [smem:[#allocation4 + %s34]]
      %s313 = smul.u32 4, %s35
      %p314 = scmp.lt.s32.totalorder %s312, 7
      %s315 = scalar_select %p314, %s312, 7
      %p316 = scmp.lt.s32.totalorder %s313, 3
      %s317 = scalar_select %p316, %s313, 3
      %s318 = smul.addr %s315, 128
      %s319 = sadd.s32 %s317, %s318
      %s320 = smul.addr %s319, 4
      %s321 = scalar_lea.vmem %s4, %s320
      %s322 = sld [smem:[#allocation4 + %s34]]
      %s323 = smul.u32 4, %s35
      %s324 = sld [smem:[#allocation4 + %s34]]
      %s325 = smul.u32 32, %s35
      %p326 = scmp.lt.s32.totalorder %s324, 7
      %s327 = scalar_select %p326, %s324, 7
      %p328 = scmp.lt.s32.totalorder %s325, 31
      %s329 = scalar_select %p328, %s325, 31
      %s330 = smul.addr %s329, 2
      %s331 = smul.addr %s327, 64
      %s332 = sadd.s32 %s330, %s331
      %s333 = smul.addr %s332, 4
      %s334 = scalar_lea.vmem %s5, %s333
      %s335 = sld [smem:[#allocation4 + %s34]]
      %s336 = smul.u32 32, %s35
      %s337 = smul.u32 16, %s34
      %p338 = scmp.lt.s32.totalorder %s337, 143
      %s339 = scalar_select %p338, %s337, 143
      %s340 = smul.addr %s339, 2
      %s341 = smul.addr %s340, 4
      %s342 = scalar_lea.vmem %s6, %s341
      %s343 = smul.u32 16, %s34
      %p344 = scmp.eq.s32.totalorder %s35, 0
      // Predicated region
      $region37: #{moe_forward.2} parent=35 // pred_check
        %p345 = pneg %p344
      $region38: #{moe_forward.2} parent=35 // pred_check_branch
        %347 = sbr.rel (%p345) target = $region40
      $region39: #{moe_forward.2} parent=35 // pred_region
        %348 = vst [vmem:[#allocation2] sm:$0xff] 0.0
        %349 = vst [vmem:[#allocation2 + $0x8] sm:$0xff] 0.0
        %350 = vst [vmem:[#allocation2 + $0x10] sm:$0xff] 0.0
        %351 = vst [vmem:[#allocation2 + $0x18] sm:$0xff] 0.0
        %352 = vst [vmem:[#allocation2 + $0x20] sm:$0xff] 0.0
        %353 = vst [vmem:[#allocation2 + $0x28] sm:$0xff] 0.0
        %354 = vst [vmem:[#allocation2 + $0x30] sm:$0xff] 0.0
        %355 = vst [vmem:[#allocation2 + $0x38] sm:$0xff] 0.0
        %356 = vst [vmem:[#allocation2 + $0x40] sm:$0xff] 0.0
        %357 = vst [vmem:[#allocation2 + $0x48] sm:$0xff] 0.0
        %358 = vst [vmem:[#allocation2 + $0x50] sm:$0xff] 0.0
        %359 = vst [vmem:[#allocation2 + $0x58] sm:$0xff] 0.0
        %360 = vst [vmem:[#allocation2 + $0x60] sm:$0xff] 0.0
        %361 = vst [vmem:[#allocation2 + $0x68] sm:$0xff] 0.0
        %362 = vst [vmem:[#allocation2 + $0x70] sm:$0xff] 0.0
        %363 = vst [vmem:[#allocation2 + $0x78] sm:$0xff] 0.0
        %364 = vst [vmem:[#allocation2 + $0x80] sm:$0xff] 0.0
        %365 = vst [vmem:[#allocation2 + $0x88] sm:$0xff] 0.0
        %366 = vst [vmem:[#allocation2 + $0x90] sm:$0xff] 0.0
        %367 = vst [vmem:[#allocation2 + $0x98] sm:$0xff] 0.0
        %368 = vst [vmem:[#allocation2 + $0xa0] sm:$0xff] 0.0
        %369 = vst [vmem:[#allocation2 + $0xa8] sm:$0xff] 0.0
        %370 = vst [vmem:[#allocation2 + $0xb0] sm:$0xff] 0.0
        %371 = vst [vmem:[#allocation2 + $0xb8] sm:$0xff] 0.0
        %372 = vst [vmem:[#allocation2 + $0xc0] sm:$0xff] 0.0
        %373 = vst [vmem:[#allocation2 + $0xc8] sm:$0xff] 0.0
        %374 = vst [vmem:[#allocation2 + $0xd0] sm:$0xff] 0.0
        %375 = vst [vmem:[#allocation2 + $0xd8] sm:$0xff] 0.0
        %376 = vst [vmem:[#allocation2 + $0xe0] sm:$0xff] 0.0
        %377 = vst [vmem:[#allocation2 + $0xe8] sm:$0xff] 0.0
        %378 = vst [vmem:[#allocation2 + $0xf0] sm:$0xff] 0.0
        %379 = vst [vmem:[#allocation2 + $0xf8] sm:$0xff] 0.0
      $region40: #{moe_forward.2} parent=35 // pred_fallthru
        _
      %s380 = sld [smem:[#allocation5 + %s34]]
      %p381 = scmp.gt.s32.totalorder %s380, 0
      // Predicated region
      $region41: #{moe_forward.2} parent=35 // pred_check
        %p382 = pneg %p381
      $region42: #{moe_forward.2} parent=35 // pred_check_branch
        %384 = sbr.rel (%p382) target = $region44
      $region43: #{moe_forward.2} parent=35 // pred_region
        %v385 = vld [vmem:[%s304] sm:$0xff]
        %v386 = vld [vmem:[%s304 + $0x8] sm:$0xff]
        %v387 = vld [vmem:[%s304 + $0x10] sm:$0xff]
        %v388 = vld [vmem:[%s304 + $0x18] sm:$0xff]
        %v389 = vld [vmem:[%s304 + $0x20] sm:$0xff]
        %v390 = vld [vmem:[%s304 + $0x28] sm:$0xff]
        %v391 = vld [vmem:[%s304 + $0x30] sm:$0xff]
        %v392 = vld [vmem:[%s304 + $0x38] sm:$0xff]
        %v393 = vld [vmem:[%s304 + $0x40] sm:$0xff]
        %v394 = vld [vmem:[%s304 + $0x48] sm:$0xff]
        %v395 = vld [vmem:[%s304 + $0x50] sm:$0xff]
        %v396 = vld [vmem:[%s304 + $0x58] sm:$0xff]
        %v397 = vld [vmem:[%s304 + $0x60] sm:$0xff]
        %v398 = vld [vmem:[%s304 + $0x68] sm:$0xff]
        %v399 = vld [vmem:[%s304 + $0x70] sm:$0xff]
        %v400 = vld [vmem:[%s304 + $0x78] sm:$0xff]
        %v401 = vld [vmem:[%s321] sm:$0xff]
        %v402 = vld [vmem:[%s321 + $0x8] sm:$0xff]
        %v403 = vld [vmem:[%s321 + $0x10] sm:$0xff]
        %v404 = vld [vmem:[%s321 + $0x18] sm:$0xff]
        %v405 = vld [vmem:[%s321 + $0x20] sm:$0xff]
        %v406 = vld [vmem:[%s321 + $0x28] sm:$0xff]
        %v407 = vld [vmem:[%s321 + $0x30] sm:$0xff]
        %v408 = vld [vmem:[%s321 + $0x38] sm:$0xff]
        %v409 = vld [vmem:[%s321 + $0x40] sm:$0xff]
        %v410 = vld [vmem:[%s321 + $0x48] sm:$0xff]
        %v411 = vld [vmem:[%s321 + $0x50] sm:$0xff]
        %v412 = vld [vmem:[%s321 + $0x58] sm:$0xff]
        %v413 = vld [vmem:[%s321 + $0x60] sm:$0xff]
        %v414 = vld [vmem:[%s321 + $0x68] sm:$0xff]
        %v415 = vld [vmem:[%s321 + $0x70] sm:$0xff]
        %v416 = vld [vmem:[%s321 + $0x78] sm:$0xff]
        %v417 = vld [vmem:[%s321 + $0x80] sm:$0xff]
        %v418 = vld [vmem:[%s321 + $0x88] sm:$0xff]
        %v419 = vld [vmem:[%s321 + $0x90] sm:$0xff]
        %v420 = vld [vmem:[%s321 + $0x98] sm:$0xff]
        %v421 = vld [vmem:[%s321 + $0xa0] sm:$0xff]
        %v422 = vld [vmem:[%s321 + $0xa8] sm:$0xff]
        %v423 = vld [vmem:[%s321 + $0xb0] sm:$0xff]
        %v424 = vld [vmem:[%s321 + $0xb8] sm:$0xff]
        %v425 = vld [vmem:[%s321 + $0xc0] sm:$0xff]
        %v426 = vld [vmem:[%s321 + $0xc8] sm:$0xff]
        %v427 = vld [vmem:[%s321 + $0xd0] sm:$0xff]
        %v428 = vld [vmem:[%s321 + $0xd8] sm:$0xff]
        %v429 = vld [vmem:[%s321 + $0xe0] sm:$0xff]
        %v430 = vld [vmem:[%s321 + $0xe8] sm:$0xff]
        %v431 = vld [vmem:[%s321 + $0xf0] sm:$0xff]
        %v432 = vld [vmem:[%s321 + $0xf8] sm:$0xff]
        %v433 = vld [vmem:[%s321 + $0x100] sm:$0xff]
        %v434 = vld [vmem:[%s321 + $0x108] sm:$0xff]
        %v435 = vld [vmem:[%s321 + $0x110] sm:$0xff]
        %v436 = vld [vmem:[%s321 + $0x118] sm:$0xff]
        %v437 = vld [vmem:[%s321 + $0x120] sm:$0xff]
        %v438 = vld [vmem:[%s321 + $0x128] sm:$0xff]
        %v439 = vld [vmem:[%s321 + $0x130] sm:$0xff]
        %v440 = vld [vmem:[%s321 + $0x138] sm:$0xff]
        %v441 = vld [vmem:[%s321 + $0x140] sm:$0xff]
        %v442 = vld [vmem:[%s321 + $0x148] sm:$0xff]
        %v443 = vld [vmem:[%s321 + $0x150] sm:$0xff]
        %v444 = vld [vmem:[%s321 + $0x158] sm:$0xff]
        %v445 = vld [vmem:[%s321 + $0x160] sm:$0xff]
        %v446 = vld [vmem:[%s321 + $0x168] sm:$0xff]
        %v447 = vld [vmem:[%s321 + $0x170] sm:$0xff]
        %v448 = vld [vmem:[%s321 + $0x178] sm:$0xff]
        %v449 = vld [vmem:[%s321 + $0x180] sm:$0xff]
        %v450 = vld [vmem:[%s321 + $0x188] sm:$0xff]
        %v451 = vld [vmem:[%s321 + $0x190] sm:$0xff]
        %v452 = vld [vmem:[%s321 + $0x198] sm:$0xff]
        %v453 = vld [vmem:[%s321 + $0x1a0] sm:$0xff]
        %v454 = vld [vmem:[%s321 + $0x1a8] sm:$0xff]
        %v455 = vld [vmem:[%s321 + $0x1b0] sm:$0xff]
        %v456 = vld [vmem:[%s321 + $0x1b8] sm:$0xff]
        %v457 = vld [vmem:[%s321 + $0x1c0] sm:$0xff]
        %v458 = vld [vmem:[%s321 + $0x1c8] sm:$0xff]
        %v459 = vld [vmem:[%s321 + $0x1d0] sm:$0xff]
        %v460 = vld [vmem:[%s321 + $0x1d8] sm:$0xff]
        %v461 = vld [vmem:[%s321 + $0x1e0] sm:$0xff]
        %v462 = vld [vmem:[%s321 + $0x1e8] sm:$0xff]
        %v463 = vld [vmem:[%s321 + $0x1f0] sm:$0xff]
        %v464 = vld [vmem:[%s321 + $0x1f8] sm:$0xff]
        %v481 = vunpack.c.l.b16 %v385
        %v482 = vunpack.c.h.b16 %v385
        %v483 = vunpack.c.l.b16 %v386
        %v484 = vunpack.c.h.b16 %v386
        %v485 = vunpack.c.l.b16 %v387
        %v486 = vunpack.c.h.b16 %v387
        %v487 = vunpack.c.l.b16 %v388
        %v488 = vunpack.c.h.b16 %v388
        %v489 = vunpack.c.l.b16 %v389
        %v490 = vunpack.c.h.b16 %v389
        %v491 = vunpack.c.l.b16 %v390
        %v492 = vunpack.c.h.b16 %v390
        %v493 = vunpack.c.l.b16 %v391
        %v494 = vunpack.c.h.b16 %v391
        %v495 = vunpack.c.l.b16 %v392
        %v496 = vunpack.c.h.b16 %v392
        %v497 = vunpack.c.l.b16 %v393
        %v498 = vunpack.c.h.b16 %v393
        %v499 = vunpack.c.l.b16 %v394
        %v500 = vunpack.c.h.b16 %v394
        %v501 = vunpack.c.l.b16 %v395
        %v502 = vunpack.c.h.b16 %v395
        %v503 = vunpack.c.l.b16 %v396
        %v504 = vunpack.c.h.b16 %v396
        %v505 = vunpack.c.l.b16 %v397
        %v506 = vunpack.c.h.b16 %v397
        %v507 = vunpack.c.l.b16 %v398
        %v508 = vunpack.c.h.b16 %v398
        %v509 = vunpack.c.l.b16 %v399
        %v510 = vunpack.c.h.b16 %v399
        %v511 = vunpack.c.l.b16 %v400
        %v512 = vunpack.c.h.b16 %v400
        %v513 = vpack.c.b16 %v483, %v481
        %v514 = vpack.c.b16 %v484, %v482
        %v515 = vpack.c.b16 %v487, %v485
        %v516 = vpack.c.b16 %v488, %v486
        %v517 = vpack.c.b16 %v491, %v489
        %v518 = vpack.c.b16 %v492, %v490
        %v519 = vpack.c.b16 %v495, %v493
        %v520 = vpack.c.b16 %v496, %v494
        %v521 = vpack.c.b16 %v499, %v497
        %v522 = vpack.c.b16 %v500, %v498
        %v523 = vpack.c.b16 %v503, %v501
        %v524 = vpack.c.b16 %v504, %v502
        %v525 = vpack.c.b16 %v507, %v505
        %v526 = vpack.c.b16 %v508, %v506
        %v527 = vpack.c.b16 %v511, %v509
        %v528 = vpack.c.b16 %v512, %v510
        %v609 = vunpack.c.l.b16 %v401
        %v610 = vunpack.c.h.b16 %v401
        %v611 = vunpack.c.l.b16 %v402
        %v612 = vunpack.c.h.b16 %v402
        %v613 = vunpack.c.l.b16 %v403
        %v614 = vunpack.c.h.b16 %v403
        %v615 = vunpack.c.l.b16 %v404
        %v616 = vunpack.c.h.b16 %v404
        %v617 = vunpack.c.l.b16 %v405
        %v618 = vunpack.c.h.b16 %v405
        %v619 = vunpack.c.l.b16 %v406
        %v620 = vunpack.c.h.b16 %v406
        %v621 = vunpack.c.l.b16 %v407
        %v622 = vunpack.c.h.b16 %v407
        %v623 = vunpack.c.l.b16 %v408
        %v624 = vunpack.c.h.b16 %v408
        %v625 = vunpack.c.l.b16 %v409
        %v626 = vunpack.c.h.b16 %v409
        %v627 = vunpack.c.l.b16 %v410
        %v628 = vunpack.c.h.b16 %v410
        %v629 = vunpack.c.l.b16 %v411
        %v630 = vunpack.c.h.b16 %v411
        %v631 = vunpack.c.l.b16 %v412
        %v632 = vunpack.c.h.b16 %v412
        %v633 = vunpack.c.l.b16 %v413
        %v634 = vunpack.c.h.b16 %v413
        %v635 = vunpack.c.l.b16 %v414
        %v636 = vunpack.c.h.b16 %v414
        %v637 = vunpack.c.l.b16 %v415
        %v638 = vunpack.c.h.b16 %v415
        %v639 = vunpack.c.l.b16 %v416
        %v640 = vunpack.c.h.b16 %v416
        %v641 = vunpack.c.l.b16 %v417
        %v642 = vunpack.c.h.b16 %v417
        %v643 = vunpack.c.l.b16 %v418
        %v644 = vunpack.c.h.b16 %v418
        %v645 = vunpack.c.l.b16 %v419
        %v646 = vunpack.c.h.b16 %v419
        %v647 = vunpack.c.l.b16 %v420
        %v648 = vunpack.c.h.b16 %v420
        %v649 = vunpack.c.l.b16 %v421
        %v650 = vunpack.c.h.b16 %v421
        %v651 = vunpack.c.l.b16 %v422
        %v652 = vunpack.c.h.b16 %v422
        %v653 = vunpack.c.l.b16 %v423
        %v654 = vunpack.c.h.b16 %v423
        %v655 = vunpack.c.l.b16 %v424
        %v656 = vunpack.c.h.b16 %v424
        %v657 = vunpack.c.l.b16 %v425
        %v658 = vunpack.c.h.b16 %v425
        %v659 = vunpack.c.l.b16 %v426
        %v660 = vunpack.c.h.b16 %v426
        %v661 = vunpack.c.l.b16 %v427
        %v662 = vunpack.c.h.b16 %v427
        %v663 = vunpack.c.l.b16 %v428
        %v664 = vunpack.c.h.b16 %v428
        %v665 = vunpack.c.l.b16 %v429
        %v666 = vunpack.c.h.b16 %v429
        %v667 = vunpack.c.l.b16 %v430
        %v668 = vunpack.c.h.b16 %v430
        %v669 = vunpack.c.l.b16 %v431
        %v670 = vunpack.c.h.b16 %v431
        %v671 = vunpack.c.l.b16 %v432
        %v672 = vunpack.c.h.b16 %v432
        %v673 = vunpack.c.l.b16 %v433
        %v674 = vunpack.c.h.b16 %v433
        %v675 = vunpack.c.l.b16 %v434
        %v676 = vunpack.c.h.b16 %v434
        %v677 = vunpack.c.l.b16 %v435
        %v678 = vunpack.c.h.b16 %v435
        %v679 = vunpack.c.l.b16 %v436
        %v680 = vunpack.c.h.b16 %v436
        %v681 = vunpack.c.l.b16 %v437
        %v682 = vunpack.c.h.b16 %v437
        %v683 = vunpack.c.l.b16 %v438
        %v684 = vunpack.c.h.b16 %v438
        %v685 = vunpack.c.l.b16 %v439
        %v686 = vunpack.c.h.b16 %v439
        %v687 = vunpack.c.l.b16 %v440
        %v688 = vunpack.c.h.b16 %v440
        %v689 = vunpack.c.l.b16 %v441
        %v690 = vunpack.c.h.b16 %v441
        %v691 = vunpack.c.l.b16 %v442
        %v692 = vunpack.c.h.b16 %v442
        %v693 = vunpack.c.l.b16 %v443
        %v694 = vunpack.c.h.b16 %v443
        %v695 = vunpack.c.l.b16 %v444
        %v696 = vunpack.c.h.b16 %v444
        %v697 = vunpack.c.l.b16 %v445
        %v698 = vunpack.c.h.b16 %v445
        %v699 = vunpack.c.l.b16 %v446
        %v700 = vunpack.c.h.b16 %v446
        %v701 = vunpack.c.l.b16 %v447
        %v702 = vunpack.c.h.b16 %v447
        %v703 = vunpack.c.l.b16 %v448
        %v704 = vunpack.c.h.b16 %v448
        %v705 = vunpack.c.l.b16 %v449
        %v706 = vunpack.c.h.b16 %v449
        %v707 = vunpack.c.l.b16 %v450
        %v708 = vunpack.c.h.b16 %v450
        %v709 = vunpack.c.l.b16 %v451
        %v710 = vunpack.c.h.b16 %v451
        %v711 = vunpack.c.l.b16 %v452
        %v712 = vunpack.c.h.b16 %v452
        %v713 = vunpack.c.l.b16 %v453
        %v714 = vunpack.c.h.b16 %v453
        %v715 = vunpack.c.l.b16 %v454
        %v716 = vunpack.c.h.b16 %v454
        %v717 = vunpack.c.l.b16 %v455
        %v718 = vunpack.c.h.b16 %v455
        %v719 = vunpack.c.l.b16 %v456
        %v720 = vunpack.c.h.b16 %v456
        %v721 = vunpack.c.l.b16 %v457
        %v722 = vunpack.c.h.b16 %v457
        %v723 = vunpack.c.l.b16 %v458
        %v724 = vunpack.c.h.b16 %v458
        %v725 = vunpack.c.l.b16 %v459
        %v726 = vunpack.c.h.b16 %v459
        %v727 = vunpack.c.l.b16 %v460
        %v728 = vunpack.c.h.b16 %v460
        %v729 = vunpack.c.l.b16 %v461
        %v730 = vunpack.c.h.b16 %v461
        %v731 = vunpack.c.l.b16 %v462
        %v732 = vunpack.c.h.b16 %v462
        %v733 = vunpack.c.l.b16 %v463
        %v734 = vunpack.c.h.b16 %v463
        %v735 = vunpack.c.l.b16 %v464
        %v736 = vunpack.c.h.b16 %v464
        %v737 = vpack.c.b16 %v613, %v609
        %v738 = vpack.c.b16 %v614, %v610
        %v739 = vpack.c.b16 %v615, %v611
        %v740 = vpack.c.b16 %v616, %v612
        %v741 = vpack.c.b16 %v621, %v617
        %v742 = vpack.c.b16 %v622, %v618
        %v743 = vpack.c.b16 %v623, %v619
        %v744 = vpack.c.b16 %v624, %v620
        %v745 = vpack.c.b16 %v629, %v625
        %v746 = vpack.c.b16 %v630, %v626
        %v747 = vpack.c.b16 %v631, %v627
        %v748 = vpack.c.b16 %v632, %v628
        %v749 = vpack.c.b16 %v637, %v633
        %v750 = vpack.c.b16 %v638, %v634
        %v751 = vpack.c.b16 %v639, %v635
        %v752 = vpack.c.b16 %v640, %v636
        %v753 = vpack.c.b16 %v645, %v641
        %v754 = vpack.c.b16 %v646, %v642
        %v755 = vpack.c.b16 %v647, %v643
        %v756 = vpack.c.b16 %v648, %v644
        %v757 = vpack.c.b16 %v653, %v649
        %v758 = vpack.c.b16 %v654, %v650
        %v759 = vpack.c.b16 %v655, %v651
        %v760 = vpack.c.b16 %v656, %v652
        %v761 = vpack.c.b16 %v661, %v657
        %v762 = vpack.c.b16 %v662, %v658
        %v763 = vpack.c.b16 %v663, %v659
        %v764 = vpack.c.b16 %v664, %v660
        %v765 = vpack.c.b16 %v669, %v665
        %v766 = vpack.c.b16 %v670, %v666
        %v767 = vpack.c.b16 %v671, %v667
        %v768 = vpack.c.b16 %v672, %v668
        %v769 = vpack.c.b16 %v677, %v673
        %v770 = vpack.c.b16 %v678, %v674
        %v771 = vpack.c.b16 %v679, %v675
        %v772 = vpack.c.b16 %v680, %v676
        %v773 = vpack.c.b16 %v685, %v681
        %v774 = vpack.c.b16 %v686, %v682
        %v775 = vpack.c.b16 %v687, %v683
        %v776 = vpack.c.b16 %v688, %v684
        %v777 = vpack.c.b16 %v693, %v689
        %v778 = vpack.c.b16 %v694, %v690
        %v779 = vpack.c.b16 %v695, %v691
        %v780 = vpack.c.b16 %v696, %v692
        %v781 = vpack.c.b16 %v701, %v697
        %v782 = vpack.c.b16 %v702, %v698
        %v783 = vpack.c.b16 %v703, %v699
        %v784 = vpack.c.b16 %v704, %v700
        %v785 = vpack.c.b16 %v709, %v705
        %v786 = vpack.c.b16 %v710, %v706
        %v787 = vpack.c.b16 %v711, %v707
        %v788 = vpack.c.b16 %v712, %v708
        %v789 = vpack.c.b16 %v717, %v713
        %v790 = vpack.c.b16 %v718, %v714
        %v791 = vpack.c.b16 %v719, %v715
        %v792 = vpack.c.b16 %v720, %v716
        %v793 = vpack.c.b16 %v725, %v721
        %v794 = vpack.c.b16 %v726, %v722
        %v795 = vpack.c.b16 %v727, %v723
        %v796 = vpack.c.b16 %v728, %v724
        %v797 = vpack.c.b16 %v733, %v729
        %v798 = vpack.c.b16 %v734, %v730
        %v799 = vpack.c.b16 %v735, %v731
        %v800 = vpack.c.b16 %v736, %v732
        %865 = vmatpush.bf16.msra.mxu0 %v765
        %866 = vmatpush.bf16.msra.mxu0 %v761
        %867 = vmatpush.bf16.msra.mxu0 %v757
        %868 = vmatpush.bf16.msra.mxu0 %v753
        %869 = vmatpush.bf16.msra.mxu0 %v749
        %870 = vmatpush.bf16.msra.mxu0 %v745
        %871 = vmatpush.bf16.msra.mxu0 %v741
        %872 = vmatpush.bf16.msra.mxu0 %v737
        %873 = vmatmul.bf16.gmra.mxu0 %v513
        %v874 = vpop.f32.mrf.mxu0
        %v875 = vadd.f32 0.0, %v874
        %v876 = vpop.f32.mrf.mxu0
        %v877 = vadd.f32 0.0, %v876
        %878 = vmatmul.bf16.gmra.mxu0 %v515
        %v879 = vpop.f32.mrf.mxu0
        %v880 = vadd.f32 0.0, %v879
        %v881 = vpop.f32.mrf.mxu0
        %v882 = vadd.f32 0.0, %v881
        %883 = vmatmul.bf16.gmra.mxu0 %v517
        %v884 = vpop.f32.mrf.mxu0
        %v885 = vadd.f32 0.0, %v884
        %v886 = vpop.f32.mrf.mxu0
        %v887 = vadd.f32 0.0, %v886
        %888 = vmatmul.bf16.gmra.mxu0 %v519
        %v889 = vpop.f32.mrf.mxu0
        %v890 = vadd.f32 0.0, %v889
        %v891 = vpop.f32.mrf.mxu0
        %v892 = vadd.f32 0.0, %v891
        %893 = vmatmul.bf16.gmra.mxu0 %v521
        %v894 = vpop.f32.mrf.mxu0
        %v895 = vadd.f32 0.0, %v894
        %v896 = vpop.f32.mrf.mxu0
        %v897 = vadd.f32 0.0, %v896
        %898 = vmatmul.bf16.gmra.mxu0 %v523
        %v899 = vpop.f32.mrf.mxu0
        %v900 = vadd.f32 0.0, %v899
        %v901 = vpop.f32.mrf.mxu0
        %v902 = vadd.f32 0.0, %v901
        %903 = vmatmul.bf16.gmra.mxu0 %v525
        %v904 = vpop.f32.mrf.mxu0
        %v905 = vadd.f32 0.0, %v904
        %v906 = vpop.f32.mrf.mxu0
        %v907 = vadd.f32 0.0, %v906
        %908 = vmatmul.bf16.gmra.mxu0 %v527
        %v909 = vpop.f32.mrf.mxu0
        %v910 = vadd.f32 0.0, %v909
        %v911 = vpop.f32.mrf.mxu0
        %v912 = vadd.f32 0.0, %v911
        %913 = vdwg.mxu0
        %914 = vmatpush.bf16.msra.mxu0 %v797
        %915 = vmatpush.bf16.msra.mxu0 %v793
        %916 = vmatpush.bf16.msra.mxu0 %v789
        %917 = vmatpush.bf16.msra.mxu0 %v785
        %918 = vmatpush.bf16.msra.mxu0 %v781
        %919 = vmatpush.bf16.msra.mxu0 %v777
        %920 = vmatpush.bf16.msra.mxu0 %v773
        %921 = vmatpush.bf16.msra.mxu0 %v769
        %922 = vmatmul.bf16.gmra.mxu0 %v514
        %v923 = vpop.f32.mrf.mxu0
        %v924 = vadd.f32 %v875, %v923
        %v925 = vpop.f32.mrf.mxu0
        %v926 = vadd.f32 %v877, %v925
        %927 = vmatmul.bf16.gmra.mxu0 %v516
        %v928 = vpop.f32.mrf.mxu0
        %v929 = vadd.f32 %v880, %v928
        %v930 = vpop.f32.mrf.mxu0
        %v931 = vadd.f32 %v882, %v930
        %932 = vmatmul.bf16.gmra.mxu0 %v518
        %v933 = vpop.f32.mrf.mxu0
        %v934 = vadd.f32 %v885, %v933
        %v935 = vpop.f32.mrf.mxu0
        %v936 = vadd.f32 %v887, %v935
        %937 = vmatmul.bf16.gmra.mxu0 %v520
        %v938 = vpop.f32.mrf.mxu0
        %v939 = vadd.f32 %v890, %v938
        %v940 = vpop.f32.mrf.mxu0
        %v941 = vadd.f32 %v892, %v940
        %942 = vmatmul.bf16.gmra.mxu0 %v522
        %v943 = vpop.f32.mrf.mxu0
        %v944 = vadd.f32 %v895, %v943
        %v945 = vpop.f32.mrf.mxu0
        %v946 = vadd.f32 %v897, %v945
        %947 = vmatmul.bf16.gmra.mxu0 %v524
        %v948 = vpop.f32.mrf.mxu0
        %v949 = vadd.f32 %v900, %v948
        %v950 = vpop.f32.mrf.mxu0
        %v951 = vadd.f32 %v902, %v950
        %952 = vmatmul.bf16.gmra.mxu0 %v526
        %v953 = vpop.f32.mrf.mxu0
        %v954 = vadd.f32 %v905, %v953
        %v955 = vpop.f32.mrf.mxu0
        %v956 = vadd.f32 %v907, %v955
        %957 = vmatmul.bf16.gmra.mxu0 %v528
        %v958 = vpop.f32.mrf.mxu0
        %v959 = vadd.f32 %v910, %v958
        %v960 = vpop.f32.mrf.mxu0
        %v961 = vadd.f32 %v912, %v960
        %962 = vdwg.mxu0
        %963 = vmatpush.bf16.msra.mxu0 %v766
        %964 = vmatpush.bf16.msra.mxu0 %v762
        %965 = vmatpush.bf16.msra.mxu0 %v758
        %966 = vmatpush.bf16.msra.mxu0 %v754
        %967 = vmatpush.bf16.msra.mxu0 %v750
        %968 = vmatpush.bf16.msra.mxu0 %v746
        %969 = vmatpush.bf16.msra.mxu0 %v742
        %970 = vmatpush.bf16.msra.mxu0 %v738
        %971 = vmatmul.bf16.gmra.mxu0 %v513
        %v972 = vpop.f32.mrf.mxu0
        %v973 = vadd.f32 0.0, %v972
        %v974 = vpop.f32.mrf.mxu0
        %v975 = vadd.f32 0.0, %v974
        %976 = vmatmul.bf16.gmra.mxu0 %v515
        %v977 = vpop.f32.mrf.mxu0
        %v978 = vadd.f32 0.0, %v977
        %v979 = vpop.f32.mrf.mxu0
        %v980 = vadd.f32 0.0, %v979
        %981 = vmatmul.bf16.gmra.mxu0 %v517
        %v982 = vpop.f32.mrf.mxu0
        %v983 = vadd.f32 0.0, %v982
        %v984 = vpop.f32.mrf.mxu0
        %v985 = vadd.f32 0.0, %v984
        %986 = vmatmul.bf16.gmra.mxu0 %v519
        %v987 = vpop.f32.mrf.mxu0
        %v988 = vadd.f32 0.0, %v987
        %v989 = vpop.f32.mrf.mxu0
        %v990 = vadd.f32 0.0, %v989
        %991 = vmatmul.bf16.gmra.mxu0 %v521
        %v992 = vpop.f32.mrf.mxu0
        %v993 = vadd.f32 0.0, %v992
        %v994 = vpop.f32.mrf.mxu0
        %v995 = vadd.f32 0.0, %v994
        %996 = vmatmul.bf16.gmra.mxu0 %v523
        %v997 = vpop.f32.mrf.mxu0
        %v998 = vadd.f32 0.0, %v997
        %v999 = vpop.f32.mrf.mxu0
        %v1000 = vadd.f32 0.0, %v999
        %1001 = vmatmul.bf16.gmra.mxu0 %v525
        %v1002 = vpop.f32.mrf.mxu0
        %v1003 = vadd.f32 0.0, %v1002
        %v1004 = vpop.f32.mrf.mxu0
        %v1005 = vadd.f32 0.0, %v1004
        %1006 = vmatmul.bf16.gmra.mxu0 %v527
        %v1007 = vpop.f32.mrf.mxu0
        %v1008 = vadd.f32 0.0, %v1007
        %v1009 = vpop.f32.mrf.mxu0
        %v1010 = vadd.f32 0.0, %v1009
        %1011 = vdwg.mxu0
        %1012 = vmatpush.bf16.msra.mxu0 %v798
        %1013 = vmatpush.bf16.msra.mxu0 %v794
        %1014 = vmatpush.bf16.msra.mxu0 %v790
        %1015 = vmatpush.bf16.msra.mxu0 %v786
        %1016 = vmatpush.bf16.msra.mxu0 %v782
        %1017 = vmatpush.bf16.msra.mxu0 %v778
        %1018 = vmatpush.bf16.msra.mxu0 %v774
        %1019 = vmatpush.bf16.msra.mxu0 %v770
        %1020 = vmatmul.bf16.gmra.mxu0 %v514
        %v1021 = vpop.f32.mrf.mxu0
        %v1022 = vadd.f32 %v973, %v1021
        %v1023 = vpop.f32.mrf.mxu0
        %v1024 = vadd.f32 %v975, %v1023
        %1025 = vmatmul.bf16.gmra.mxu0 %v516
        %v1026 = vpop.f32.mrf.mxu0
        %v1027 = vadd.f32 %v978, %v1026
        %v1028 = vpop.f32.mrf.mxu0
        %v1029 = vadd.f32 %v980, %v1028
        %1030 = vmatmul.bf16.gmra.mxu0 %v518
        %v1031 = vpop.f32.mrf.mxu0
        %v1032 = vadd.f32 %v983, %v1031
        %v1033 = vpop.f32.mrf.mxu0
        %v1034 = vadd.f32 %v985, %v1033
        %1035 = vmatmul.bf16.gmra.mxu0 %v520
        %v1036 = vpop.f32.mrf.mxu0
        %v1037 = vadd.f32 %v988, %v1036
        %v1038 = vpop.f32.mrf.mxu0
        %v1039 = vadd.f32 %v990, %v1038
        %1040 = vmatmul.bf16.gmra.mxu0 %v522
        %v1041 = vpop.f32.mrf.mxu0
        %v1042 = vadd.f32 %v993, %v1041
        %v1043 = vpop.f32.mrf.mxu0
        %v1044 = vadd.f32 %v995, %v1043
        %1045 = vmatmul.bf16.gmra.mxu0 %v524
        %v1046 = vpop.f32.mrf.mxu0
        %v1047 = vadd.f32 %v998, %v1046
        %v1048 = vpop.f32.mrf.mxu0
        %v1049 = vadd.f32 %v1000, %v1048
        %1050 = vmatmul.bf16.gmra.mxu0 %v526
        %v1051 = vpop.f32.mrf.mxu0
        %v1052 = vadd.f32 %v1003, %v1051
        %v1053 = vpop.f32.mrf.mxu0
        %v1054 = vadd.f32 %v1005, %v1053
        %1055 = vmatmul.bf16.gmra.mxu0 %v528
        %v1056 = vpop.f32.mrf.mxu0
        %v1057 = vadd.f32 %v1008, %v1056
        %v1058 = vpop.f32.mrf.mxu0
        %v1059 = vadd.f32 %v1010, %v1058
        %1060 = vdwg.mxu0
        %1061 = vmatpush.bf16.msra.mxu0 %v767
        %1062 = vmatpush.bf16.msra.mxu0 %v763
        %1063 = vmatpush.bf16.msra.mxu0 %v759
        %1064 = vmatpush.bf16.msra.mxu0 %v755
        %1065 = vmatpush.bf16.msra.mxu0 %v751
        %1066 = vmatpush.bf16.msra.mxu0 %v747
        %1067 = vmatpush.bf16.msra.mxu0 %v743
        %1068 = vmatpush.bf16.msra.mxu0 %v739
        %1069 = vmatmul.bf16.gmra.mxu0 %v513
        %v1070 = vpop.f32.mrf.mxu0
        %v1071 = vadd.f32 0.0, %v1070
        %v1072 = vpop.f32.mrf.mxu0
        %v1073 = vadd.f32 0.0, %v1072
        %1074 = vmatmul.bf16.gmra.mxu0 %v515
        %v1075 = vpop.f32.mrf.mxu0
        %v1076 = vadd.f32 0.0, %v1075
        %v1077 = vpop.f32.mrf.mxu0
        %v1078 = vadd.f32 0.0, %v1077
        %1079 = vmatmul.bf16.gmra.mxu0 %v517
        %v1080 = vpop.f32.mrf.mxu0
        %v1081 = vadd.f32 0.0, %v1080
        %v1082 = vpop.f32.mrf.mxu0
        %v1083 = vadd.f32 0.0, %v1082
        %1084 = vmatmul.bf16.gmra.mxu0 %v519
        %v1085 = vpop.f32.mrf.mxu0
        %v1086 = vadd.f32 0.0, %v1085
        %v1087 = vpop.f32.mrf.mxu0
        %v1088 = vadd.f32 0.0, %v1087
        %1089 = vmatmul.bf16.gmra.mxu0 %v521
        %v1090 = vpop.f32.mrf.mxu0
        %v1091 = vadd.f32 0.0, %v1090
        %v1092 = vpop.f32.mrf.mxu0
        %v1093 = vadd.f32 0.0, %v1092
        %1094 = vmatmul.bf16.gmra.mxu0 %v523
        %v1095 = vpop.f32.mrf.mxu0
        %v1096 = vadd.f32 0.0, %v1095
        %v1097 = vpop.f32.mrf.mxu0
        %v1098 = vadd.f32 0.0, %v1097
        %1099 = vmatmul.bf16.gmra.mxu0 %v525
        %v1100 = vpop.f32.mrf.mxu0
        %v1101 = vadd.f32 0.0, %v1100
        %v1102 = vpop.f32.mrf.mxu0
        %v1103 = vadd.f32 0.0, %v1102
        %1104 = vmatmul.bf16.gmra.mxu0 %v527
        %v1105 = vpop.f32.mrf.mxu0
        %v1106 = vadd.f32 0.0, %v1105
        %v1107 = vpop.f32.mrf.mxu0
        %v1108 = vadd.f32 0.0, %v1107
        %1109 = vdwg.mxu0
        %1110 = vmatpush.bf16.msra.mxu0 %v799
        %1111 = vmatpush.bf16.msra.mxu0 %v795
        %1112 = vmatpush.bf16.msra.mxu0 %v791
        %1113 = vmatpush.bf16.msra.mxu0 %v787
        %1114 = vmatpush.bf16.msra.mxu0 %v783
        %1115 = vmatpush.bf16.msra.mxu0 %v779
        %1116 = vmatpush.bf16.msra.mxu0 %v775
        %1117 = vmatpush.bf16.msra.mxu0 %v771
        %1118 = vmatmul.bf16.gmra.mxu0 %v514
        %v1119 = vpop.f32.mrf.mxu0
        %v1120 = vadd.f32 %v1071, %v1119
        %v1121 = vpop.f32.mrf.mxu0
        %v1122 = vadd.f32 %v1073, %v1121
        %1123 = vmatmul.bf16.gmra.mxu0 %v516
        %v1124 = vpop.f32.mrf.mxu0
        %v1125 = vadd.f32 %v1076, %v1124
        %v1126 = vpop.f32.mrf.mxu0
        %v1127 = vadd.f32 %v1078, %v1126
        %1128 = vmatmul.bf16.gmra.mxu0 %v518
        %v1129 = vpop.f32.mrf.mxu0
        %v1130 = vadd.f32 %v1081, %v1129
        %v1131 = vpop.f32.mrf.mxu0
        %v1132 = vadd.f32 %v1083, %v1131
        %1133 = vmatmul.bf16.gmra.mxu0 %v520
        %v1134 = vpop.f32.mrf.mxu0
        %v1135 = vadd.f32 %v1086, %v1134
        %v1136 = vpop.f32.mrf.mxu0
        %v1137 = vadd.f32 %v1088, %v1136
        %1138 = vmatmul.bf16.gmra.mxu0 %v522
        %v1139 = vpop.f32.mrf.mxu0
        %v1140 = vadd.f32 %v1091, %v1139
        %v1141 = vpop.f32.mrf.mxu0
        %v1142 = vadd.f32 %v1093, %v1141
        %1143 = vmatmul.bf16.gmra.mxu0 %v524
        %v1144 = vpop.f32.mrf.mxu0
        %v1145 = vadd.f32 %v1096, %v1144
        %v1146 = vpop.f32.mrf.mxu0
        %v1147 = vadd.f32 %v1098, %v1146
        %1148 = vmatmul.bf16.gmra.mxu0 %v526
        %v1149 = vpop.f32.mrf.mxu0
        %v1150 = vadd.f32 %v1101, %v1149
        %v1151 = vpop.f32.mrf.mxu0
        %v1152 = vadd.f32 %v1103, %v1151
        %1153 = vmatmul.bf16.gmra.mxu0 %v528
        %v1154 = vpop.f32.mrf.mxu0
        %v1155 = vadd.f32 %v1106, %v1154
        %v1156 = vpop.f32.mrf.mxu0
        %v1157 = vadd.f32 %v1108, %v1156
        %1158 = vdwg.mxu0
        %1159 = vmatpush.bf16.msra.mxu0 %v768
        %1160 = vmatpush.bf16.msra.mxu0 %v764
        %1161 = vmatpush.bf16.msra.mxu0 %v760
        %1162 = vmatpush.bf16.msra.mxu0 %v756
        %1163 = vmatpush.bf16.msra.mxu0 %v752
        %1164 = vmatpush.bf16.msra.mxu0 %v748
        %1165 = vmatpush.bf16.msra.mxu0 %v744
        %1166 = vmatpush.bf16.msra.mxu0 %v740
        %1167 = vmatmul.bf16.gmra.mxu0 %v513
        %v1168 = vpop.f32.mrf.mxu0
        %v1169 = vadd.f32 0.0, %v1168
        %v1170 = vpop.f32.mrf.mxu0
        %v1171 = vadd.f32 0.0, %v1170
        %1172 = vmatmul.bf16.gmra.mxu0 %v515
        %v1173 = vpop.f32.mrf.mxu0
        %v1174 = vadd.f32 0.0, %v1173
        %v1175 = vpop.f32.mrf.mxu0
        %v1176 = vadd.f32 0.0, %v1175
        %1177 = vmatmul.bf16.gmra.mxu0 %v517
        %v1178 = vpop.f32.mrf.mxu0
        %v1179 = vadd.f32 0.0, %v1178
        %v1180 = vpop.f32.mrf.mxu0
        %v1181 = vadd.f32 0.0, %v1180
        %1182 = vmatmul.bf16.gmra.mxu0 %v519
        %v1183 = vpop.f32.mrf.mxu0
        %v1184 = vadd.f32 0.0, %v1183
        %v1185 = vpop.f32.mrf.mxu0
        %v1186 = vadd.f32 0.0, %v1185
        %1187 = vmatmul.bf16.gmra.mxu0 %v521
        %v1188 = vpop.f32.mrf.mxu0
        %v1189 = vadd.f32 0.0, %v1188
        %v1190 = vpop.f32.mrf.mxu0
        %v1191 = vadd.f32 0.0, %v1190
        %1192 = vmatmul.bf16.gmra.mxu0 %v523
        %v1193 = vpop.f32.mrf.mxu0
        %v1194 = vadd.f32 0.0, %v1193
        %v1195 = vpop.f32.mrf.mxu0
        %v1196 = vadd.f32 0.0, %v1195
        %1197 = vmatmul.bf16.gmra.mxu0 %v525
        %v1198 = vpop.f32.mrf.mxu0
        %v1199 = vadd.f32 0.0, %v1198
        %v1200 = vpop.f32.mrf.mxu0
        %v1201 = vadd.f32 0.0, %v1200
        %1202 = vmatmul.bf16.gmra.mxu0 %v527
        %v1203 = vpop.f32.mrf.mxu0
        %v1204 = vadd.f32 0.0, %v1203
        %v1205 = vpop.f32.mrf.mxu0
        %v1206 = vadd.f32 0.0, %v1205
        %1207 = vdwg.mxu0
        %1208 = vmatpush.bf16.msra.mxu0 %v800
        %1209 = vmatpush.bf16.msra.mxu0 %v796
        %1210 = vmatpush.bf16.msra.mxu0 %v792
        %1211 = vmatpush.bf16.msra.mxu0 %v788
        %1212 = vmatpush.bf16.msra.mxu0 %v784
        %1213 = vmatpush.bf16.msra.mxu0 %v780
        %1214 = vmatpush.bf16.msra.mxu0 %v776
        %1215 = vmatpush.bf16.msra.mxu0 %v772
        %1216 = vmatmul.bf16.gmra.mxu0 %v514
        %v1217 = vpop.f32.mrf.mxu0
        %v1218 = vadd.f32 %v1169, %v1217
        %v1219 = vpop.f32.mrf.mxu0
        %v1220 = vadd.f32 %v1171, %v1219
        %1221 = vmatmul.bf16.gmra.mxu0 %v516
        %v1222 = vpop.f32.mrf.mxu0
        %v1223 = vadd.f32 %v1174, %v1222
        %v1224 = vpop.f32.mrf.mxu0
        %v1225 = vadd.f32 %v1176, %v1224
        %1226 = vmatmul.bf16.gmra.mxu0 %v518
        %v1227 = vpop.f32.mrf.mxu0
        %v1228 = vadd.f32 %v1179, %v1227
        %v1229 = vpop.f32.mrf.mxu0
        %v1230 = vadd.f32 %v1181, %v1229
        %1231 = vmatmul.bf16.gmra.mxu0 %v520
        %v1232 = vpop.f32.mrf.mxu0
        %v1233 = vadd.f32 %v1184, %v1232
        %v1234 = vpop.f32.mrf.mxu0
        %v1235 = vadd.f32 %v1186, %v1234
        %1236 = vmatmul.bf16.gmra.mxu0 %v522
        %v1237 = vpop.f32.mrf.mxu0
        %v1238 = vadd.f32 %v1189, %v1237
        %v1239 = vpop.f32.mrf.mxu0
        %v1240 = vadd.f32 %v1191, %v1239
        %1241 = vmatmul.bf16.gmra.mxu0 %v524
        %v1242 = vpop.f32.mrf.mxu0
        %v1243 = vadd.f32 %v1194, %v1242
        %v1244 = vpop.f32.mrf.mxu0
        %v1245 = vadd.f32 %v1196, %v1244
        %1246 = vmatmul.bf16.gmra.mxu0 %v526
        %v1247 = vpop.f32.mrf.mxu0
        %v1248 = vadd.f32 %v1199, %v1247
        %v1249 = vpop.f32.mrf.mxu0
        %v1250 = vadd.f32 %v1201, %v1249
        %1251 = vmatmul.bf16.gmra.mxu0 %v528
        %v1252 = vpop.f32.mrf.mxu0
        %v1253 = vadd.f32 %v1204, %v1252
        %v1254 = vpop.f32.mrf.mxu0
        %v1255 = vadd.f32 %v1206, %v1254
        %1256 = vdwg.mxu0
        %v1257 = vxor.u32 %v924, 2147483648
        %v1258 = vxor.u32 %v1022, 2147483648
        %v1259 = vxor.u32 %v926, 2147483648
        %v1260 = vxor.u32 %v1024, 2147483648
        %v1261 = vxor.u32 %v929, 2147483648
        %v1262 = vxor.u32 %v1027, 2147483648
        %v1263 = vxor.u32 %v931, 2147483648
        %v1264 = vxor.u32 %v1029, 2147483648
        %v1265 = vxor.u32 %v934, 2147483648
        %v1266 = vxor.u32 %v1032, 2147483648
        %v1267 = vxor.u32 %v936, 2147483648
        %v1268 = vxor.u32 %v1034, 2147483648
        %v1269 = vxor.u32 %v939, 2147483648
        %v1270 = vxor.u32 %v1037, 2147483648
        %v1271 = vxor.u32 %v941, 2147483648
        %v1272 = vxor.u32 %v1039, 2147483648
        %v1273 = vxor.u32 %v944, 2147483648
        %v1274 = vxor.u32 %v1042, 2147483648
        %v1275 = vxor.u32 %v946, 2147483648
        %v1276 = vxor.u32 %v1044, 2147483648
        %v1277 = vxor.u32 %v949, 2147483648
        %v1278 = vxor.u32 %v1047, 2147483648
        %v1279 = vxor.u32 %v951, 2147483648
        %v1280 = vxor.u32 %v1049, 2147483648
        %v1281 = vxor.u32 %v954, 2147483648
        %v1282 = vxor.u32 %v1052, 2147483648
        %v1283 = vxor.u32 %v956, 2147483648
        %v1284 = vxor.u32 %v1054, 2147483648
        %v1285 = vxor.u32 %v959, 2147483648
        %v1286 = vxor.u32 %v1057, 2147483648
        %v1287 = vxor.u32 %v961, 2147483648
        %v1288 = vxor.u32 %v1059, 2147483648
        %v1289 = vmul.f32 %v1257, 1.442695
        %v1290 = vpow.pop %v1289
        %v1291 = vmul.f32 %v1258, 1.442695
        %v1292 = vpow.pop %v1291
        %v1293 = vmul.f32 %v1259, 1.442695
        %v1294 = vpow.pop %v1293
        %v1295 = vmul.f32 %v1260, 1.442695
        %v1296 = vpow.pop %v1295
        %v1297 = vmul.f32 %v1261, 1.442695
        %v1298 = vpow.pop %v1297
        %v1299 = vmul.f32 %v1262, 1.442695
        %v1300 = vpow.pop %v1299
        %v1301 = vmul.f32 %v1263, 1.442695
        %v1302 = vpow.pop %v1301
        %v1303 = vmul.f32 %v1264, 1.442695
        %v1304 = vpow.pop %v1303
        %v1305 = vmul.f32 %v1265, 1.442695
        %v1306 = vpow.pop %v1305
        %v1307 = vmul.f32 %v1266, 1.442695
        %v1308 = vpow.pop %v1307
        %v1309 = vmul.f32 %v1267, 1.442695
        %v1310 = vpow.pop %v1309
        %v1311 = vmul.f32 %v1268, 1.442695
        %v1312 = vpow.pop %v1311
        %v1313 = vmul.f32 %v1269, 1.442695
        %v1314 = vpow.pop %v1313
        %v1315 = vmul.f32 %v1270, 1.442695
        %v1316 = vpow.pop %v1315
        %v1317 = vmul.f32 %v1271, 1.442695
        %v1318 = vpow.pop %v1317
        %v1319 = vmul.f32 %v1272, 1.442695
        %v1320 = vpow.pop %v1319
        %v1321 = vmul.f32 %v1273, 1.442695
        %v1322 = vpow.pop %v1321
        %v1323 = vmul.f32 %v1274, 1.442695
        %v1324 = vpow.pop %v1323
        %v1325 = vmul.f32 %v1275, 1.442695
        %v1326 = vpow.pop %v1325
        %v1327 = vmul.f32 %v1276, 1.442695
        %v1328 = vpow.pop %v1327
        %v1329 = vmul.f32 %v1277, 1.442695
        %v1330 = vpow.pop %v1329
        %v1331 = vmul.f32 %v1278, 1.442695
        %v1332 = vpow.pop %v1331
        %v1333 = vmul.f32 %v1279, 1.442695
        %v1334 = vpow.pop %v1333
        %v1335 = vmul.f32 %v1280, 1.442695
        %v1336 = vpow.pop %v1335
        %v1337 = vmul.f32 %v1281, 1.442695
        %v1338 = vpow.pop %v1337
        %v1339 = vmul.f32 %v1282, 1.442695
        %v1340 = vpow.pop %v1339
        %v1341 = vmul.f32 %v1283, 1.442695
        %v1342 = vpow.pop %v1341
        %v1343 = vmul.f32 %v1284, 1.442695
        %v1344 = vpow.pop %v1343
        %v1345 = vmul.f32 %v1285, 1.442695
        %v1346 = vpow.pop %v1345
        %v1347 = vmul.f32 %v1286, 1.442695
        %v1348 = vpow.pop %v1347
        %v1349 = vmul.f32 %v1287, 1.442695
        %v1350 = vpow.pop %v1349
        %v1351 = vmul.f32 %v1288, 1.442695
        %v1352 = vpow.pop %v1351
        %v1353 = vadd.f32 %v1290, 1.0
        %v1354 = vadd.f32 %v1292, 1.0
        %v1355 = vadd.f32 %v1294, 1.0
        %v1356 = vadd.f32 %v1296, 1.0
        %v1357 = vadd.f32 %v1298, 1.0
        %v1358 = vadd.f32 %v1300, 1.0
        %v1359 = vadd.f32 %v1302, 1.0
        %v1360 = vadd.f32 %v1304, 1.0
        %v1361 = vadd.f32 %v1306, 1.0
        %v1362 = vadd.f32 %v1308, 1.0
        %v1363 = vadd.f32 %v1310, 1.0
        %v1364 = vadd.f32 %v1312, 1.0
        %v1365 = vadd.f32 %v1314, 1.0
        %v1366 = vadd.f32 %v1316, 1.0
        %v1367 = vadd.f32 %v1318, 1.0
        %v1368 = vadd.f32 %v1320, 1.0
        %v1369 = vadd.f32 %v1322, 1.0
        %v1370 = vadd.f32 %v1324, 1.0
        %v1371 = vadd.f32 %v1326, 1.0
        %v1372 = vadd.f32 %v1328, 1.0
        %v1373 = vadd.f32 %v1330, 1.0
        %v1374 = vadd.f32 %v1332, 1.0
        %v1375 = vadd.f32 %v1334, 1.0
        %v1376 = vadd.f32 %v1336, 1.0
        %v1377 = vadd.f32 %v1338, 1.0
        %v1378 = vadd.f32 %v1340, 1.0
        %v1379 = vadd.f32 %v1342, 1.0
        %v1380 = vadd.f32 %v1344, 1.0
        %v1381 = vadd.f32 %v1346, 1.0
        %v1382 = vadd.f32 %v1348, 1.0
        %v1383 = vadd.f32 %v1350, 1.0
        %v1384 = vadd.f32 %v1352, 1.0
        %v1385 = vrcp.pop %v1353
        %v1386 = vmul.f32 %v1353, %v1385
        %v1387 = vsub.f32 1.0, %v1386
        %v1388 = vmul.f32 %v1385, %v1387
        %v1389 = vadd.f32 %v1385, %v1388
        %vm1390 = vweird.f32 %v1353
        %vm1391 = vweird.f32 %v1385
        %vm1392 = vmor %vm1390, %vm1391
        %v1393 = vsel %vm1392, %v1385, %v1389
        %v1394 = vand.u32 2147483647, %v1353
        %vm1395 = vcmp.eq.f32.partialorder %v1394, 8.507059e+37
        %v1396 = vand.u32 %v1353, 2147483648
        %v1397 = vor.u32 1.1754944e-38, %v1396
        %v1398 = vsel %vm1395, %v1397, %v1393
        %v1399 = vmul.f32 1.0, %v1398
        %v1400 = vrcp.pop %v1354
        %v1401 = vmul.f32 %v1354, %v1400
        %v1402 = vsub.f32 1.0, %v1401
        %v1403 = vmul.f32 %v1400, %v1402
        %v1404 = vadd.f32 %v1400, %v1403
        %vm1405 = vweird.f32 %v1354
        %vm1406 = vweird.f32 %v1400
        %vm1407 = vmor %vm1405, %vm1406
        %v1408 = vsel %vm1407, %v1400, %v1404
        %v1409 = vand.u32 2147483647, %v1354
        %vm1410 = vcmp.eq.f32.partialorder %v1409, 8.507059e+37
        %v1411 = vand.u32 %v1354, 2147483648
        %v1412 = vor.u32 1.1754944e-38, %v1411
        %v1413 = vsel %vm1410, %v1412, %v1408
        %v1414 = vmul.f32 1.0, %v1413
        %v1415 = vrcp.pop %v1355
        %v1416 = vmul.f32 %v1355, %v1415
        %v1417 = vsub.f32 1.0, %v1416
        %v1418 = vmul.f32 %v1415, %v1417
        %v1419 = vadd.f32 %v1415, %v1418
        %vm1420 = vweird.f32 %v1355
        %vm1421 = vweird.f32 %v1415
        %vm1422 = vmor %vm1420, %vm1421
        %v1423 = vsel %vm1422, %v1415, %v1419
        %v1424 = vand.u32 2147483647, %v1355
        %vm1425 = vcmp.eq.f32.partialorder %v1424, 8.507059e+37
        %v1426 = vand.u32 %v1355, 2147483648
        %v1427 = vor.u32 1.1754944e-38, %v1426
        %v1428 = vsel %vm1425, %v1427, %v1423
        %v1429 = vmul.f32 1.0, %v1428
        %v1430 = vrcp.pop %v1356
        %v1431 = vmul.f32 %v1356, %v1430
        %v1432 = vsub.f32 1.0, %v1431
        %v1433 = vmul.f32 %v1430, %v1432
        %v1434 = vadd.f32 %v1430, %v1433
        %vm1435 = vweird.f32 %v1356
        %vm1436 = vweird.f32 %v1430
        %vm1437 = vmor %vm1435, %vm1436
        %v1438 = vsel %vm1437, %v1430, %v1434
        %v1439 = vand.u32 2147483647, %v1356
        %vm1440 = vcmp.eq.f32.partialorder %v1439, 8.507059e+37
        %v1441 = vand.u32 %v1356, 2147483648
        %v1442 = vor.u32 1.1754944e-38, %v1441
        %v1443 = vsel %vm1440, %v1442, %v1438
        %v1444 = vmul.f32 1.0, %v1443
        %v1445 = vrcp.pop %v1357
        %v1446 = vmul.f32 %v1357, %v1445
        %v1447 = vsub.f32 1.0, %v1446
        %v1448 = vmul.f32 %v1445, %v1447
        %v1449 = vadd.f32 %v1445, %v1448
        %vm1450 = vweird.f32 %v1357
        %vm1451 = vweird.f32 %v1445
        %vm1452 = vmor %vm1450, %vm1451
        %v1453 = vsel %vm1452, %v1445, %v1449
        %v1454 = vand.u32 2147483647, %v1357
        %vm1455 = vcmp.eq.f32.partialorder %v1454, 8.507059e+37
        %v1456 = vand.u32 %v1357, 2147483648
        %v1457 = vor.u32 1.1754944e-38, %v1456
        %v1458 = vsel %vm1455, %v1457, %v1453
        %v1459 = vmul.f32 1.0, %v1458
        %v1460 = vrcp.pop %v1358
        %v1461 = vmul.f32 %v1358, %v1460
        %v1462 = vsub.f32 1.0, %v1461
        %v1463 = vmul.f32 %v1460, %v1462
        %v1464 = vadd.f32 %v1460, %v1463
        %vm1465 = vweird.f32 %v1358
        %vm1466 = vweird.f32 %v1460
        %vm1467 = vmor %vm1465, %vm1466
        %v1468 = vsel %vm1467, %v1460, %v1464
        %v1469 = vand.u32 2147483647, %v1358
        %vm1470 = vcmp.eq.f32.partialorder %v1469, 8.507059e+37
        %v1471 = vand.u32 %v1358, 2147483648
        %v1472 = vor.u32 1.1754944e-38, %v1471
        %v1473 = vsel %vm1470, %v1472, %v1468
        %v1474 = vmul.f32 1.0, %v1473
        %v1475 = vrcp.pop %v1359
        %v1476 = vmul.f32 %v1359, %v1475
        %v1477 = vsub.f32 1.0, %v1476
        %v1478 = vmul.f32 %v1475, %v1477
        %v1479 = vadd.f32 %v1475, %v1478
        %vm1480 = vweird.f32 %v1359
        %vm1481 = vweird.f32 %v1475
        %vm1482 = vmor %vm1480, %vm1481
        %v1483 = vsel %vm1482, %v1475, %v1479
        %v1484 = vand.u32 2147483647, %v1359
        %vm1485 = vcmp.eq.f32.partialorder %v1484, 8.507059e+37
        %v1486 = vand.u32 %v1359, 2147483648
        %v1487 = vor.u32 1.1754944e-38, %v1486
        %v1488 = vsel %vm1485, %v1487, %v1483
        %v1489 = vmul.f32 1.0, %v1488
        %v1490 = vrcp.pop %v1360
        %v1491 = vmul.f32 %v1360, %v1490
        %v1492 = vsub.f32 1.0, %v1491
        %v1493 = vmul.f32 %v1490, %v1492
        %v1494 = vadd.f32 %v1490, %v1493
        %vm1495 = vweird.f32 %v1360
        %vm1496 = vweird.f32 %v1490
        %vm1497 = vmor %vm1495, %vm1496
        %v1498 = vsel %vm1497, %v1490, %v1494
        %v1499 = vand.u32 2147483647, %v1360
        %vm1500 = vcmp.eq.f32.partialorder %v1499, 8.507059e+37
        %v1501 = vand.u32 %v1360, 2147483648
        %v1502 = vor.u32 1.1754944e-38, %v1501
        %v1503 = vsel %vm1500, %v1502, %v1498
        %v1504 = vmul.f32 1.0, %v1503
        %v1505 = vrcp.pop %v1361
        %v1506 = vmul.f32 %v1361, %v1505
        %v1507 = vsub.f32 1.0, %v1506
        %v1508 = vmul.f32 %v1505, %v1507
        %v1509 = vadd.f32 %v1505, %v1508
        %vm1510 = vweird.f32 %v1361
        %vm1511 = vweird.f32 %v1505
        %vm1512 = vmor %vm1510, %vm1511
        %v1513 = vsel %vm1512, %v1505, %v1509
        %v1514 = vand.u32 2147483647, %v1361
        %vm1515 = vcmp.eq.f32.partialorder %v1514, 8.507059e+37
        %v1516 = vand.u32 %v1361, 2147483648
        %v1517 = vor.u32 1.1754944e-38, %v1516
        %v1518 = vsel %vm1515, %v1517, %v1513
        %v1519 = vmul.f32 1.0, %v1518
        %v1520 = vrcp.pop %v1362
        %v1521 = vmul.f32 %v1362, %v1520
        %v1522 = vsub.f32 1.0, %v1521
        %v1523 = vmul.f32 %v1520, %v1522
        %v1524 = vadd.f32 %v1520, %v1523
        %vm1525 = vweird.f32 %v1362
        %vm1526 = vweird.f32 %v1520
        %vm1527 = vmor %vm1525, %vm1526
        %v1528 = vsel %vm1527, %v1520, %v1524
        %v1529 = vand.u32 2147483647, %v1362
        %vm1530 = vcmp.eq.f32.partialorder %v1529, 8.507059e+37
        %v1531 = vand.u32 %v1362, 2147483648
        %v1532 = vor.u32 1.1754944e-38, %v1531
        %v1533 = vsel %vm1530, %v1532, %v1528
        %v1534 = vmul.f32 1.0, %v1533
        %v1535 = vrcp.pop %v1363
        %v1536 = vmul.f32 %v1363, %v1535
        %v1537 = vsub.f32 1.0, %v1536
        %v1538 = vmul.f32 %v1535, %v1537
        %v1539 = vadd.f32 %v1535, %v1538
        %vm1540 = vweird.f32 %v1363
        %vm1541 = vweird.f32 %v1535
        %vm1542 = vmor %vm1540, %vm1541
        %v1543 = vsel %vm1542, %v1535, %v1539
        %v1544 = vand.u32 2147483647, %v1363
        %vm1545 = vcmp.eq.f32.partialorder %v1544, 8.507059e+37
        %v1546 = vand.u32 %v1363, 2147483648
        %v1547 = vor.u32 1.1754944e-38, %v1546
        %v1548 = vsel %vm1545, %v1547, %v1543
        %v1549 = vmul.f32 1.0, %v1548
        %v1550 = vrcp.pop %v1364
        %v1551 = vmul.f32 %v1364, %v1550
        %v1552 = vsub.f32 1.0, %v1551
        %v1553 = vmul.f32 %v1550, %v1552
        %v1554 = vadd.f32 %v1550, %v1553
        %vm1555 = vweird.f32 %v1364
        %vm1556 = vweird.f32 %v1550
        %vm1557 = vmor %vm1555, %vm1556
        %v1558 = vsel %vm1557, %v1550, %v1554
        %v1559 = vand.u32 2147483647, %v1364
        %vm1560 = vcmp.eq.f32.partialorder %v1559, 8.507059e+37
        %v1561 = vand.u32 %v1364, 2147483648
        %v1562 = vor.u32 1.1754944e-38, %v1561
        %v1563 = vsel %vm1560, %v1562, %v1558
        %v1564 = vmul.f32 1.0, %v1563
        %v1565 = vrcp.pop %v1365
        %v1566 = vmul.f32 %v1365, %v1565
        %v1567 = vsub.f32 1.0, %v1566
        %v1568 = vmul.f32 %v1565, %v1567
        %v1569 = vadd.f32 %v1565, %v1568
        %vm1570 = vweird.f32 %v1365
        %vm1571 = vweird.f32 %v1565
        %vm1572 = vmor %vm1570, %vm1571
        %v1573 = vsel %vm1572, %v1565, %v1569
        %v1574 = vand.u32 2147483647, %v1365
        %vm1575 = vcmp.eq.f32.partialorder %v1574, 8.507059e+37
        %v1576 = vand.u32 %v1365, 2147483648
        %v1577 = vor.u32 1.1754944e-38, %v1576
        %v1578 = vsel %vm1575, %v1577, %v1573
        %v1579 = vmul.f32 1.0, %v1578
        %v1580 = vrcp.pop %v1366
        %v1581 = vmul.f32 %v1366, %v1580
        %v1582 = vsub.f32 1.0, %v1581
        %v1583 = vmul.f32 %v1580, %v1582
        %v1584 = vadd.f32 %v1580, %v1583
        %vm1585 = vweird.f32 %v1366
        %vm1586 = vweird.f32 %v1580
        %vm1587 = vmor %vm1585, %vm1586
        %v1588 = vsel %vm1587, %v1580, %v1584
        %v1589 = vand.u32 2147483647, %v1366
        %vm1590 = vcmp.eq.f32.partialorder %v1589, 8.507059e+37
        %v1591 = vand.u32 %v1366, 2147483648
        %v1592 = vor.u32 1.1754944e-38, %v1591
        %v1593 = vsel %vm1590, %v1592, %v1588
        %v1594 = vmul.f32 1.0, %v1593
        %v1595 = vrcp.pop %v1367
        %v1596 = vmul.f32 %v1367, %v1595
        %v1597 = vsub.f32 1.0, %v1596
        %v1598 = vmul.f32 %v1595, %v1597
        %v1599 = vadd.f32 %v1595, %v1598
        %vm1600 = vweird.f32 %v1367
        %vm1601 = vweird.f32 %v1595
        %vm1602 = vmor %vm1600, %vm1601
        %v1603 = vsel %vm1602, %v1595, %v1599
        %v1604 = vand.u32 2147483647, %v1367
        %vm1605 = vcmp.eq.f32.partialorder %v1604, 8.507059e+37
        %v1606 = vand.u32 %v1367, 2147483648
        %v1607 = vor.u32 1.1754944e-38, %v1606
        %v1608 = vsel %vm1605, %v1607, %v1603
        %v1609 = vmul.f32 1.0, %v1608
        %v1610 = vrcp.pop %v1368
        %v1611 = vmul.f32 %v1368, %v1610
        %v1612 = vsub.f32 1.0, %v1611
        %v1613 = vmul.f32 %v1610, %v1612
        %v1614 = vadd.f32 %v1610, %v1613
        %vm1615 = vweird.f32 %v1368
        %vm1616 = vweird.f32 %v1610
        %vm1617 = vmor %vm1615, %vm1616
        %v1618 = vsel %vm1617, %v1610, %v1614
        %v1619 = vand.u32 2147483647, %v1368
        %vm1620 = vcmp.eq.f32.partialorder %v1619, 8.507059e+37
        %v1621 = vand.u32 %v1368, 2147483648
        %v1622 = vor.u32 1.1754944e-38, %v1621
        %v1623 = vsel %vm1620, %v1622, %v1618
        %v1624 = vmul.f32 1.0, %v1623
        %v1625 = vrcp.pop %v1369
        %v1626 = vmul.f32 %v1369, %v1625
        %v1627 = vsub.f32 1.0, %v1626
        %v1628 = vmul.f32 %v1625, %v1627
        %v1629 = vadd.f32 %v1625, %v1628
        %vm1630 = vweird.f32 %v1369
        %vm1631 = vweird.f32 %v1625
        %vm1632 = vmor %vm1630, %vm1631
        %v1633 = vsel %vm1632, %v1625, %v1629
        %v1634 = vand.u32 2147483647, %v1369
        %vm1635 = vcmp.eq.f32.partialorder %v1634, 8.507059e+37
        %v1636 = vand.u32 %v1369, 2147483648
        %v1637 = vor.u32 1.1754944e-38, %v1636
        %v1638 = vsel %vm1635, %v1637, %v1633
        %v1639 = vmul.f32 1.0, %v1638
        %v1640 = vrcp.pop %v1370
        %v1641 = vmul.f32 %v1370, %v1640
        %v1642 = vsub.f32 1.0, %v1641
        %v1643 = vmul.f32 %v1640, %v1642
        %v1644 = vadd.f32 %v1640, %v1643
        %vm1645 = vweird.f32 %v1370
        %vm1646 = vweird.f32 %v1640
        %vm1647 = vmor %vm1645, %vm1646
        %v1648 = vsel %vm1647, %v1640, %v1644
        %v1649 = vand.u32 2147483647, %v1370
        %vm1650 = vcmp.eq.f32.partialorder %v1649, 8.507059e+37
        %v1651 = vand.u32 %v1370, 2147483648
        %v1652 = vor.u32 1.1754944e-38, %v1651
        %v1653 = vsel %vm1650, %v1652, %v1648
        %v1654 = vmul.f32 1.0, %v1653
        %v1655 = vrcp.pop %v1371
        %v1656 = vmul.f32 %v1371, %v1655
        %v1657 = vsub.f32 1.0, %v1656
        %v1658 = vmul.f32 %v1655, %v1657
        %v1659 = vadd.f32 %v1655, %v1658
        %vm1660 = vweird.f32 %v1371
        %vm1661 = vweird.f32 %v1655
        %vm1662 = vmor %vm1660, %vm1661
        %v1663 = vsel %vm1662, %v1655, %v1659
        %v1664 = vand.u32 2147483647, %v1371
        %vm1665 = vcmp.eq.f32.partialorder %v1664, 8.507059e+37
        %v1666 = vand.u32 %v1371, 2147483648
        %v1667 = vor.u32 1.1754944e-38, %v1666
        %v1668 = vsel %vm1665, %v1667, %v1663
        %v1669 = vmul.f32 1.0, %v1668
        %v1670 = vrcp.pop %v1372
        %v1671 = vmul.f32 %v1372, %v1670
        %v1672 = vsub.f32 1.0, %v1671
        %v1673 = vmul.f32 %v1670, %v1672
        %v1674 = vadd.f32 %v1670, %v1673
        %vm1675 = vweird.f32 %v1372
        %vm1676 = vweird.f32 %v1670
        %vm1677 = vmor %vm1675, %vm1676
        %v1678 = vsel %vm1677, %v1670, %v1674
        %v1679 = vand.u32 2147483647, %v1372
        %vm1680 = vcmp.eq.f32.partialorder %v1679, 8.507059e+37
        %v1681 = vand.u32 %v1372, 2147483648
        %v1682 = vor.u32 1.1754944e-38, %v1681
        %v1683 = vsel %vm1680, %v1682, %v1678
        %v1684 = vmul.f32 1.0, %v1683
        %v1685 = vrcp.pop %v1373
        %v1686 = vmul.f32 %v1373, %v1685
        %v1687 = vsub.f32 1.0, %v1686
        %v1688 = vmul.f32 %v1685, %v1687
        %v1689 = vadd.f32 %v1685, %v1688
        %vm1690 = vweird.f32 %v1373
        %vm1691 = vweird.f32 %v1685
        %vm1692 = vmor %vm1690, %vm1691
        %v1693 = vsel %vm1692, %v1685, %v1689
        %v1694 = vand.u32 2147483647, %v1373
        %vm1695 = vcmp.eq.f32.partialorder %v1694, 8.507059e+37
        %v1696 = vand.u32 %v1373, 2147483648
        %v1697 = vor.u32 1.1754944e-38, %v1696
        %v1698 = vsel %vm1695, %v1697, %v1693
        %v1699 = vmul.f32 1.0, %v1698
        %v1700 = vrcp.pop %v1374
        %v1701 = vmul.f32 %v1374, %v1700
        %v1702 = vsub.f32 1.0, %v1701
        %v1703 = vmul.f32 %v1700, %v1702
        %v1704 = vadd.f32 %v1700, %v1703
        %vm1705 = vweird.f32 %v1374
        %vm1706 = vweird.f32 %v1700
        %vm1707 = vmor %vm1705, %vm1706
        %v1708 = vsel %vm1707, %v1700, %v1704
        %v1709 = vand.u32 2147483647, %v1374
        %vm1710 = vcmp.eq.f32.partialorder %v1709, 8.507059e+37
        %v1711 = vand.u32 %v1374, 2147483648
        %v1712 = vor.u32 1.1754944e-38, %v1711
        %v1713 = vsel %vm1710, %v1712, %v1708
        %v1714 = vmul.f32 1.0, %v1713
        %v1715 = vrcp.pop %v1375
        %v1716 = vmul.f32 %v1375, %v1715
        %v1717 = vsub.f32 1.0, %v1716
        %v1718 = vmul.f32 %v1715, %v1717
        %v1719 = vadd.f32 %v1715, %v1718
        %vm1720 = vweird.f32 %v1375
        %vm1721 = vweird.f32 %v1715
        %vm1722 = vmor %vm1720, %vm1721
        %v1723 = vsel %vm1722, %v1715, %v1719
        %v1724 = vand.u32 2147483647, %v1375
        %vm1725 = vcmp.eq.f32.partialorder %v1724, 8.507059e+37
        %v1726 = vand.u32 %v1375, 2147483648
        %v1727 = vor.u32 1.1754944e-38, %v1726
        %v1728 = vsel %vm1725, %v1727, %v1723
        %v1729 = vmul.f32 1.0, %v1728
        %v1730 = vrcp.pop %v1376
        %v1731 = vmul.f32 %v1376, %v1730
        %v1732 = vsub.f32 1.0, %v1731
        %v1733 = vmul.f32 %v1730, %v1732
        %v1734 = vadd.f32 %v1730, %v1733
        %vm1735 = vweird.f32 %v1376
        %vm1736 = vweird.f32 %v1730
        %vm1737 = vmor %vm1735, %vm1736
        %v1738 = vsel %vm1737, %v1730, %v1734
        %v1739 = vand.u32 2147483647, %v1376
        %vm1740 = vcmp.eq.f32.partialorder %v1739, 8.507059e+37
        %v1741 = vand.u32 %v1376, 2147483648
        %v1742 = vor.u32 1.1754944e-38, %v1741
        %v1743 = vsel %vm1740, %v1742, %v1738
        %v1744 = vmul.f32 1.0, %v1743
        %v1745 = vrcp.pop %v1377
        %v1746 = vmul.f32 %v1377, %v1745
        %v1747 = vsub.f32 1.0, %v1746
        %v1748 = vmul.f32 %v1745, %v1747
        %v1749 = vadd.f32 %v1745, %v1748
        %vm1750 = vweird.f32 %v1377
        %vm1751 = vweird.f32 %v1745
        %vm1752 = vmor %vm1750, %vm1751
        %v1753 = vsel %vm1752, %v1745, %v1749
        %v1754 = vand.u32 2147483647, %v1377
        %vm1755 = vcmp.eq.f32.partialorder %v1754, 8.507059e+37
        %v1756 = vand.u32 %v1377, 2147483648
        %v1757 = vor.u32 1.1754944e-38, %v1756
        %v1758 = vsel %vm1755, %v1757, %v1753
        %v1759 = vmul.f32 1.0, %v1758
        %v1760 = vrcp.pop %v1378
        %v1761 = vmul.f32 %v1378, %v1760
        %v1762 = vsub.f32 1.0, %v1761
        %v1763 = vmul.f32 %v1760, %v1762
        %v1764 = vadd.f32 %v1760, %v1763
        %vm1765 = vweird.f32 %v1378
        %vm1766 = vweird.f32 %v1760
        %vm1767 = vmor %vm1765, %vm1766
        %v1768 = vsel %vm1767, %v1760, %v1764
        %v1769 = vand.u32 2147483647, %v1378
        %vm1770 = vcmp.eq.f32.partialorder %v1769, 8.507059e+37
        %v1771 = vand.u32 %v1378, 2147483648
        %v1772 = vor.u32 1.1754944e-38, %v1771
        %v1773 = vsel %vm1770, %v1772, %v1768
        %v1774 = vmul.f32 1.0, %v1773
        %v1775 = vrcp.pop %v1379
        %v1776 = vmul.f32 %v1379, %v1775
        %v1777 = vsub.f32 1.0, %v1776
        %v1778 = vmul.f32 %v1775, %v1777
        %v1779 = vadd.f32 %v1775, %v1778
        %vm1780 = vweird.f32 %v1379
        %vm1781 = vweird.f32 %v1775
        %vm1782 = vmor %vm1780, %vm1781
        %v1783 = vsel %vm1782, %v1775, %v1779
        %v1784 = vand.u32 2147483647, %v1379
        %vm1785 = vcmp.eq.f32.partialorder %v1784, 8.507059e+37
        %v1786 = vand.u32 %v1379, 2147483648
        %v1787 = vor.u32 1.1754944e-38, %v1786
        %v1788 = vsel %vm1785, %v1787, %v1783
        %v1789 = vmul.f32 1.0, %v1788
        %v1790 = vrcp.pop %v1380
        %v1791 = vmul.f32 %v1380, %v1790
        %v1792 = vsub.f32 1.0, %v1791
        %v1793 = vmul.f32 %v1790, %v1792
        %v1794 = vadd.f32 %v1790, %v1793
        %vm1795 = vweird.f32 %v1380
        %vm1796 = vweird.f32 %v1790
        %vm1797 = vmor %vm1795, %vm1796
        %v1798 = vsel %vm1797, %v1790, %v1794
        %v1799 = vand.u32 2147483647, %v1380
        %vm1800 = vcmp.eq.f32.partialorder %v1799, 8.507059e+37
        %v1801 = vand.u32 %v1380, 2147483648
        %v1802 = vor.u32 1.1754944e-38, %v1801
        %v1803 = vsel %vm1800, %v1802, %v1798
        %v1804 = vmul.f32 1.0, %v1803
        %v1805 = vrcp.pop %v1381
        %v1806 = vmul.f32 %v1381, %v1805
        %v1807 = vsub.f32 1.0, %v1806
        %v1808 = vmul.f32 %v1805, %v1807
        %v1809 = vadd.f32 %v1805, %v1808
        %vm1810 = vweird.f32 %v1381
        %vm1811 = vweird.f32 %v1805
        %vm1812 = vmor %vm1810, %vm1811
        %v1813 = vsel %vm1812, %v1805, %v1809
        %v1814 = vand.u32 2147483647, %v1381
        %vm1815 = vcmp.eq.f32.partialorder %v1814, 8.507059e+37
        %v1816 = vand.u32 %v1381, 2147483648
        %v1817 = vor.u32 1.1754944e-38, %v1816
        %v1818 = vsel %vm1815, %v1817, %v1813
        %v1819 = vmul.f32 1.0, %v1818
        %v1820 = vrcp.pop %v1382
        %v1821 = vmul.f32 %v1382, %v1820
        %v1822 = vsub.f32 1.0, %v1821
        %v1823 = vmul.f32 %v1820, %v1822
        %v1824 = vadd.f32 %v1820, %v1823
        %vm1825 = vweird.f32 %v1382
        %vm1826 = vweird.f32 %v1820
        %vm1827 = vmor %vm1825, %vm1826
        %v1828 = vsel %vm1827, %v1820, %v1824
        %v1829 = vand.u32 2147483647, %v1382
        %vm1830 = vcmp.eq.f32.partialorder %v1829, 8.507059e+37
        %v1831 = vand.u32 %v1382, 2147483648
        %v1832 = vor.u32 1.1754944e-38, %v1831
        %v1833 = vsel %vm1830, %v1832, %v1828
        %v1834 = vmul.f32 1.0, %v1833
        %v1835 = vrcp.pop %v1383
        %v1836 = vmul.f32 %v1383, %v1835
        %v1837 = vsub.f32 1.0, %v1836
        %v1838 = vmul.f32 %v1835, %v1837
        %v1839 = vadd.f32 %v1835, %v1838
        %vm1840 = vweird.f32 %v1383
        %vm1841 = vweird.f32 %v1835
        %vm1842 = vmor %vm1840, %vm1841
        %v1843 = vsel %vm1842, %v1835, %v1839
        %v1844 = vand.u32 2147483647, %v1383
        %vm1845 = vcmp.eq.f32.partialorder %v1844, 8.507059e+37
        %v1846 = vand.u32 %v1383, 2147483648
        %v1847 = vor.u32 1.1754944e-38, %v1846
        %v1848 = vsel %vm1845, %v1847, %v1843
        %v1849 = vmul.f32 1.0, %v1848
        %v1850 = vrcp.pop %v1384
        %v1851 = vmul.f32 %v1384, %v1850
        %v1852 = vsub.f32 1.0, %v1851
        %v1853 = vmul.f32 %v1850, %v1852
        %v1854 = vadd.f32 %v1850, %v1853
        %vm1855 = vweird.f32 %v1384
        %vm1856 = vweird.f32 %v1850
        %vm1857 = vmor %vm1855, %vm1856
        %v1858 = vsel %vm1857, %v1850, %v1854
        %v1859 = vand.u32 2147483647, %v1384
        %vm1860 = vcmp.eq.f32.partialorder %v1859, 8.507059e+37
        %v1861 = vand.u32 %v1384, 2147483648
        %v1862 = vor.u32 1.1754944e-38, %v1861
        %v1863 = vsel %vm1860, %v1862, %v1858
        %v1864 = vmul.f32 1.0, %v1863
        %v1865 = vmul.f32 %v924, %v1399
        %v1866 = vmul.f32 %v1022, %v1414
        %v1867 = vmul.f32 %v926, %v1429
        %v1868 = vmul.f32 %v1024, %v1444
        %v1869 = vmul.f32 %v929, %v1459
        %v1870 = vmul.f32 %v1027, %v1474
        %v1871 = vmul.f32 %v931, %v1489
        %v1872 = vmul.f32 %v1029, %v1504
        %v1873 = vmul.f32 %v934, %v1519
        %v1874 = vmul.f32 %v1032, %v1534
        %v1875 = vmul.f32 %v936, %v1549
        %v1876 = vmul.f32 %v1034, %v1564
        %v1877 = vmul.f32 %v939, %v1579
        %v1878 = vmul.f32 %v1037, %v1594
        %v1879 = vmul.f32 %v941, %v1609
        %v1880 = vmul.f32 %v1039, %v1624
        %v1881 = vmul.f32 %v944, %v1639
        %v1882 = vmul.f32 %v1042, %v1654
        %v1883 = vmul.f32 %v946, %v1669
        %v1884 = vmul.f32 %v1044, %v1684
        %v1885 = vmul.f32 %v949, %v1699
        %v1886 = vmul.f32 %v1047, %v1714
        %v1887 = vmul.f32 %v951, %v1729
        %v1888 = vmul.f32 %v1049, %v1744
        %v1889 = vmul.f32 %v954, %v1759
        %v1890 = vmul.f32 %v1052, %v1774
        %v1891 = vmul.f32 %v956, %v1789
        %v1892 = vmul.f32 %v1054, %v1804
        %v1893 = vmul.f32 %v959, %v1819
        %v1894 = vmul.f32 %v1057, %v1834
        %v1895 = vmul.f32 %v961, %v1849
        %v1896 = vmul.f32 %v1059, %v1864
        %v1897 = vmul.f32 %v1865, %v1120
        %v1898 = vmul.f32 %v1866, %v1218
        %v1899 = vmul.f32 %v1867, %v1122
        %v1900 = vmul.f32 %v1868, %v1220
        %v1901 = vmul.f32 %v1869, %v1125
        %v1902 = vmul.f32 %v1870, %v1223
        %v1903 = vmul.f32 %v1871, %v1127
        %v1904 = vmul.f32 %v1872, %v1225
        %v1905 = vmul.f32 %v1873, %v1130
        %v1906 = vmul.f32 %v1874, %v1228
        %v1907 = vmul.f32 %v1875, %v1132
        %v1908 = vmul.f32 %v1876, %v1230
        %v1909 = vmul.f32 %v1877, %v1135
        %v1910 = vmul.f32 %v1878, %v1233
        %v1911 = vmul.f32 %v1879, %v1137
        %v1912 = vmul.f32 %v1880, %v1235
        %v1913 = vmul.f32 %v1881, %v1140
        %v1914 = vmul.f32 %v1882, %v1238
        %v1915 = vmul.f32 %v1883, %v1142
        %v1916 = vmul.f32 %v1884, %v1240
        %v1917 = vmul.f32 %v1885, %v1145
        %v1918 = vmul.f32 %v1886, %v1243
        %v1919 = vmul.f32 %v1887, %v1147
        %v1920 = vmul.f32 %v1888, %v1245
        %v1921 = vmul.f32 %v1889, %v1150
        %v1922 = vmul.f32 %v1890, %v1248
        %v1923 = vmul.f32 %v1891, %v1152
        %v1924 = vmul.f32 %v1892, %v1250
        %v1925 = vmul.f32 %v1893, %v1155
        %v1926 = vmul.f32 %v1894, %v1253
        %v1927 = vmul.f32 %v1895, %v1157
        %v1928 = vmul.f32 %v1896, %v1255
        %v1929 = vld [vmem:[#allocation2] sm:$0xff]
        %v1930 = vld [vmem:[#allocation2 + $0x8] sm:$0xff]
        %v1931 = vld [vmem:[#allocation2 + $0x10] sm:$0xff]
        %v1932 = vld [vmem:[#allocation2 + $0x18] sm:$0xff]
        %v1933 = vld [vmem:[#allocation2 + $0x20] sm:$0xff]
        %v1934 = vld [vmem:[#allocation2 + $0x28] sm:$0xff]
        %v1935 = vld [vmem:[#allocation2 + $0x30] sm:$0xff]
        %v1936 = vld [vmem:[#allocation2 + $0x38] sm:$0xff]
        %v1937 = vld [vmem:[#allocation2 + $0x40] sm:$0xff]
        %v1938 = vld [vmem:[#allocation2 + $0x48] sm:$0xff]
        %v1939 = vld [vmem:[#allocation2 + $0x50] sm:$0xff]
        %v1940 = vld [vmem:[#allocation2 + $0x58] sm:$0xff]
        %v1941 = vld [vmem:[#allocation2 + $0x60] sm:$0xff]
        %v1942 = vld [vmem:[#allocation2 + $0x68] sm:$0xff]
        %v1943 = vld [vmem:[#allocation2 + $0x70] sm:$0xff]
        %v1944 = vld [vmem:[#allocation2 + $0x78] sm:$0xff]
        %v1945 = vld [vmem:[#allocation2 + $0x80] sm:$0xff]
        %v1946 = vld [vmem:[#allocation2 + $0x88] sm:$0xff]
        %v1947 = vld [vmem:[#allocation2 + $0x90] sm:$0xff]
        %v1948 = vld [vmem:[#allocation2 + $0x98] sm:$0xff]
        %v1949 = vld [vmem:[#allocation2 + $0xa0] sm:$0xff]
        %v1950 = vld [vmem:[#allocation2 + $0xa8] sm:$0xff]
        %v1951 = vld [vmem:[#allocation2 + $0xb0] sm:$0xff]
        %v1952 = vld [vmem:[#allocation2 + $0xb8] sm:$0xff]
        %v1953 = vld [vmem:[#allocation2 + $0xc0] sm:$0xff]
        %v1954 = vld [vmem:[#allocation2 + $0xc8] sm:$0xff]
        %v1955 = vld [vmem:[#allocation2 + $0xd0] sm:$0xff]
        %v1956 = vld [vmem:[#allocation2 + $0xd8] sm:$0xff]
        %v1957 = vld [vmem:[#allocation2 + $0xe0] sm:$0xff]
        %v1958 = vld [vmem:[#allocation2 + $0xe8] sm:$0xff]
        %v1959 = vld [vmem:[#allocation2 + $0xf0] sm:$0xff]
        %v1960 = vld [vmem:[#allocation2 + $0xf8] sm:$0xff]
        %v1961 = vpack.c.bf16 %v1899, %v1897
        %v1962 = vpack.c.bf16 %v1900, %v1898
        %v1963 = vpack.c.bf16 %v1903, %v1901
        %v1964 = vpack.c.bf16 %v1904, %v1902
        %v1965 = vpack.c.bf16 %v1907, %v1905
        %v1966 = vpack.c.bf16 %v1908, %v1906
        %v1967 = vpack.c.bf16 %v1911, %v1909
        %v1968 = vpack.c.bf16 %v1912, %v1910
        %v1969 = vpack.c.bf16 %v1915, %v1913
        %v1970 = vpack.c.bf16 %v1916, %v1914
        %v1971 = vpack.c.bf16 %v1919, %v1917
        %v1972 = vpack.c.bf16 %v1920, %v1918
        %v1973 = vpack.c.bf16 %v1923, %v1921
        %v1974 = vpack.c.bf16 %v1924, %v1922
        %v1975 = vpack.c.bf16 %v1927, %v1925
        %v1976 = vpack.c.bf16 %v1928, %v1926
        %v1977 = vld [vmem:[%s334] sm:$0xff]
        %v1978 = vld [vmem:[%s334 + $0x8] sm:$0xff]
        %v1979 = vld [vmem:[%s334 + $0x10] sm:$0xff]
        %v1980 = vld [vmem:[%s334 + $0x18] sm:$0xff]
        %v1981 = vld [vmem:[%s334 + $0x20] sm:$0xff]
        %v1982 = vld [vmem:[%s334 + $0x28] sm:$0xff]
        %v1983 = vld [vmem:[%s334 + $0x30] sm:$0xff]
        %v1984 = vld [vmem:[%s334 + $0x38] sm:$0xff]
        %v1985 = vld [vmem:[%s334 + $0x40] sm:$0xff]
        %v1986 = vld [vmem:[%s334 + $0x48] sm:$0xff]
        %v1987 = vld [vmem:[%s334 + $0x50] sm:$0xff]
        %v1988 = vld [vmem:[%s334 + $0x58] sm:$0xff]
        %v1989 = vld [vmem:[%s334 + $0x60] sm:$0xff]
        %v1990 = vld [vmem:[%s334 + $0x68] sm:$0xff]
        %v1991 = vld [vmem:[%s334 + $0x70] sm:$0xff]
        %v1992 = vld [vmem:[%s334 + $0x78] sm:$0xff]
        %v1993 = vld [vmem:[%s334 + $0x80] sm:$0xff]
        %v1994 = vld [vmem:[%s334 + $0x88] sm:$0xff]
        %v1995 = vld [vmem:[%s334 + $0x90] sm:$0xff]
        %v1996 = vld [vmem:[%s334 + $0x98] sm:$0xff]
        %v1997 = vld [vmem:[%s334 + $0xa0] sm:$0xff]
        %v1998 = vld [vmem:[%s334 + $0xa8] sm:$0xff]
        %v1999 = vld [vmem:[%s334 + $0xb0] sm:$0xff]
        %v2000 = vld [vmem:[%s334 + $0xb8] sm:$0xff]
        %v2001 = vld [vmem:[%s334 + $0xc0] sm:$0xff]
        %v2002 = vld [vmem:[%s334 + $0xc8] sm:$0xff]
        %v2003 = vld [vmem:[%s334 + $0xd0] sm:$0xff]
        %v2004 = vld [vmem:[%s334 + $0xd8] sm:$0xff]
        %v2005 = vld [vmem:[%s334 + $0xe0] sm:$0xff]
        %v2006 = vld [vmem:[%s334 + $0xe8] sm:$0xff]
        %v2007 = vld [vmem:[%s334 + $0xf0] sm:$0xff]
        %v2008 = vld [vmem:[%s334 + $0xf8] sm:$0xff]
        %v2041 = vunpack.c.l.b16 %v1977
        %v2042 = vunpack.c.h.b16 %v1977
        %v2043 = vunpack.c.l.b16 %v1978
        %v2044 = vunpack.c.h.b16 %v1978
        %v2045 = vunpack.c.l.b16 %v1979
        %v2046 = vunpack.c.h.b16 %v1979
        %v2047 = vunpack.c.l.b16 %v1980
        %v2048 = vunpack.c.h.b16 %v1980
        %v2049 = vunpack.c.l.b16 %v1981
        %v2050 = vunpack.c.h.b16 %v1981
        %v2051 = vunpack.c.l.b16 %v1982
        %v2052 = vunpack.c.h.b16 %v1982
        %v2053 = vunpack.c.l.b16 %v1983
        %v2054 = vunpack.c.h.b16 %v1983
        %v2055 = vunpack.c.l.b16 %v1984
        %v2056 = vunpack.c.h.b16 %v1984
        %v2057 = vunpack.c.l.b16 %v1985
        %v2058 = vunpack.c.h.b16 %v1985
        %v2059 = vunpack.c.l.b16 %v1986
        %v2060 = vunpack.c.h.b16 %v1986
        %v2061 = vunpack.c.l.b16 %v1987
        %v2062 = vunpack.c.h.b16 %v1987
        %v2063 = vunpack.c.l.b16 %v1988
        %v2064 = vunpack.c.h.b16 %v1988
        %v2065 = vunpack.c.l.b16 %v1989
        %v2066 = vunpack.c.h.b16 %v1989
        %v2067 = vunpack.c.l.b16 %v1990
        %v2068 = vunpack.c.h.b16 %v1990
        %v2069 = vunpack.c.l.b16 %v1991
        %v2070 = vunpack.c.h.b16 %v1991
        %v2071 = vunpack.c.l.b16 %v1992
        %v2072 = vunpack.c.h.b16 %v1992
        %v2073 = vunpack.c.l.b16 %v1993
        %v2074 = vunpack.c.h.b16 %v1993
        %v2075 = vunpack.c.l.b16 %v1994
        %v2076 = vunpack.c.h.b16 %v1994
        %v2077 = vunpack.c.l.b16 %v1995
        %v2078 = vunpack.c.h.b16 %v1995
        %v2079 = vunpack.c.l.b16 %v1996
        %v2080 = vunpack.c.h.b16 %v1996
        %v2081 = vunpack.c.l.b16 %v1997
        %v2082 = vunpack.c.h.b16 %v1997
        %v2083 = vunpack.c.l.b16 %v1998
        %v2084 = vunpack.c.h.b16 %v1998
        %v2085 = vunpack.c.l.b16 %v1999
        %v2086 = vunpack.c.h.b16 %v1999
        %v2087 = vunpack.c.l.b16 %v2000
        %v2088 = vunpack.c.h.b16 %v2000
        %v2089 = vunpack.c.l.b16 %v2001
        %v2090 = vunpack.c.h.b16 %v2001
        %v2091 = vunpack.c.l.b16 %v2002
        %v2092 = vunpack.c.h.b16 %v2002
        %v2093 = vunpack.c.l.b16 %v2003
        %v2094 = vunpack.c.h.b16 %v2003
        %v2095 = vunpack.c.l.b16 %v2004
        %v2096 = vunpack.c.h.b16 %v2004
        %v2097 = vunpack.c.l.b16 %v2005
        %v2098 = vunpack.c.h.b16 %v2005
        %v2099 = vunpack.c.l.b16 %v2006
        %v2100 = vunpack.c.h.b16 %v2006
        %v2101 = vunpack.c.l.b16 %v2007
        %v2102 = vunpack.c.h.b16 %v2007
        %v2103 = vunpack.c.l.b16 %v2008
        %v2104 = vunpack.c.h.b16 %v2008
        %v2105 = vpack.c.b16 %v2043, %v2041
        %v2106 = vpack.c.b16 %v2044, %v2042
        %v2107 = vpack.c.b16 %v2047, %v2045
        %v2108 = vpack.c.b16 %v2048, %v2046
        %v2109 = vpack.c.b16 %v2051, %v2049
        %v2110 = vpack.c.b16 %v2052, %v2050
        %v2111 = vpack.c.b16 %v2055, %v2053
        %v2112 = vpack.c.b16 %v2056, %v2054
        %v2113 = vpack.c.b16 %v2059, %v2057
        %v2114 = vpack.c.b16 %v2060, %v2058
        %v2115 = vpack.c.b16 %v2063, %v2061
        %v2116 = vpack.c.b16 %v2064, %v2062
        %v2117 = vpack.c.b16 %v2067, %v2065
        %v2118 = vpack.c.b16 %v2068, %v2066
        %v2119 = vpack.c.b16 %v2071, %v2069
        %v2120 = vpack.c.b16 %v2072, %v2070
        %v2121 = vpack.c.b16 %v2075, %v2073
        %v2122 = vpack.c.b16 %v2076, %v2074
        %v2123 = vpack.c.b16 %v2079, %v2077
        %v2124 = vpack.c.b16 %v2080, %v2078
        %v2125 = vpack.c.b16 %v2083, %v2081
        %v2126 = vpack.c.b16 %v2084, %v2082
        %v2127 = vpack.c.b16 %v2087, %v2085
        %v2128 = vpack.c.b16 %v2088, %v2086
        %v2129 = vpack.c.b16 %v2091, %v2089
        %v2130 = vpack.c.b16 %v2092, %v2090
        %v2131 = vpack.c.b16 %v2095, %v2093
        %v2132 = vpack.c.b16 %v2096, %v2094
        %v2133 = vpack.c.b16 %v2099, %v2097
        %v2134 = vpack.c.b16 %v2100, %v2098
        %v2135 = vpack.c.b16 %v2103, %v2101
        %v2136 = vpack.c.b16 %v2104, %v2102
        %2169 = vmatpush.bf16.msra.mxu0 %v2119
        %2170 = vmatpush.bf16.msra.mxu0 %v2117
        %2171 = vmatpush.bf16.msra.mxu0 %v2115
        %2172 = vmatpush.bf16.msra.mxu0 %v2113
        %2173 = vmatpush.bf16.msra.mxu0 %v2111
        %2174 = vmatpush.bf16.msra.mxu0 %v2109
        %2175 = vmatpush.bf16.msra.mxu0 %v2107
        %2176 = vmatpush.bf16.msra.mxu0 %v2105
        %2177 = vmatmul.bf16.gmra.mxu0 %v1961
        %v2178 = vpop.f32.mrf.mxu0
        %v2179 = vadd.f32 0.0, %v2178
        %v2180 = vpop.f32.mrf.mxu0
        %v2181 = vadd.f32 0.0, %v2180
        %2182 = vmatmul.bf16.gmra.mxu0 %v1963
        %v2183 = vpop.f32.mrf.mxu0
        %v2184 = vadd.f32 0.0, %v2183
        %v2185 = vpop.f32.mrf.mxu0
        %v2186 = vadd.f32 0.0, %v2185
        %2187 = vmatmul.bf16.gmra.mxu0 %v1965
        %v2188 = vpop.f32.mrf.mxu0
        %v2189 = vadd.f32 0.0, %v2188
        %v2190 = vpop.f32.mrf.mxu0
        %v2191 = vadd.f32 0.0, %v2190
        %2192 = vmatmul.bf16.gmra.mxu0 %v1967
        %v2193 = vpop.f32.mrf.mxu0
        %v2194 = vadd.f32 0.0, %v2193
        %v2195 = vpop.f32.mrf.mxu0
        %v2196 = vadd.f32 0.0, %v2195
        %2197 = vmatmul.bf16.gmra.mxu0 %v1969
        %v2198 = vpop.f32.mrf.mxu0
        %v2199 = vadd.f32 0.0, %v2198
        %v2200 = vpop.f32.mrf.mxu0
        %v2201 = vadd.f32 0.0, %v2200
        %2202 = vmatmul.bf16.gmra.mxu0 %v1971
        %v2203 = vpop.f32.mrf.mxu0
        %v2204 = vadd.f32 0.0, %v2203
        %v2205 = vpop.f32.mrf.mxu0
        %v2206 = vadd.f32 0.0, %v2205
        %2207 = vmatmul.bf16.gmra.mxu0 %v1973
        %v2208 = vpop.f32.mrf.mxu0
        %v2209 = vadd.f32 0.0, %v2208
        %v2210 = vpop.f32.mrf.mxu0
        %v2211 = vadd.f32 0.0, %v2210
        %2212 = vmatmul.bf16.gmra.mxu0 %v1975
        %v2213 = vpop.f32.mrf.mxu0
        %v2214 = vadd.f32 0.0, %v2213
        %v2215 = vpop.f32.mrf.mxu0
        %v2216 = vadd.f32 0.0, %v2215
        %2217 = vdwg.mxu0
        %2218 = vmatpush.bf16.msra.mxu0 %v2135
        %2219 = vmatpush.bf16.msra.mxu0 %v2133
        %2220 = vmatpush.bf16.msra.mxu0 %v2131
        %2221 = vmatpush.bf16.msra.mxu0 %v2129
        %2222 = vmatpush.bf16.msra.mxu0 %v2127
        %2223 = vmatpush.bf16.msra.mxu0 %v2125
        %2224 = vmatpush.bf16.msra.mxu0 %v2123
        %2225 = vmatpush.bf16.msra.mxu0 %v2121
        %2226 = vmatmul.bf16.gmra.mxu0 %v1962
        %v2227 = vpop.f32.mrf.mxu0
        %v2228 = vadd.f32 %v2179, %v2227
        %v2229 = vpop.f32.mrf.mxu0
        %v2230 = vadd.f32 %v2181, %v2229
        %2231 = vmatmul.bf16.gmra.mxu0 %v1964
        %v2232 = vpop.f32.mrf.mxu0
        %v2233 = vadd.f32 %v2184, %v2232
        %v2234 = vpop.f32.mrf.mxu0
        %v2235 = vadd.f32 %v2186, %v2234
        %2236 = vmatmul.bf16.gmra.mxu0 %v1966
        %v2237 = vpop.f32.mrf.mxu0
        %v2238 = vadd.f32 %v2189, %v2237
        %v2239 = vpop.f32.mrf.mxu0
        %v2240 = vadd.f32 %v2191, %v2239
        %2241 = vmatmul.bf16.gmra.mxu0 %v1968
        %v2242 = vpop.f32.mrf.mxu0
        %v2243 = vadd.f32 %v2194, %v2242
        %v2244 = vpop.f32.mrf.mxu0
        %v2245 = vadd.f32 %v2196, %v2244
        %2246 = vmatmul.bf16.gmra.mxu0 %v1970
        %v2247 = vpop.f32.mrf.mxu0
        %v2248 = vadd.f32 %v2199, %v2247
        %v2249 = vpop.f32.mrf.mxu0
        %v2250 = vadd.f32 %v2201, %v2249
        %2251 = vmatmul.bf16.gmra.mxu0 %v1972
        %v2252 = vpop.f32.mrf.mxu0
        %v2253 = vadd.f32 %v2204, %v2252
        %v2254 = vpop.f32.mrf.mxu0
        %v2255 = vadd.f32 %v2206, %v2254
        %2256 = vmatmul.bf16.gmra.mxu0 %v1974
        %v2257 = vpop.f32.mrf.mxu0
        %v2258 = vadd.f32 %v2209, %v2257
        %v2259 = vpop.f32.mrf.mxu0
        %v2260 = vadd.f32 %v2211, %v2259
        %2261 = vmatmul.bf16.gmra.mxu0 %v1976
        %v2262 = vpop.f32.mrf.mxu0
        %v2263 = vadd.f32 %v2214, %v2262
        %v2264 = vpop.f32.mrf.mxu0
        %v2265 = vadd.f32 %v2216, %v2264
        %2266 = vdwg.mxu0
        %2267 = vmatpush.bf16.msra.mxu0 %v2120
        %2268 = vmatpush.bf16.msra.mxu0 %v2118
        %2269 = vmatpush.bf16.msra.mxu0 %v2116
        %2270 = vmatpush.bf16.msra.mxu0 %v2114
        %2271 = vmatpush.bf16.msra.mxu0 %v2112
        %2272 = vmatpush.bf16.msra.mxu0 %v2110
        %2273 = vmatpush.bf16.msra.mxu0 %v2108
        %2274 = vmatpush.bf16.msra.mxu0 %v2106
        %2275 = vmatmul.bf16.gmra.mxu0 %v1961
        %v2276 = vpop.f32.mrf.mxu0
        %v2277 = vadd.f32 0.0, %v2276
        %v2278 = vpop.f32.mrf.mxu0
        %v2279 = vadd.f32 0.0, %v2278
        %2280 = vmatmul.bf16.gmra.mxu0 %v1963
        %v2281 = vpop.f32.mrf.mxu0
        %v2282 = vadd.f32 0.0, %v2281
        %v2283 = vpop.f32.mrf.mxu0
        %v2284 = vadd.f32 0.0, %v2283
        %2285 = vmatmul.bf16.gmra.mxu0 %v1965
        %v2286 = vpop.f32.mrf.mxu0
        %v2287 = vadd.f32 0.0, %v2286
        %v2288 = vpop.f32.mrf.mxu0
        %v2289 = vadd.f32 0.0, %v2288
        %2290 = vmatmul.bf16.gmra.mxu0 %v1967
        %v2291 = vpop.f32.mrf.mxu0
        %v2292 = vadd.f32 0.0, %v2291
        %v2293 = vpop.f32.mrf.mxu0
        %v2294 = vadd.f32 0.0, %v2293
        %2295 = vmatmul.bf16.gmra.mxu0 %v1969
        %v2296 = vpop.f32.mrf.mxu0
        %v2297 = vadd.f32 0.0, %v2296
        %v2298 = vpop.f32.mrf.mxu0
        %v2299 = vadd.f32 0.0, %v2298
        %2300 = vmatmul.bf16.gmra.mxu0 %v1971
        %v2301 = vpop.f32.mrf.mxu0
        %v2302 = vadd.f32 0.0, %v2301
        %v2303 = vpop.f32.mrf.mxu0
        %v2304 = vadd.f32 0.0, %v2303
        %2305 = vmatmul.bf16.gmra.mxu0 %v1973
        %v2306 = vpop.f32.mrf.mxu0
        %v2307 = vadd.f32 0.0, %v2306
        %v2308 = vpop.f32.mrf.mxu0
        %v2309 = vadd.f32 0.0, %v2308
        %2310 = vmatmul.bf16.gmra.mxu0 %v1975
        %v2311 = vpop.f32.mrf.mxu0
        %v2312 = vadd.f32 0.0, %v2311
        %v2313 = vpop.f32.mrf.mxu0
        %v2314 = vadd.f32 0.0, %v2313
        %2315 = vdwg.mxu0
        %2316 = vmatpush.bf16.msra.mxu0 %v2136
        %2317 = vmatpush.bf16.msra.mxu0 %v2134
        %2318 = vmatpush.bf16.msra.mxu0 %v2132
        %2319 = vmatpush.bf16.msra.mxu0 %v2130
        %2320 = vmatpush.bf16.msra.mxu0 %v2128
        %2321 = vmatpush.bf16.msra.mxu0 %v2126
        %2322 = vmatpush.bf16.msra.mxu0 %v2124
        %2323 = vmatpush.bf16.msra.mxu0 %v2122
        %2324 = vmatmul.bf16.gmra.mxu0 %v1962
        %v2325 = vpop.f32.mrf.mxu0
        %v2326 = vadd.f32 %v2277, %v2325
        %v2327 = vpop.f32.mrf.mxu0
        %v2328 = vadd.f32 %v2279, %v2327
        %2329 = vmatmul.bf16.gmra.mxu0 %v1964
        %v2330 = vpop.f32.mrf.mxu0
        %v2331 = vadd.f32 %v2282, %v2330
        %v2332 = vpop.f32.mrf.mxu0
        %v2333 = vadd.f32 %v2284, %v2332
        %2334 = vmatmul.bf16.gmra.mxu0 %v1966
        %v2335 = vpop.f32.mrf.mxu0
        %v2336 = vadd.f32 %v2287, %v2335
        %v2337 = vpop.f32.mrf.mxu0
        %v2338 = vadd.f32 %v2289, %v2337
        %2339 = vmatmul.bf16.gmra.mxu0 %v1968
        %v2340 = vpop.f32.mrf.mxu0
        %v2341 = vadd.f32 %v2292, %v2340
        %v2342 = vpop.f32.mrf.mxu0
        %v2343 = vadd.f32 %v2294, %v2342
        %2344 = vmatmul.bf16.gmra.mxu0 %v1970
        %v2345 = vpop.f32.mrf.mxu0
        %v2346 = vadd.f32 %v2297, %v2345
        %v2347 = vpop.f32.mrf.mxu0
        %v2348 = vadd.f32 %v2299, %v2347
        %2349 = vmatmul.bf16.gmra.mxu0 %v1972
        %v2350 = vpop.f32.mrf.mxu0
        %v2351 = vadd.f32 %v2302, %v2350
        %v2352 = vpop.f32.mrf.mxu0
        %v2353 = vadd.f32 %v2304, %v2352
        %2354 = vmatmul.bf16.gmra.mxu0 %v1974
        %v2355 = vpop.f32.mrf.mxu0
        %v2356 = vadd.f32 %v2307, %v2355
        %v2357 = vpop.f32.mrf.mxu0
        %v2358 = vadd.f32 %v2309, %v2357
        %2359 = vmatmul.bf16.gmra.mxu0 %v1976
        %v2360 = vpop.f32.mrf.mxu0
        %v2361 = vadd.f32 %v2312, %v2360
        %v2362 = vpop.f32.mrf.mxu0
        %v2363 = vadd.f32 %v2314, %v2362
        %2364 = vdwg.mxu0
        %v2365 = vadd.f32 %v1929, %v2228
        %v2366 = vadd.f32 %v1930, %v2326
        %v2367 = vadd.f32 %v1931, %v2230
        %v2368 = vadd.f32 %v1932, %v2328
        %v2369 = vadd.f32 %v1933, %v2233
        %v2370 = vadd.f32 %v1934, %v2331
        %v2371 = vadd.f32 %v1935, %v2235
        %v2372 = vadd.f32 %v1936, %v2333
        %v2373 = vadd.f32 %v1937, %v2238
        %v2374 = vadd.f32 %v1938, %v2336
        %v2375 = vadd.f32 %v1939, %v2240
        %v2376 = vadd.f32 %v1940, %v2338
        %v2377 = vadd.f32 %v1941, %v2243
        %v2378 = vadd.f32 %v1942, %v2341
        %v2379 = vadd.f32 %v1943, %v2245
        %v2380 = vadd.f32 %v1944, %v2343
        %v2381 = vadd.f32 %v1945, %v2248
        %v2382 = vadd.f32 %v1946, %v2346
        %v2383 = vadd.f32 %v1947, %v2250
        %v2384 = vadd.f32 %v1948, %v2348
        %v2385 = vadd.f32 %v1949, %v2253
        %v2386 = vadd.f32 %v1950, %v2351
        %v2387 = vadd.f32 %v1951, %v2255
        %v2388 = vadd.f32 %v1952, %v2353
        %v2389 = vadd.f32 %v1953, %v2258
        %v2390 = vadd.f32 %v1954, %v2356
        %v2391 = vadd.f32 %v1955, %v2260
        %v2392 = vadd.f32 %v1956, %v2358
        %v2393 = vadd.f32 %v1957, %v2263
        %v2394 = vadd.f32 %v1958, %v2361
        %v2395 = vadd.f32 %v1959, %v2265
        %v2396 = vadd.f32 %v1960, %v2363
        %2397 = vst [vmem:[#allocation2] sm:$0xff] %v2365
        %2398 = vst [vmem:[#allocation2 + $0x8] sm:$0xff] %v2366
        %2399 = vst [vmem:[#allocation2 + $0x10] sm:$0xff] %v2367
        %2400 = vst [vmem:[#allocation2 + $0x18] sm:$0xff] %v2368
        %2401 = vst [vmem:[#allocation2 + $0x20] sm:$0xff] %v2369
        %2402 = vst [vmem:[#allocation2 + $0x28] sm:$0xff] %v2370
        %2403 = vst [vmem:[#allocation2 + $0x30] sm:$0xff] %v2371
        %2404 = vst [vmem:[#allocation2 + $0x38] sm:$0xff] %v2372
        %2405 = vst [vmem:[#allocation2 + $0x40] sm:$0xff] %v2373
        %2406 = vst [vmem:[#allocation2 + $0x48] sm:$0xff] %v2374
        %2407 = vst [vmem:[#allocation2 + $0x50] sm:$0xff] %v2375
        %2408 = vst [vmem:[#allocation2 + $0x58] sm:$0xff] %v2376
        %2409 = vst [vmem:[#allocation2 + $0x60] sm:$0xff] %v2377
        %2410 = vst [vmem:[#allocation2 + $0x68] sm:$0xff] %v2378
        %2411 = vst [vmem:[#allocation2 + $0x70] sm:$0xff] %v2379
        %2412 = vst [vmem:[#allocation2 + $0x78] sm:$0xff] %v2380
        %2413 = vst [vmem:[#allocation2 + $0x80] sm:$0xff] %v2381
        %2414 = vst [vmem:[#allocation2 + $0x88] sm:$0xff] %v2382
        %2415 = vst [vmem:[#allocation2 + $0x90] sm:$0xff] %v2383
        %2416 = vst [vmem:[#allocation2 + $0x98] sm:$0xff] %v2384
        %2417 = vst [vmem:[#allocation2 + $0xa0] sm:$0xff] %v2385
        %2418 = vst [vmem:[#allocation2 + $0xa8] sm:$0xff] %v2386
        %2419 = vst [vmem:[#allocation2 + $0xb0] sm:$0xff] %v2387
        %2420 = vst [vmem:[#allocation2 + $0xb8] sm:$0xff] %v2388
        %2421 = vst [vmem:[#allocation2 + $0xc0] sm:$0xff] %v2389
        %2422 = vst [vmem:[#allocation2 + $0xc8] sm:$0xff] %v2390
        %2423 = vst [vmem:[#allocation2 + $0xd0] sm:$0xff] %v2391
        %2424 = vst [vmem:[#allocation2 + $0xd8] sm:$0xff] %v2392
        %2425 = vst [vmem:[#allocation2 + $0xe0] sm:$0xff] %v2393
        %2426 = vst [vmem:[#allocation2 + $0xe8] sm:$0xff] %v2394
        %2427 = vst [vmem:[#allocation2 + $0xf0] sm:$0xff] %v2395
        %2428 = vst [vmem:[#allocation2 + $0xf8] sm:$0xff] %v2396
      $region44: #{moe_forward.2} parent=35 // pred_fallthru
        _
      // Predicated region
      $region45: #{moe_forward.2} parent=35 // pred_check
        %p2429 = pneg %p344
      $region46: #{moe_forward.2} parent=35 // pred_check_branch
        %2431 = sbr.rel (%p2429) target = $region48
      $region47: #{moe_forward.2} parent=35 // pred_region
        %v2432 = vld [vmem:[#allocation2] sm:$0xff]
        %v2433 = vld [vmem:[#allocation2 + $0x8] sm:$0xff]
        %v2434 = vld [vmem:[#allocation2 + $0x10] sm:$0xff]
        %v2435 = vld [vmem:[#allocation2 + $0x18] sm:$0xff]
        %v2436 = vld [vmem:[#allocation2 + $0x20] sm:$0xff]
        %v2437 = vld [vmem:[#allocation2 + $0x28] sm:$0xff]
        %v2438 = vld [vmem:[#allocation2 + $0x30] sm:$0xff]
        %v2439 = vld [vmem:[#allocation2 + $0x38] sm:$0xff]
        %v2440 = vld [vmem:[#allocation2 + $0x40] sm:$0xff]
        %v2441 = vld [vmem:[#allocation2 + $0x48] sm:$0xff]
        %v2442 = vld [vmem:[#allocation2 + $0x50] sm:$0xff]
        %v2443 = vld [vmem:[#allocation2 + $0x58] sm:$0xff]
        %v2444 = vld [vmem:[#allocation2 + $0x60] sm:$0xff]
        %v2445 = vld [vmem:[#allocation2 + $0x68] sm:$0xff]
        %v2446 = vld [vmem:[#allocation2 + $0x70] sm:$0xff]
        %v2447 = vld [vmem:[#allocation2 + $0x78] sm:$0xff]
        %v2448 = vld [vmem:[#allocation2 + $0x80] sm:$0xff]
        %v2449 = vld [vmem:[#allocation2 + $0x88] sm:$0xff]
        %v2450 = vld [vmem:[#allocation2 + $0x90] sm:$0xff]
        %v2451 = vld [vmem:[#allocation2 + $0x98] sm:$0xff]
        %v2452 = vld [vmem:[#allocation2 + $0xa0] sm:$0xff]
        %v2453 = vld [vmem:[#allocation2 + $0xa8] sm:$0xff]
        %v2454 = vld [vmem:[#allocation2 + $0xb0] sm:$0xff]
        %v2455 = vld [vmem:[#allocation2 + $0xb8] sm:$0xff]
        %v2456 = vld [vmem:[#allocation2 + $0xc0] sm:$0xff]
        %v2457 = vld [vmem:[#allocation2 + $0xc8] sm:$0xff]
        %v2458 = vld [vmem:[#allocation2 + $0xd0] sm:$0xff]
        %v2459 = vld [vmem:[#allocation2 + $0xd8] sm:$0xff]
        %v2460 = vld [vmem:[#allocation2 + $0xe0] sm:$0xff]
        %v2461 = vld [vmem:[#allocation2 + $0xe8] sm:$0xff]
        %v2462 = vld [vmem:[#allocation2 + $0xf0] sm:$0xff]
        %v2463 = vld [vmem:[#allocation2 + $0xf8] sm:$0xff]
        %v2464 = vld [vmem:[%s310] sm:$0xff]
        %v2465 = vld [vmem:[%s310 + $0x8] sm:$0xff]
        %v2466 = vld [vmem:[%s310 + $0x10] sm:$0xff]
        %v2467 = vld [vmem:[%s310 + $0x18] sm:$0xff]
        %v2468 = vld [vmem:[%s310 + $0x20] sm:$0xff]
        %v2469 = vld [vmem:[%s310 + $0x28] sm:$0xff]
        %v2470 = vld [vmem:[%s310 + $0x30] sm:$0xff]
        %v2471 = vld [vmem:[%s310 + $0x38] sm:$0xff]
        %v2472 = vld [vmem:[%s310 + $0x40] sm:$0xff]
        %v2473 = vld [vmem:[%s310 + $0x48] sm:$0xff]
        %v2474 = vld [vmem:[%s310 + $0x50] sm:$0xff]
        %v2475 = vld [vmem:[%s310 + $0x58] sm:$0xff]
        %v2476 = vld [vmem:[%s310 + $0x60] sm:$0xff]
        %v2477 = vld [vmem:[%s310 + $0x68] sm:$0xff]
        %v2478 = vld [vmem:[%s310 + $0x70] sm:$0xff]
        %v2479 = vld [vmem:[%s310 + $0x78] sm:$0xff]
        %2481 = vset.pattern.permute.xlu0 0
        %2482 = vperm.xlu0 %2481, %v2464
        %v2483 = vpop.permute.xlu0 %2482
        %2486 = vset.pattern.permute.xlu0 0
        %2487 = vperm.xlu0 %2486, %v2465
        %v2488 = vpop.permute.xlu0 %2487
        %2491 = vset.pattern.permute.xlu0 0
        %2492 = vperm.xlu0 %2491, %v2466
        %v2493 = vpop.permute.xlu0 %2492
        %2496 = vset.pattern.permute.xlu0 0
        %2497 = vperm.xlu0 %2496, %v2467
        %v2498 = vpop.permute.xlu0 %2497
        %2501 = vset.pattern.permute.xlu0 0
        %2502 = vperm.xlu0 %2501, %v2468
        %v2503 = vpop.permute.xlu0 %2502
        %2506 = vset.pattern.permute.xlu0 0
        %2507 = vperm.xlu0 %2506, %v2469
        %v2508 = vpop.permute.xlu0 %2507
        %2511 = vset.pattern.permute.xlu0 0
        %2512 = vperm.xlu0 %2511, %v2470
        %v2513 = vpop.permute.xlu0 %2512
        %2516 = vset.pattern.permute.xlu0 0
        %2517 = vperm.xlu0 %2516, %v2471
        %v2518 = vpop.permute.xlu0 %2517
        %2521 = vset.pattern.permute.xlu0 0
        %2522 = vperm.xlu0 %2521, %v2472
        %v2523 = vpop.permute.xlu0 %2522
        %2526 = vset.pattern.permute.xlu0 0
        %2527 = vperm.xlu0 %2526, %v2473
        %v2528 = vpop.permute.xlu0 %2527
        %2531 = vset.pattern.permute.xlu0 0
        %2532 = vperm.xlu0 %2531, %v2474
        %v2533 = vpop.permute.xlu0 %2532
        %2536 = vset.pattern.permute.xlu0 0
        %2537 = vperm.xlu0 %2536, %v2475
        %v2538 = vpop.permute.xlu0 %2537
        %2541 = vset.pattern.permute.xlu0 0
        %2542 = vperm.xlu0 %2541, %v2476
        %v2543 = vpop.permute.xlu0 %2542
        %2546 = vset.pattern.permute.xlu0 0
        %2547 = vperm.xlu0 %2546, %v2477
        %v2548 = vpop.permute.xlu0 %2547
        %2551 = vset.pattern.permute.xlu0 0
        %2552 = vperm.xlu0 %2551, %v2478
        %v2553 = vpop.permute.xlu0 %2552
        %2556 = vset.pattern.permute.xlu0 0
        %2557 = vperm.xlu0 %2556, %v2479
        %v2558 = vpop.permute.xlu0 %2557
        %v2560 = vmul.f32 %v2432, %v2483
        %v2561 = vmul.f32 %v2433, %v2483
        %v2562 = vmul.f32 %v2434, %v2488
        %v2563 = vmul.f32 %v2435, %v2488
        %v2564 = vmul.f32 %v2436, %v2493
        %v2565 = vmul.f32 %v2437, %v2493
        %v2566 = vmul.f32 %v2438, %v2498
        %v2567 = vmul.f32 %v2439, %v2498
        %v2568 = vmul.f32 %v2440, %v2503
        %v2569 = vmul.f32 %v2441, %v2503
        %v2570 = vmul.f32 %v2442, %v2508
        %v2571 = vmul.f32 %v2443, %v2508
        %v2572 = vmul.f32 %v2444, %v2513
        %v2573 = vmul.f32 %v2445, %v2513
        %v2574 = vmul.f32 %v2446, %v2518
        %v2575 = vmul.f32 %v2447, %v2518
        %v2576 = vmul.f32 %v2448, %v2523
        %v2577 = vmul.f32 %v2449, %v2523
        %v2578 = vmul.f32 %v2450, %v2528
        %v2579 = vmul.f32 %v2451, %v2528
        %v2580 = vmul.f32 %v2452, %v2533
        %v2581 = vmul.f32 %v2453, %v2533
        %v2582 = vmul.f32 %v2454, %v2538
        %v2583 = vmul.f32 %v2455, %v2538
        %v2584 = vmul.f32 %v2456, %v2543
        %v2585 = vmul.f32 %v2457, %v2543
        %v2586 = vmul.f32 %v2458, %v2548
        %v2587 = vmul.f32 %v2459, %v2548
        %v2588 = vmul.f32 %v2460, %v2553
        %v2589 = vmul.f32 %v2461, %v2553
        %v2590 = vmul.f32 %v2462, %v2558
        %v2591 = vmul.f32 %v2463, %v2558
        %v2592 = vpack.c.bf16 %v2561, %v2560
        %v2593 = vpack.c.bf16 %v2563, %v2562
        %v2594 = vpack.c.bf16 %v2565, %v2564
        %v2595 = vpack.c.bf16 %v2567, %v2566
        %v2596 = vpack.c.bf16 %v2569, %v2568
        %v2597 = vpack.c.bf16 %v2571, %v2570
        %v2598 = vpack.c.bf16 %v2573, %v2572
        %v2599 = vpack.c.bf16 %v2575, %v2574
        %v2600 = vpack.c.bf16 %v2577, %v2576
        %v2601 = vpack.c.bf16 %v2579, %v2578
        %v2602 = vpack.c.bf16 %v2581, %v2580
        %v2603 = vpack.c.bf16 %v2583, %v2582
        %v2604 = vpack.c.bf16 %v2585, %v2584
        %v2605 = vpack.c.bf16 %v2587, %v2586
        %v2606 = vpack.c.bf16 %v2589, %v2588
        %v2607 = vpack.c.bf16 %v2591, %v2590
        %2608 = vst [vmem:[%s342] sm:$0xff] %v2592
        %2609 = vst [vmem:[%s342 + $0x8] sm:$0xff] %v2593
        %2610 = vst [vmem:[%s342 + $0x10] sm:$0xff] %v2594
        %2611 = vst [vmem:[%s342 + $0x18] sm:$0xff] %v2595
        %2612 = vst [vmem:[%s342 + $0x20] sm:$0xff] %v2596
        %2613 = vst [vmem:[%s342 + $0x28] sm:$0xff] %v2597
        %2614 = vst [vmem:[%s342 + $0x30] sm:$0xff] %v2598
        %2615 = vst [vmem:[%s342 + $0x38] sm:$0xff] %v2599
        %2616 = vst [vmem:[%s342 + $0x40] sm:$0xff] %v2600
        %2617 = vst [vmem:[%s342 + $0x48] sm:$0xff] %v2601
        %2618 = vst [vmem:[%s342 + $0x50] sm:$0xff] %v2602
        %2619 = vst [vmem:[%s342 + $0x58] sm:$0xff] %v2603
        %2620 = vst [vmem:[%s342 + $0x60] sm:$0xff] %v2604
        %2621 = vst [vmem:[%s342 + $0x68] sm:$0xff] %v2605
        %2622 = vst [vmem:[%s342 + $0x70] sm:$0xff] %v2606
        %2623 = vst [vmem:[%s342 + $0x78] sm:$0xff] %v2607
      $region48: #{moe_forward.2} parent=35 // pred_fallthru
        _
      %s2624 = smul.u32 16, %s34
      %p2625 = scmp.lt.s32.totalorder %s2624, 143
      %s2626 = scalar_select %p2625, %s2624, 143
      %s2627 = smul.addr %s2626, 2
      %s2628 = smul.addr %s2627, 4
      %s2629 = scalar_lea.vmem %s6, %s2628
      // Predicated region
      $region49: #{moe_forward.2} parent=35 // pred_check
        %p2630 = pneg %p172
      $region50: #{moe_forward.2} parent=35 // pred_check_branch
        %2632 = sbr.rel (%p2630) target = $region52
      $region51: #{moe_forward.2} parent=35 // pred_region
        %s2633 = smul.u32 16, %s34
      $region52: #{moe_forward.2} parent=35 // pred_fallthru
        _
    $region36: #{moe_forward.2} parent=5 // pred_fallthru
      _
    %p2634 = scmp.le.s32.totalorder 2, %s25
    // Predicated region
    $region53: #{moe_forward.2} parent=5 // pred_check
      %p2635 = pneg %p2634
    $region54: #{moe_forward.2} parent=5 // pred_check_branch
      %2637 = sbr.rel (%p2635) target = $region56
    $region55: #{moe_forward.2} parent=5 // pred_region
      %s2638 = ssub.s32 %s25, 2
      // Predicated region
      $region57: #{moe_forward.2} parent=55 // pred_check
        %p2639 = pneg %p178
      $region58: #{moe_forward.2} parent=55 // pred_check_branch
        %2641 = sbr.rel (%p2639) target = $region60
      $region59: #{moe_forward.2} parent=55 // pred_region
        %s2642 = smul.u32 16, %s36
        %p2643 = scmp.lt.s32.totalorder %s2642, 143
        %s2644 = scalar_select %p2643, %s2642, 143
        %s2645 = smul.addr %s2644, 2
        %s2646 = smul.addr %s2645, 4
        %s2647 = scalar_lea.vmem %s6, %s2646
      $region60: #{moe_forward.2} parent=55 // pred_fallthru
        _
    $region56: #{moe_forward.2} parent=5 // pred_fallthru
      _
  $region6: #{moe_forward.2} parent=0 // loop_footer
    %s29 = sadd.s32 1, %s25
  $region7: #{moe_forward.2} parent=0 // loop_footer_branch
    %24 = sbr.rel target = $region3
  $region8: #{moe_forward.2} parent=0 // loop_exit
    _

</llo_original>
